<compile_context>
chip_gen: v6e
topology: v6e:2x2x1
jax: 0.10.0
libtpu: 0.0.40
codegen_flags: <defaults>
</compile_context>

<pallas_src>
import functools

import jax
import jax.numpy as jnp
from jax import lax
from jax.experimental import pallas as pl
from jax.experimental.pallas import tpu as pltpu

HIDDEN = 128
NUM_LAYERS = 2


def _round_up(x, m):
    return ((x + m - 1) // m) * m


def _default_vmem_limit():
    """Half of physical VMEM, clamped to [32, 96] MiB; conservative 32 MiB fallback."""
    try:
        cap = int(pltpu.get_tpu_info().vmem_capacity_bytes)
    except Exception:
        return 32 * 1024 * 1024
    return int(min(96 * 1024 * 1024, max(32 * 1024 * 1024, cap // 2)))


_VMEM_LIMIT = _default_vmem_limit()


def _grunet_kernel(gi0_ref, h0_ref, whh0_ref, bhh0n_ref, w1_ref, b1_ref,
                   hseq_ref, hN_ref,
                   *, tc, seq_len, mask_tail, unroll):
    """Grid = (batch_blocks [parallel], time_chunks [arbitrary, innermost/sequential]).

    NOTE: the hN accumulator pattern requires the time-chunk axis to stay the LAST
    (innermost, sequentially iterated, "arbitrary") grid axis. Do not reorder.

    gi0_ref  : (tc, Bblk, 3H) bf16  precomputed x @ W_ih_l0^T + folded r/z/n biases
    h0_ref   : (2,  Bblk, H)  f32   initial hidden state
    whh0_ref : (H, 3H)        bf16  layer-0 recurrent weight (transposed)
    bhh0n_ref: (1, H)         f32   layer-0 b_hh (n gate only)
    w1_ref   : (2H, 4H)       bf16  fused layer-1 weight -> [r_sum, z_sum, gi_n, gh_n]
    b1_ref   : (1, 4H)        f32   [b_ih_r+b_hh_r, b_ih_z+b_hh_z, b_ih_n, b_hh_n]
    hseq_ref : (tc, Bblk, H)  bf16  per-step layer-1 hidden output (lane-dense)
    hN_ref   : (2,  Bblk, H)  f32   final hidden; resident across time, used as the
                                    live hidden-state accumulator between chunks.
    """
    H = HIDDEN
    c = pl.program_id(1)  # time-chunk index (sequential axis)

    @pl.when(c == 0)
    def _():
        hN_ref[...] = h0_ref[...]

    bb = hN_ref.shape[1]
    # Hoist bias broadcasts out of the time loop (broadcast_in_dim is not CSE'd).
    bhh0n_b = jnp.broadcast_to(bhh0n_ref[...], (bb, H))
    b1_b = jnp.broadcast_to(b1_ref[...], (bb, 4 * H))

    def step(t, carry):
        h_l0, h_l1 = carry

        # ---- layer 0 (input projection already folded into gi0) ----
        gi0 = gi0_ref[t].astype(jnp.float32)                              # (B, 3H)
        gh0 = jnp.dot(h_l0.astype(jnp.bfloat16), whh0_ref[...],
                      preferred_element_type=jnp.float32)                 # (B, 3H)
        r0 = jax.nn.sigmoid(gi0[:, :H] + gh0[:, :H])
        z0 = jax.nn.sigmoid(gi0[:, H:2 * H] + gh0[:, H:2 * H])
        n0 = jnp.tanh(gi0[:, 2 * H:] + r0 * (gh0[:, 2 * H:] + bhh0n_b))
        h_l0_new = (1.0 - z0) * n0 + z0 * h_l0

        # ---- layer 1: single fused K=2H matmul -> [r_sum, z_sum, gi_n, gh_n] ----
        hcat = jnp.concatenate([h_l0_new, h_l1], axis=-1).astype(jnp.bfloat16)
        g1 = jnp.dot(hcat, w1_ref[...], preferred_element_type=jnp.float32) + b1_b
        r1 = jax.nn.sigmoid(g1[:, :H])
        z1 = jax.nn.sigmoid(g1[:, H:2 * H])
        n1 = jnp.tanh(g1[:, 2 * H:3 * H] + r1 * g1[:, 3 * H:])
        h_l1_new = (1.0 - z1) * n1 + z1 * h_l1

        if mask_tail:  # only traced in when T % tc != 0
            valid = (c * tc + t) < seq_len
            h_l0_new = jnp.where(valid, h_l0_new, h_l0)
            h_l1_new = jnp.where(valid, h_l1_new, h_l1)

        hseq_ref[t] = h_l1_new.astype(hseq_ref.dtype)                     # lane-dense store
        return (h_l0_new, h_l1_new)

    h_l0_f, h_l1_f = lax.fori_loop(0, tc, step, (hN_ref[0], hN_ref[1]), unroll=unroll)
    hN_ref[0] = h_l0_f
    hN_ref[1] = h_l1_f


@functools.partial(jax.jit, static_argnames=("time_chunk",))
def grunet_forward(x, h0, params, *, time_chunk=None):
    """x: (B, T, in_size) float32 (batch_first). h0: (2, B, 128).
    Returns (out, new_hidden): out (B, T, out_size) f32, new_hidden (2, B, 128) f32."""
    B, T, in_size = x.shape
    out_size = params["fc_w"].shape[0]
    H = HIDDEN

    # ---- batch padding / blocking (sublane multiple; >=2 blocks feeds v7x megacore) --
    b_pad = _round_up(max(B, 8), 8)
    if b_pad >= 16:
        bblk = min(128, _round_up(b_pad // 2, 8))
    else:
        bblk = b_pad
    b_pad = _round_up(b_pad, bblk)
    nb = b_pad // bblk

    # ---- time chunking: size chunk from the generation-aware VMEM budget ----
    if time_chunk is None:
        budget = _VMEM_LIMIT // 4
        tc = max(8, budget // (bblk * 4 * H * 2 * 2))   # bf16 gi0+hseq, double-buffered
        tc = min(tc, 512)
    else:
        tc = int(time_chunk)
    tc = max(1, min(tc, T))
    t_pad = _round_up(T, tc)
    nc = t_pad // tc
    mask_tail = (t_pad != T)
    unroll = True if tc <= 16 else 8

    # ---- bias pre-folding ----
    b_ih0, b_hh0 = params["b_ih_l0"], params["b_hh_l0"]
    bi0 = jnp.concatenate([b_ih0[:2 * H] + b_hh0[:2 * H], b_ih0[2 * H:]])          # (3H,)
    bhh0_n = b_hh0[2 * H:].reshape(1, H)
    b_ih1, b_hh1 = params["b_ih_l1"], params["b_hh_l1"]
    b1 = jnp.concatenate([b_ih1[:2 * H] + b_hh1[:2 * H],
                          b_ih1[2 * H:], b_hh1[2 * H:]]).reshape(1, 4 * H)          # (1,4H)

    # ---- hoisted layer-0 input projection, computed directly in time-major layout --
    # Pad/transpose the SMALL x tensor (in_size columns), not the big 3H projection.
    x_tm = jnp.transpose(x, (1, 0, 2))                                              # (T,B,in)
    x_tm = jnp.pad(x_tm, ((0, t_pad - T), (0, b_pad - B), (0, 0)))
    gi0 = (jnp.dot(x_tm.reshape(t_pad * b_pad, in_size), params["w_ih_l0"].T,
                   preferred_element_type=jnp.float32) + bi0)
    gi0 = gi0.astype(jnp.bfloat16).reshape(t_pad, b_pad, 3 * H)

    h0_p = jnp.pad(h0, ((0, 0), (0, b_pad - B), (0, 0)))

    # ---- weights: bf16 streams; layer-1 fused & zero-padded to (2H, 4H) ----
    whh0_t = params["w_hh_l0"].T.astype(jnp.bfloat16)                               # (H,3H)
    wih1_t = params["w_ih_l1"].T                                                    # (H,3H)
    whh1_t = params["w_hh_l1"].T                                                    # (H,3H)
    zeros = jnp.zeros((H, H), jnp.float32)
    w1_fused = jnp.concatenate([
        jnp.concatenate([wih1_t[:, :2 * H], wih1_t[:, 2 * H:], zeros], axis=1),
        jnp.concatenate([whh1_t[:, :2 * H], zeros, whh1_t[:, 2 * H:]], axis=1),
    ], axis=0).astype(jnp.bfloat16)                                                 # (2H,4H)

    kernel = functools.partial(_grunet_kernel, tc=tc, seq_len=T,
                               mask_tail=mask_tail, unroll=unroll)

    hseq_tm, h_new_p = pl.pallas_call(
        kernel,
        out_shape=(
            jax.ShapeDtypeStruct((t_pad, b_pad, H), jnp.bfloat16),
            jax.ShapeDtypeStruct((NUM_LAYERS, b_pad, H), jnp.float32),
        ),
        grid_spec=pltpu.PrefetchScalarGridSpec(
            num_scalar_prefetch=0,
            grid=(nb, nc),                                   # time axis LAST (sequential)
            in_specs=[
                pl.BlockSpec((tc, bblk, 3 * H), lambda b, c: (c, b, 0)),      # gi0 chunk
                pl.BlockSpec((NUM_LAYERS, bblk, H), lambda b, c: (0, b, 0)),  # h0
                pl.BlockSpec((H, 3 * H), lambda b, c: (0, 0)),                # w_hh_l0^T
                pl.BlockSpec((1, H), lambda b, c: (0, 0)),                    # b_hh_l0 (n)
                pl.BlockSpec((2 * H, 4 * H), lambda b, c: (0, 0)),            # fused l1 W
                pl.BlockSpec((1, 4 * H), lambda b, c: (0, 0)),                # fused l1 bias
            ],
            out_specs=[
                pl.BlockSpec((tc, bblk, H), lambda b, c: (c, b, 0)),          # per-step hidden
                pl.BlockSpec((NUM_LAYERS, bblk, H), lambda b, c: (0, b, 0)),  # final hidden
            ],
        ),
        compiler_params=pltpu.CompilerParams(
            dimension_semantics=("parallel", "arbitrary"),
            vmem_limit_bytes=_VMEM_LIMIT,
        ),
    )(gi0, h0_p, whh0_t, bhh0_n, w1_fused, b1)

    # ---- FC head: one big lane-dense matmul outside the recurrence (bf16 in, f32 acc) --
    hseq = hseq_tm[:T, :B].reshape(T * B, H)
    out = (jnp.dot(hseq, params["fc_w"].T.astype(jnp.bfloat16),
                   preferred_element_type=jnp.float32)
           + params["fc_b"]).reshape(T, B, out_size).transpose(1, 0, 2)
    return out, h_new_p[:, :B, :]


def init_params(key, in_size, out_size):
    """Deterministic init matching PyTorch shapes: U(-1/sqrt(H), 1/sqrt(H))."""
    k = 1.0 / jnp.sqrt(jnp.float32(HIDDEN))
    keys = jax.random.split(key, 10)
    u = lambda kk, shape: jax.random.uniform(kk, shape, jnp.float32, -k, k)
    return {
        "w_ih_l0": u(keys[0], (3 * HIDDEN, in_size)),
        "w_hh_l0": u(keys[1], (3 * HIDDEN, HIDDEN)),
        "b_ih_l0": u(keys[2], (3 * HIDDEN,)),
        "b_hh_l0": u(keys[3], (3 * HIDDEN,)),
        "w_ih_l1": u(keys[4], (3 * HIDDEN, HIDDEN)),
        "w_hh_l1": u(keys[5], (3 * HIDDEN, HIDDEN)),
        "b_ih_l1": u(keys[6], (3 * HIDDEN,)),
        "b_hh_l1": u(keys[7], (3 * HIDDEN,)),
        "fc_w":    u(keys[8], (out_size, HIDDEN)),
        "fc_b":    u(keys[9], (out_size,)),
    }


def grunet_reference(x, h0, params):
    """Pure-JAX f32 reference (lax.scan) with identical PyTorch GRU semantics."""
    def cell(x_t, h, w_ih, w_hh, b_ih, b_hh):
        gi = x_t @ w_ih.T + b_ih
        gh = h @ w_hh.T + b_hh
        i_r, i_z, i_n = jnp.split(gi, 3, axis=-1)
        h_r, h_z, h_n = jnp.split(gh, 3, axis=-1)
        r = jax.nn.sigmoid(i_r + h_r)
        z = jax.nn.sigmoid(i_z + h_z)
        n = jnp.tanh(i_n + r * h_n)
        return (1.0 - z) * n + z * h

    def step(carry, x_t):
        h0_, h1_ = carry
        h0n = cell(x_t, h0_, params["w_ih_l0"], params["w_hh_l0"],
                   params["b_ih_l0"], params["b_hh_l0"])
        h1n = cell(h0n, h1_, params["w_ih_l1"], params["w_hh_l1"],
                   params["b_ih_l1"], params["b_hh_l1"])
        return (h0n, h1n), h1n

    x_tm = jnp.transpose(x, (1, 0, 2))
    (hf0, hf1), ys = jax.lax.scan(step, (h0[0], h0[1]), x_tm)
    out = jnp.transpose(ys, (1, 0, 2)) @ params["fc_w"].T + params["fc_b"]
    return out, jnp.stack([hf0, hf1], axis=0)


if __name__ == "__main__":
    key = jax.random.PRNGKey(0)

    # --- test 1: the module's nominal small shape (single chunk, no padding) ---
    B, T, IN_SIZE, OUT_SIZE = 2, 8, 16, 8
    k_x, k_p, k_x2 = jax.random.split(key, 3)
    x = jax.random.normal(k_x, (B, T, IN_SIZE), jnp.float32)
    h0 = jnp.zeros((NUM_LAYERS, B, HIDDEN), jnp.float32)   # hidden=None in PyTorch
    params = init_params(k_p, IN_SIZE, OUT_SIZE)

    out, h_new = grunet_forward(x, h0, params)
    jax.block_until_ready((out, h_new))
    out_ref, h_ref = grunet_reference(x, h0, params)
    assert out.shape == (B, T, OUT_SIZE) and h_new.shape == (NUM_LAYERS, B, HIDDEN)
    # bf16 gi0/hseq/weight streams (MXU truncates to bf16 at DEFAULT precision anyway)
    # -> compare against the f32 reference at a bf16-appropriate tolerance.
    assert jnp.allclose(out, out_ref, atol=2e-2, rtol=2e-2)
    assert jnp.allclose(h_new, h_ref, atol=2e-2, rtol=2e-2)

    # --- test 2: ragged batch/time to exercise batch padding, chunking and tail mask ---
    B2, T2 = 5, 13
    x2 = jax.random.normal(k_x2, (B2, T2, IN_SIZE), jnp.float32)
    h02 = jnp.zeros((NUM_LAYERS, B2, HIDDEN), jnp.float32)
    out2, h_new2 = grunet_forward(x2, h02, params, time_chunk=4)
    jax.block_until_ready((out2, h_new2))
    out2_ref, h2_ref = grunet_reference(x2, h02, params)
    assert jnp.allclose(out2, out2_ref, atol=2e-2, rtol=2e-2)
    assert jnp.allclose(h_new2, h2_ref, atol=2e-2, rtol=2e-2)

    print("KERNEL_OK")
</pallas_src>

<mosaic_0001>
module attributes {stable_mosaic.version = 11 : i64} {
  func.func @_grunet_kernel(%arg0: i32, %arg1: i32, %arg2: memref<8x8x384xbf16, #tpu.memory_space<vmem>>, %arg3: memref<2x8x128xf32, #tpu.memory_space<vmem>>, %arg4: memref<128x384xbf16, #tpu.memory_space<vmem>>, %arg5: memref<1x128xf32, #tpu.memory_space<vmem>>, %arg6: memref<256x512xbf16, #tpu.memory_space<vmem>>, %arg7: memref<1x512xf32, #tpu.memory_space<vmem>>, %arg8: memref<8x8x128xbf16, #tpu.memory_space<vmem>>, %arg9: memref<2x8x128xf32, #tpu.memory_space<vmem>>) attributes {dimension_semantics = [#tpu.dimension_semantics<parallel>, #tpu.dimension_semantics<arbitrary>], iteration_bounds = array<i64: 1, 1>, scalar_prefetch = 0 : i64, scratch_operands = 0 : i64, tpu.core_type = #tpu.core_type<tc>, window_params = [{transform_indices = @transform_0, window_bounds = array<i64: 8, 8, 384>}, {transform_indices = @transform_1, window_bounds = array<i64: 2, 8, 128>}, {pipeline_mode = #tpu.pipeline_mode<synchronous>, transform_indices = @transform_2, window_bounds = array<i64: 128, 384>}, {pipeline_mode = #tpu.pipeline_mode<synchronous>, transform_indices = @transform_3, window_bounds = array<i64: 1, 128>}, {pipeline_mode = #tpu.pipeline_mode<synchronous>, transform_indices = @transform_4, window_bounds = array<i64: 256, 512>}, {pipeline_mode = #tpu.pipeline_mode<synchronous>, transform_indices = @transform_5, window_bounds = array<i64: 1, 512>}, {transform_indices = @transform_6, window_bounds = array<i64: 8, 8, 128>}, {transform_indices = @transform_7, window_bounds = array<i64: 2, 8, 128>}]} {
    %c0_i32 = arith.constant 0 : i32
    %0 = arith.cmpi eq, %arg1, %c0_i32 : i32
    %1 = arith.extui %0 : i1 to i32
    %c0_i32_0 = arith.constant 0 : i32
    %2 = arith.cmpi ne, %1, %c0_i32_0 : i32
    scf.if %2 {
      %c0_143 = arith.constant 0 : index
      %c0_144 = arith.constant 0 : index
      %c0_145 = arith.constant 0 : index
      %547 = vector.load %arg3[%c0_143, %c0_144, %c0_145] : memref<2x8x128xf32, #tpu.memory_space<vmem>>, vector<2x8x128xf32>
      %c0_146 = arith.constant 0 : index
      %c0_147 = arith.constant 0 : index
      %c0_148 = arith.constant 0 : index
      %548 = vector.load %arg9[%c0_146, %c0_147, %c0_148] : memref<2x8x128xf32, #tpu.memory_space<vmem>>, vector<2x8x128xf32>
      tpu.vector_store %arg9[%c0_146, %c0_147, %c0_148], %547 {strides = array<i32>} : memref<2x8x128xf32, #tpu.memory_space<vmem>>, vector<2x8x128xf32>,
    } else {
    }
    %c0 = arith.constant 0 : index
    %c0_1 = arith.constant 0 : index
    %3 = vector.load %arg5[%c0, %c0_1] : memref<1x128xf32, #tpu.memory_space<vmem>>, vector<1x128xf32>
    %4 = vector.shape_cast %3 : vector<1x128xf32> to vector<1x128xf32>
    %5 = vector.broadcast %4 : vector<1x128xf32> to vector<8x128xf32>
    %c0_2 = arith.constant 0 : index
    %c0_3 = arith.constant 0 : index
    %6 = vector.load %arg7[%c0_2, %c0_3] : memref<1x512xf32, #tpu.memory_space<vmem>>, vector<1x512xf32>
    %7 = vector.shape_cast %6 : vector<1x512xf32> to vector<1x512xf32>
    %8 = vector.broadcast %7 : vector<1x512xf32> to vector<8x512xf32>
    %c0_4 = arith.constant 0 : index
    %c0_5 = arith.constant 0 : index
    %c0_6 = arith.constant 0 : index
    %9 = vector.load %arg9[%c0_4, %c0_5, %c0_6] : memref<2x8x128xf32, #tpu.memory_space<vmem>>, vector<1x8x128xf32>
    %10 = vector.shape_cast %9 : vector<1x8x128xf32> to vector<8x128xf32>
    %c1 = arith.constant 1 : index
    %c0_7 = arith.constant 0 : index
    %c0_8 = arith.constant 0 : index
    %11 = vector.load %arg9[%c1, %c0_7, %c0_8] : memref<2x8x128xf32, #tpu.memory_space<vmem>>, vector<1x8x128xf32>
    %12 = vector.shape_cast %11 : vector<1x8x128xf32> to vector<8x128xf32>
    %c0_i32_9 = arith.constant 0 : i32
    %13 = arith.index_cast %c0_i32_9 : i32 to index
    %c0_10 = arith.constant 0 : index
    %c0_11 = arith.constant 0 : index
    %14 = vector.load %arg2[%13, %c0_10, %c0_11] : memref<8x8x384xbf16, #tpu.memory_space<vmem>>, vector<1x8x384xbf16>
    %15 = vector.shape_cast %14 : vector<1x8x384xbf16> to vector<8x384xbf16>
    %16 = arith.extf %15 : vector<8x384xbf16> to vector<8x384xf32>
    %17 = arith.truncf %10 : vector<8x128xf32> to vector<8x128xbf16>
    %c0_12 = arith.constant 0 : index
    %c0_13 = arith.constant 0 : index
    %18 = vector.load %arg4[%c0_12, %c0_13] : memref<128x384xbf16, #tpu.memory_space<vmem>>, vector<128x384xbf16>
    %cst = arith.constant dense<0.000000e+00> : vector<8x384xf32>
    %19 = tpu.matmul %17, %18, %cst {dimension_numbers = #tpu.dot_dimension_numbers<[1], [0], [0], [1], [0, 0, 1, 1], [], []>} : vector<8x128xbf16>, vector<128x384xbf16>, vector<8x384xf32> -> vector<8x384xf32>
    %20 = vector.extract_strided_slice %16 {offsets = [0, 0], sizes = [8, 128], strides = [1, 1]} : vector<8x384xf32> to vector<8x128xf32>
    %21 = vector.extract_strided_slice %19 {offsets = [0, 0], sizes = [8, 128], strides = [1, 1]} : vector<8x384xf32> to vector<8x128xf32>
    %22 = arith.addf %20, %21 : vector<8x128xf32>
    %23 = arith.negf %22 : vector<8x128xf32>
    %24 = math.exp %23 : vector<8x128xf32>
    %cst_14 = arith.constant 1.000000e+00 : f32
    %25 = vector.broadcast %cst_14 : f32 to vector<8x128xf32>
    %26 = arith.addf %25, %24 : vector<8x128xf32>
    %27 = arith.divf %25, %26 : vector<8x128xf32>
    %28 = vector.extract_strided_slice %16 {offsets = [0, 128], sizes = [8, 128], strides = [1, 1]} : vector<8x384xf32> to vector<8x128xf32>
    %29 = vector.extract_strided_slice %19 {offsets = [0, 128], sizes = [8, 128], strides = [1, 1]} : vector<8x384xf32> to vector<8x128xf32>
    %30 = arith.addf %28, %29 : vector<8x128xf32>
    %31 = arith.negf %30 : vector<8x128xf32>
    %32 = math.exp %31 : vector<8x128xf32>
    %cst_15 = arith.constant 1.000000e+00 : f32
    %33 = vector.broadcast %cst_15 : f32 to vector<8x128xf32>
    %34 = arith.addf %33, %32 : vector<8x128xf32>
    %35 = arith.divf %33, %34 : vector<8x128xf32>
    %36 = vector.extract_strided_slice %16 {offsets = [0, 256], sizes = [8, 128], strides = [1, 1]} : vector<8x384xf32> to vector<8x128xf32>
    %37 = vector.extract_strided_slice %19 {offsets = [0, 256], sizes = [8, 128], strides = [1, 1]} : vector<8x384xf32> to vector<8x128xf32>
    %38 = arith.addf %37, %5 : vector<8x128xf32>
    %39 = arith.mulf %27, %38 : vector<8x128xf32>
    %40 = arith.addf %36, %39 : vector<8x128xf32>
    %41 = math.tanh %40 : vector<8x128xf32>
    %cst_16 = arith.constant 1.000000e+00 : f32
    %42 = vector.broadcast %cst_16 : f32 to vector<8x128xf32>
    %43 = arith.subf %42, %35 : vector<8x128xf32>
    %44 = arith.mulf %43, %41 : vector<8x128xf32>
    %45 = arith.mulf %35, %10 : vector<8x128xf32>
    %46 = arith.addf %44, %45 : vector<8x128xf32>
    %47 = tpu.concatenate %46, %12 in 1 : vector<8x128xf32>, vector<8x128xf32> -> vector<8x256xf32>
    %48 = arith.truncf %47 : vector<8x256xf32> to vector<8x256xbf16>
    %c0_17 = arith.constant 0 : index
    %c0_18 = arith.constant 0 : index
    %49 = vector.load %arg6[%c0_17, %c0_18] : memref<256x512xbf16, #tpu.memory_space<vmem>>, vector<256x512xbf16>
    %cst_19 = arith.constant dense<0.000000e+00> : vector<8x512xf32>
    %50 = tpu.matmul %48, %49, %cst_19 {dimension_numbers = #tpu.dot_dimension_numbers<[1], [0], [0], [1], [0, 0, 1, 1], [], []>} : vector<8x256xbf16>, vector<256x512xbf16>, vector<8x512xf32> -> vector<8x512xf32>
    %51 = arith.addf %50, %8 : vector<8x512xf32>
    %52 = vector.extract_strided_slice %51 {offsets = [0, 0], sizes = [8, 128], strides = [1, 1]} : vector<8x512xf32> to vector<8x128xf32>
    %53 = arith.negf %52 : vector<8x128xf32>
    %54 = math.exp %53 : vector<8x128xf32>
    %cst_20 = arith.constant 1.000000e+00 : f32
    %55 = vector.broadcast %cst_20 : f32 to vector<8x128xf32>
    %56 = arith.addf %55, %54 : vector<8x128xf32>
    %57 = arith.divf %55, %56 : vector<8x128xf32>
    %58 = vector.extract_strided_slice %51 {offsets = [0, 128], sizes = [8, 128], strides = [1, 1]} : vector<8x512xf32> to vector<8x128xf32>
    %59 = arith.negf %58 : vector<8x128xf32>
    %60 = math.exp %59 : vector<8x128xf32>
    %cst_21 = arith.constant 1.000000e+00 : f32
    %61 = vector.broadcast %cst_21 : f32 to vector<8x128xf32>
    %62 = arith.addf %61, %60 : vector<8x128xf32>
    %63 = arith.divf %61, %62 : vector<8x128xf32>
    %64 = vector.extract_strided_slice %51 {offsets = [0, 256], sizes = [8, 128], strides = [1, 1]} : vector<8x512xf32> to vector<8x128xf32>
    %65 = vector.extract_strided_slice %51 {offsets = [0, 384], sizes = [8, 128], strides = [1, 1]} : vector<8x512xf32> to vector<8x128xf32>
    %66 = arith.mulf %57, %65 : vector<8x128xf32>
    %67 = arith.addf %64, %66 : vector<8x128xf32>
    %68 = math.tanh %67 : vector<8x128xf32>
    %cst_22 = arith.constant 1.000000e+00 : f32
    %69 = vector.broadcast %cst_22 : f32 to vector<8x128xf32>
    %70 = arith.subf %69, %63 : vector<8x128xf32>
    %71 = arith.mulf %70, %68 : vector<8x128xf32>
    %72 = arith.mulf %63, %12 : vector<8x128xf32>
    %73 = arith.addf %71, %72 : vector<8x128xf32>
    %74 = arith.truncf %73 : vector<8x128xf32> to vector<8x128xbf16>
    %75 = arith.index_cast %c0_i32_9 : i32 to index
    %c0_23 = arith.constant 0 : index
    %c0_24 = arith.constant 0 : index
    %76 = vector.load %arg8[%75, %c0_23, %c0_24] : memref<8x8x128xbf16, #tpu.memory_space<vmem>>, vector<1x8x128xbf16>
    %77 = vector.shape_cast %76 : vector<1x8x128xbf16> to vector<8x128xbf16>
    %78 = vector.shape_cast %74 : vector<8x128xbf16> to vector<1x8x128xbf16>
    tpu.vector_store %arg8[%75, %c0_23, %c0_24], %78 {strides = array<i32>} : memref<8x8x128xbf16, #tpu.memory_space<vmem>>, vector<1x8x128xbf16>,
    %c1_i32 = arith.constant 1 : i32
    %79 = arith.index_cast %c1_i32 : i32 to index
    %c0_25 = arith.constant 0 : index
    %c0_26 = arith.constant 0 : index
    %80 = vector.load %arg2[%79, %c0_25, %c0_26] : memref<8x8x384xbf16, #tpu.memory_space<vmem>>, vector<1x8x384xbf16>
    %81 = vector.shape_cast %80 : vector<1x8x384xbf16> to vector<8x384xbf16>
    %82 = arith.extf %81 : vector<8x384xbf16> to vector<8x384xf32>
    %83 = arith.truncf %46 : vector<8x128xf32> to vector<8x128xbf16>
    %c0_27 = arith.constant 0 : index
    %c0_28 = arith.constant 0 : index
    %84 = vector.load %arg4[%c0_27, %c0_28] : memref<128x384xbf16, #tpu.memory_space<vmem>>, vector<128x384xbf16>
    %cst_29 = arith.constant dense<0.000000e+00> : vector<8x384xf32>
    %85 = tpu.matmul %83, %84, %cst_29 {dimension_numbers = #tpu.dot_dimension_numbers<[1], [0], [0], [1], [0, 0, 1, 1], [], []>} : vector<8x128xbf16>, vector<128x384xbf16>, vector<8x384xf32> -> vector<8x384xf32>
    %86 = vector.extract_strided_slice %82 {offsets = [0, 0], sizes = [8, 128], strides = [1, 1]} : vector<8x384xf32> to vector<8x128xf32>
    %87 = vector.extract_strided_slice %85 {offsets = [0, 0], sizes = [8, 128], strides = [1, 1]} : vector<8x384xf32> to vector<8x128xf32>
    %88 = arith.addf %86, %87 : vector<8x128xf32>
    %89 = arith.negf %88 : vector<8x128xf32>
    %90 = math.exp %89 : vector<8x128xf32>
    %cst_30 = arith.constant 1.000000e+00 : f32
    %91 = vector.broadcast %cst_30 : f32 to vector<8x128xf32>
    %92 = arith.addf %91, %90 : vector<8x128xf32>
    %93 = arith.divf %91, %92 : vector<8x128xf32>
    %94 = vector.extract_strided_slice %82 {offsets = [0, 128], sizes = [8, 128], strides = [1, 1]} : vector<8x384xf32> to vector<8x128xf32>
    %95 = vector.extract_strided_slice %85 {offsets = [0, 128], sizes = [8, 128], strides = [1, 1]} : vector<8x384xf32> to vector<8x128xf32>
    %96 = arith.addf %94, %95 : vector<8x128xf32>
    %97 = arith.negf %96 : vector<8x128xf32>
    %98 = math.exp %97 : vector<8x128xf32>
    %cst_31 = arith.constant 1.000000e+00 : f32
    %99 = vector.broadcast %cst_31 : f32 to vector<8x128xf32>
    %100 = arith.addf %99, %98 : vector<8x128xf32>
    %101 = arith.divf %99, %100 : vector<8x128xf32>
    %102 = vector.extract_strided_slice %82 {offsets = [0, 256], sizes = [8, 128], strides = [1, 1]} : vector<8x384xf32> to vector<8x128xf32>
    %103 = vector.extract_strided_slice %85 {offsets = [0, 256], sizes = [8, 128], strides = [1, 1]} : vector<8x384xf32> to vector<8x128xf32>
    %104 = arith.addf %103, %5 : vector<8x128xf32>
    %105 = arith.mulf %93, %104 : vector<8x128xf32>
    %106 = arith.addf %102, %105 : vector<8x128xf32>
    %107 = math.tanh %106 : vector<8x128xf32>
    %cst_32 = arith.constant 1.000000e+00 : f32
    %108 = vector.broadcast %cst_32 : f32 to vector<8x128xf32>
    %109 = arith.subf %108, %101 : vector<8x128xf32>
    %110 = arith.mulf %109, %107 : vector<8x128xf32>
    %111 = arith.mulf %101, %46 : vector<8x128xf32>
    %112 = arith.addf %110, %111 : vector<8x128xf32>
    %113 = tpu.concatenate %112, %73 in 1 : vector<8x128xf32>, vector<8x128xf32> -> vector<8x256xf32>
    %114 = arith.truncf %113 : vector<8x256xf32> to vector<8x256xbf16>
    %c0_33 = arith.constant 0 : index
    %c0_34 = arith.constant 0 : index
    %115 = vector.load %arg6[%c0_33, %c0_34] : memref<256x512xbf16, #tpu.memory_space<vmem>>, vector<256x512xbf16>
    %cst_35 = arith.constant dense<0.000000e+00> : vector<8x512xf32>
    %116 = tpu.matmul %114, %115, %cst_35 {dimension_numbers = #tpu.dot_dimension_numbers<[1], [0], [0], [1], [0, 0, 1, 1], [], []>} : vector<8x256xbf16>, vector<256x512xbf16>, vector<8x512xf32> -> vector<8x512xf32>
    %117 = arith.addf %116, %8 : vector<8x512xf32>
    %118 = vector.extract_strided_slice %117 {offsets = [0, 0], sizes = [8, 128], strides = [1, 1]} : vector<8x512xf32> to vector<8x128xf32>
    %119 = arith.negf %118 : vector<8x128xf32>
    %120 = math.exp %119 : vector<8x128xf32>
    %cst_36 = arith.constant 1.000000e+00 : f32
    %121 = vector.broadcast %cst_36 : f32 to vector<8x128xf32>
    %122 = arith.addf %121, %120 : vector<8x128xf32>
    %123 = arith.divf %121, %122 : vector<8x128xf32>
    %124 = vector.extract_strided_slice %117 {offsets = [0, 128], sizes = [8, 128], strides = [1, 1]} : vector<8x512xf32> to vector<8x128xf32>
    %125 = arith.negf %124 : vector<8x128xf32>
    %126 = math.exp %125 : vector<8x128xf32>
    %cst_37 = arith.constant 1.000000e+00 : f32
    %127 = vector.broadcast %cst_37 : f32 to vector<8x128xf32>
    %128 = arith.addf %127, %126 : vector<8x128xf32>
    %129 = arith.divf %127, %128 : vector<8x128xf32>
    %130 = vector.extract_strided_slice %117 {offsets = [0, 256], sizes = [8, 128], strides = [1, 1]} : vector<8x512xf32> to vector<8x128xf32>
    %131 = vector.extract_strided_slice %117 {offsets = [0, 384], sizes = [8, 128], strides = [1, 1]} : vector<8x512xf32> to vector<8x128xf32>
    %132 = arith.mulf %123, %131 : vector<8x128xf32>
    %133 = arith.addf %130, %132 : vector<8x128xf32>
    %134 = math.tanh %133 : vector<8x128xf32>
    %cst_38 = arith.constant 1.000000e+00 : f32
    %135 = vector.broadcast %cst_38 : f32 to vector<8x128xf32>
    %136 = arith.subf %135, %129 : vector<8x128xf32>
    %137 = arith.mulf %136, %134 : vector<8x128xf32>
    %138 = arith.mulf %129, %73 : vector<8x128xf32>
    %139 = arith.addf %137, %138 : vector<8x128xf32>
    %140 = arith.truncf %139 : vector<8x128xf32> to vector<8x128xbf16>
    %141 = arith.index_cast %c1_i32 : i32 to index
    %c0_39 = arith.constant 0 : index
    %c0_40 = arith.constant 0 : index
    %142 = vector.load %arg8[%141, %c0_39, %c0_40] : memref<8x8x128xbf16, #tpu.memory_space<vmem>>, vector<1x8x128xbf16>
    %143 = vector.shape_cast %142 : vector<1x8x128xbf16> to vector<8x128xbf16>
    %144 = vector.shape_cast %140 : vector<8x128xbf16> to vector<1x8x128xbf16>
    tpu.vector_store %arg8[%141, %c0_39, %c0_40], %144 {strides = array<i32>} : memref<8x8x128xbf16, #tpu.memory_space<vmem>>, vector<1x8x128xbf16>,
    %c2_i32 = arith.constant 2 : i32
    %145 = arith.index_cast %c2_i32 : i32 to index
    %c0_41 = arith.constant 0 : index
    %c0_42 = arith.constant 0 : index
    %146 = vector.load %arg2[%145, %c0_41, %c0_42] : memref<8x8x384xbf16, #tpu.memory_space<vmem>>, vector<1x8x384xbf16>
    %147 = vector.shape_cast %146 : vector<1x8x384xbf16> to vector<8x384xbf16>
    %148 = arith.extf %147 : vector<8x384xbf16> to vector<8x384xf32>
    %149 = arith.truncf %112 : vector<8x128xf32> to vector<8x128xbf16>
    %c0_43 = arith.constant 0 : index
    %c0_44 = arith.constant 0 : index
    %150 = vector.load %arg4[%c0_43, %c0_44] : memref<128x384xbf16, #tpu.memory_space<vmem>>, vector<128x384xbf16>
    %cst_45 = arith.constant dense<0.000000e+00> : vector<8x384xf32>
    %151 = tpu.matmul %149, %150, %cst_45 {dimension_numbers = #tpu.dot_dimension_numbers<[1], [0], [0], [1], [0, 0, 1, 1], [], []>} : vector<8x128xbf16>, vector<128x384xbf16>, vector<8x384xf32> -> vector<8x384xf32>
    %152 = vector.extract_strided_slice %148 {offsets = [0, 0], sizes = [8, 128], strides = [1, 1]} : vector<8x384xf32> to vector<8x128xf32>
    %153 = vector.extract_strided_slice %151 {offsets = [0, 0], sizes = [8, 128], strides = [1, 1]} : vector<8x384xf32> to vector<8x128xf32>
    %154 = arith.addf %152, %153 : vector<8x128xf32>
    %155 = arith.negf %154 : vector<8x128xf32>
    %156 = math.exp %155 : vector<8x128xf32>
    %cst_46 = arith.constant 1.000000e+00 : f32
    %157 = vector.broadcast %cst_46 : f32 to vector<8x128xf32>
    %158 = arith.addf %157, %156 : vector<8x128xf32>
    %159 = arith.divf %157, %158 : vector<8x128xf32>
    %160 = vector.extract_strided_slice %148 {offsets = [0, 128], sizes = [8, 128], strides = [1, 1]} : vector<8x384xf32> to vector<8x128xf32>
    %161 = vector.extract_strided_slice %151 {offsets = [0, 128], sizes = [8, 128], strides = [1, 1]} : vector<8x384xf32> to vector<8x128xf32>
    %162 = arith.addf %160, %161 : vector<8x128xf32>
    %163 = arith.negf %162 : vector<8x128xf32>
    %164 = math.exp %163 : vector<8x128xf32>
    %cst_47 = arith.constant 1.000000e+00 : f32
    %165 = vector.broadcast %cst_47 : f32 to vector<8x128xf32>
    %166 = arith.addf %165, %164 : vector<8x128xf32>
    %167 = arith.divf %165, %166 : vector<8x128xf32>
    %168 = vector.extract_strided_slice %148 {offsets = [0, 256], sizes = [8, 128], strides = [1, 1]} : vector<8x384xf32> to vector<8x128xf32>
    %169 = vector.extract_strided_slice %151 {offsets = [0, 256], sizes = [8, 128], strides = [1, 1]} : vector<8x384xf32> to vector<8x128xf32>
    %170 = arith.addf %169, %5 : vector<8x128xf32>
    %171 = arith.mulf %159, %170 : vector<8x128xf32>
    %172 = arith.addf %168, %171 : vector<8x128xf32>
    %173 = math.tanh %172 : vector<8x128xf32>
    %cst_48 = arith.constant 1.000000e+00 : f32
    %174 = vector.broadcast %cst_48 : f32 to vector<8x128xf32>
    %175 = arith.subf %174, %167 : vector<8x128xf32>
    %176 = arith.mulf %175, %173 : vector<8x128xf32>
    %177 = arith.mulf %167, %112 : vector<8x128xf32>
    %178 = arith.addf %176, %177 : vector<8x128xf32>
    %179 = tpu.concatenate %178, %139 in 1 : vector<8x128xf32>, vector<8x128xf32> -> vector<8x256xf32>
    %180 = arith.truncf %179 : vector<8x256xf32> to vector<8x256xbf16>
    %c0_49 = arith.constant 0 : index
    %c0_50 = arith.constant 0 : index
    %181 = vector.load %arg6[%c0_49, %c0_50] : memref<256x512xbf16, #tpu.memory_space<vmem>>, vector<256x512xbf16>
    %cst_51 = arith.constant dense<0.000000e+00> : vector<8x512xf32>
    %182 = tpu.matmul %180, %181, %cst_51 {dimension_numbers = #tpu.dot_dimension_numbers<[1], [0], [0], [1], [0, 0, 1, 1], [], []>} : vector<8x256xbf16>, vector<256x512xbf16>, vector<8x512xf32> -> vector<8x512xf32>
    %183 = arith.addf %182, %8 : vector<8x512xf32>
    %184 = vector.extract_strided_slice %183 {offsets = [0, 0], sizes = [8, 128], strides = [1, 1]} : vector<8x512xf32> to vector<8x128xf32>
    %185 = arith.negf %184 : vector<8x128xf32>
    %186 = math.exp %185 : vector<8x128xf32>
    %cst_52 = arith.constant 1.000000e+00 : f32
    %187 = vector.broadcast %cst_52 : f32 to vector<8x128xf32>
    %188 = arith.addf %187, %186 : vector<8x128xf32>
    %189 = arith.divf %187, %188 : vector<8x128xf32>
    %190 = vector.extract_strided_slice %183 {offsets = [0, 128], sizes = [8, 128], strides = [1, 1]} : vector<8x512xf32> to vector<8x128xf32>
    %191 = arith.negf %190 : vector<8x128xf32>
    %192 = math.exp %191 : vector<8x128xf32>
    %cst_53 = arith.constant 1.000000e+00 : f32
    %193 = vector.broadcast %cst_53 : f32 to vector<8x128xf32>
    %194 = arith.addf %193, %192 : vector<8x128xf32>
    %195 = arith.divf %193, %194 : vector<8x128xf32>
    %196 = vector.extract_strided_slice %183 {offsets = [0, 256], sizes = [8, 128], strides = [1, 1]} : vector<8x512xf32> to vector<8x128xf32>
    %197 = vector.extract_strided_slice %183 {offsets = [0, 384], sizes = [8, 128], strides = [1, 1]} : vector<8x512xf32> to vector<8x128xf32>
    %198 = arith.mulf %189, %197 : vector<8x128xf32>
    %199 = arith.addf %196, %198 : vector<8x128xf32>
    %200 = math.tanh %199 : vector<8x128xf32>
    %cst_54 = arith.constant 1.000000e+00 : f32
    %201 = vector.broadcast %cst_54 : f32 to vector<8x128xf32>
    %202 = arith.subf %201, %195 : vector<8x128xf32>
    %203 = arith.mulf %202, %200 : vector<8x128xf32>
    %204 = arith.mulf %195, %139 : vector<8x128xf32>
    %205 = arith.addf %203, %204 : vector<8x128xf32>
    %206 = arith.truncf %205 : vector<8x128xf32> to vector<8x128xbf16>
    %207 = arith.index_cast %c2_i32 : i32 to index
    %c0_55 = arith.constant 0 : index
    %c0_56 = arith.constant 0 : index
    %208 = vector.load %arg8[%207, %c0_55, %c0_56] : memref<8x8x128xbf16, #tpu.memory_space<vmem>>, vector<1x8x128xbf16>
    %209 = vector.shape_cast %208 : vector<1x8x128xbf16> to vector<8x128xbf16>
    %210 = vector.shape_cast %206 : vector<8x128xbf16> to vector<1x8x128xbf16>
    tpu.vector_store %arg8[%207, %c0_55, %c0_56], %210 {strides = array<i32>} : memref<8x8x128xbf16, #tpu.memory_space<vmem>>, vector<1x8x128xbf16>,
    %c3_i32 = arith.constant 3 : i32
    %211 = arith.index_cast %c3_i32 : i32 to index
    %c0_57 = arith.constant 0 : index
    %c0_58 = arith.constant 0 : index
    %212 = vector.load %arg2[%211, %c0_57, %c0_58] : memref<8x8x384xbf16, #tpu.memory_space<vmem>>, vector<1x8x384xbf16>
    %213 = vector.shape_cast %212 : vector<1x8x384xbf16> to vector<8x384xbf16>
    %214 = arith.extf %213 : vector<8x384xbf16> to vector<8x384xf32>
    %215 = arith.truncf %178 : vector<8x128xf32> to vector<8x128xbf16>
    %c0_59 = arith.constant 0 : index
    %c0_60 = arith.constant 0 : index
    %216 = vector.load %arg4[%c0_59, %c0_60] : memref<128x384xbf16, #tpu.memory_space<vmem>>, vector<128x384xbf16>
    %cst_61 = arith.constant dense<0.000000e+00> : vector<8x384xf32>
    %217 = tpu.matmul %215, %216, %cst_61 {dimension_numbers = #tpu.dot_dimension_numbers<[1], [0], [0], [1], [0, 0, 1, 1], [], []>} : vector<8x128xbf16>, vector<128x384xbf16>, vector<8x384xf32> -> vector<8x384xf32>
    %218 = vector.extract_strided_slice %214 {offsets = [0, 0], sizes = [8, 128], strides = [1, 1]} : vector<8x384xf32> to vector<8x128xf32>
    %219 = vector.extract_strided_slice %217 {offsets = [0, 0], sizes = [8, 128], strides = [1, 1]} : vector<8x384xf32> to vector<8x128xf32>
    %220 = arith.addf %218, %219 : vector<8x128xf32>
    %221 = arith.negf %220 : vector<8x128xf32>
    %222 = math.exp %221 : vector<8x128xf32>
    %cst_62 = arith.constant 1.000000e+00 : f32
    %223 = vector.broadcast %cst_62 : f32 to vector<8x128xf32>
    %224 = arith.addf %223, %222 : vector<8x128xf32>
    %225 = arith.divf %223, %224 : vector<8x128xf32>
    %226 = vector.extract_strided_slice %214 {offsets = [0, 128], sizes = [8, 128], strides = [1, 1]} : vector<8x384xf32> to vector<8x128xf32>
    %227 = vector.extract_strided_slice %217 {offsets = [0, 128], sizes = [8, 128], strides = [1, 1]} : vector<8x384xf32> to vector<8x128xf32>
    %228 = arith.addf %226, %227 : vector<8x128xf32>
    %229 = arith.negf %228 : vector<8x128xf32>
    %230 = math.exp %229 : vector<8x128xf32>
    %cst_63 = arith.constant 1.000000e+00 : f32
    %231 = vector.broadcast %cst_63 : f32 to vector<8x128xf32>
    %232 = arith.addf %231, %230 : vector<8x128xf32>
    %233 = arith.divf %231, %232 : vector<8x128xf32>
    %234 = vector.extract_strided_slice %214 {offsets = [0, 256], sizes = [8, 128], strides = [1, 1]} : vector<8x384xf32> to vector<8x128xf32>
    %235 = vector.extract_strided_slice %217 {offsets = [0, 256], sizes = [8, 128], strides = [1, 1]} : vector<8x384xf32> to vector<8x128xf32>
    %236 = arith.addf %235, %5 : vector<8x128xf32>
    %237 = arith.mulf %225, %236 : vector<8x128xf32>
    %238 = arith.addf %234, %237 : vector<8x128xf32>
    %239 = math.tanh %238 : vector<8x128xf32>
    %cst_64 = arith.constant 1.000000e+00 : f32
    %240 = vector.broadcast %cst_64 : f32 to vector<8x128xf32>
    %241 = arith.subf %240, %233 : vector<8x128xf32>
    %242 = arith.mulf %241, %239 : vector<8x128xf32>
    %243 = arith.mulf %233, %178 : vector<8x128xf32>
    %244 = arith.addf %242, %243 : vector<8x128xf32>
    %245 = tpu.concatenate %244, %205 in 1 : vector<8x128xf32>, vector<8x128xf32> -> vector<8x256xf32>
    %246 = arith.truncf %245 : vector<8x256xf32> to vector<8x256xbf16>
    %c0_65 = arith.constant 0 : index
    %c0_66 = arith.constant 0 : index
    %247 = vector.load %arg6[%c0_65, %c0_66] : memref<256x512xbf16, #tpu.memory_space<vmem>>, vector<256x512xbf16>
    %cst_67 = arith.constant dense<0.000000e+00> : vector<8x512xf32>
    %248 = tpu.matmul %246, %247, %cst_67 {dimension_numbers = #tpu.dot_dimension_numbers<[1], [0], [0], [1], [0, 0, 1, 1], [], []>} : vector<8x256xbf16>, vector<256x512xbf16>, vector<8x512xf32> -> vector<8x512xf32>
    %249 = arith.addf %248, %8 : vector<8x512xf32>
    %250 = vector.extract_strided_slice %249 {offsets = [0, 0], sizes = [8, 128], strides = [1, 1]} : vector<8x512xf32> to vector<8x128xf32>
    %251 = arith.negf %250 : vector<8x128xf32>
    %252 = math.exp %251 : vector<8x128xf32>
    %cst_68 = arith.constant 1.000000e+00 : f32
    %253 = vector.broadcast %cst_68 : f32 to vector<8x128xf32>
    %254 = arith.addf %253, %252 : vector<8x128xf32>
    %255 = arith.divf %253, %254 : vector<8x128xf32>
    %256 = vector.extract_strided_slice %249 {offsets = [0, 128], sizes = [8, 128], strides = [1, 1]} : vector<8x512xf32> to vector<8x128xf32>
    %257 = arith.negf %256 : vector<8x128xf32>
    %258 = math.exp %257 : vector<8x128xf32>
    %cst_69 = arith.constant 1.000000e+00 : f32
    %259 = vector.broadcast %cst_69 : f32 to vector<8x128xf32>
    %260 = arith.addf %259, %258 : vector<8x128xf32>
    %261 = arith.divf %259, %260 : vector<8x128xf32>
    %262 = vector.extract_strided_slice %249 {offsets = [0, 256], sizes = [8, 128], strides = [1, 1]} : vector<8x512xf32> to vector<8x128xf32>
    %263 = vector.extract_strided_slice %249 {offsets = [0, 384], sizes = [8, 128], strides = [1, 1]} : vector<8x512xf32> to vector<8x128xf32>
    %264 = arith.mulf %255, %263 : vector<8x128xf32>
    %265 = arith.addf %262, %264 : vector<8x128xf32>
    %266 = math.tanh %265 : vector<8x128xf32>
    %cst_70 = arith.constant 1.000000e+00 : f32
    %267 = vector.broadcast %cst_70 : f32 to vector<8x128xf32>
    %268 = arith.subf %267, %261 : vector<8x128xf32>
    %269 = arith.mulf %268, %266 : vector<8x128xf32>
    %270 = arith.mulf %261, %205 : vector<8x128xf32>
    %271 = arith.addf %269, %270 : vector<8x128xf32>
    %272 = arith.truncf %271 : vector<8x128xf32> to vector<8x128xbf16>
    %273 = arith.index_cast %c3_i32 : i32 to index
    %c0_71 = arith.constant 0 : index
    %c0_72 = arith.constant 0 : index
    %274 = vector.load %arg8[%273, %c0_71, %c0_72] : memref<8x8x128xbf16, #tpu.memory_space<vmem>>, vector<1x8x128xbf16>
    %275 = vector.shape_cast %274 : vector<1x8x128xbf16> to vector<8x128xbf16>
    %276 = vector.shape_cast %272 : vector<8x128xbf16> to vector<1x8x128xbf16>
    tpu.vector_store %arg8[%273, %c0_71, %c0_72], %276 {strides = array<i32>} : memref<8x8x128xbf16, #tpu.memory_space<vmem>>, vector<1x8x128xbf16>,
    %c4_i32 = arith.constant 4 : i32
    %277 = arith.index_cast %c4_i32 : i32 to index
    %c0_73 = arith.constant 0 : index
    %c0_74 = arith.constant 0 : index
    %278 = vector.load %arg2[%277, %c0_73, %c0_74] : memref<8x8x384xbf16, #tpu.memory_space<vmem>>, vector<1x8x384xbf16>
    %279 = vector.shape_cast %278 : vector<1x8x384xbf16> to vector<8x384xbf16>
    %280 = arith.extf %279 : vector<8x384xbf16> to vector<8x384xf32>
    %281 = arith.truncf %244 : vector<8x128xf32> to vector<8x128xbf16>
    %c0_75 = arith.constant 0 : index
    %c0_76 = arith.constant 0 : index
    %282 = vector.load %arg4[%c0_75, %c0_76] : memref<128x384xbf16, #tpu.memory_space<vmem>>, vector<128x384xbf16>
    %cst_77 = arith.constant dense<0.000000e+00> : vector<8x384xf32>
    %283 = tpu.matmul %281, %282, %cst_77 {dimension_numbers = #tpu.dot_dimension_numbers<[1], [0], [0], [1], [0, 0, 1, 1], [], []>} : vector<8x128xbf16>, vector<128x384xbf16>, vector<8x384xf32> -> vector<8x384xf32>
    %284 = vector.extract_strided_slice %280 {offsets = [0, 0], sizes = [8, 128], strides = [1, 1]} : vector<8x384xf32> to vector<8x128xf32>
    %285 = vector.extract_strided_slice %283 {offsets = [0, 0], sizes = [8, 128], strides = [1, 1]} : vector<8x384xf32> to vector<8x128xf32>
    %286 = arith.addf %284, %285 : vector<8x128xf32>
    %287 = arith.negf %286 : vector<8x128xf32>
    %288 = math.exp %287 : vector<8x128xf32>
    %cst_78 = arith.constant 1.000000e+00 : f32
    %289 = vector.broadcast %cst_78 : f32 to vector<8x128xf32>
    %290 = arith.addf %289, %288 : vector<8x128xf32>
    %291 = arith.divf %289, %290 : vector<8x128xf32>
    %292 = vector.extract_strided_slice %280 {offsets = [0, 128], sizes = [8, 128], strides = [1, 1]} : vector<8x384xf32> to vector<8x128xf32>
    %293 = vector.extract_strided_slice %283 {offsets = [0, 128], sizes = [8, 128], strides = [1, 1]} : vector<8x384xf32> to vector<8x128xf32>
    %294 = arith.addf %292, %293 : vector<8x128xf32>
    %295 = arith.negf %294 : vector<8x128xf32>
    %296 = math.exp %295 : vector<8x128xf32>
    %cst_79 = arith.constant 1.000000e+00 : f32
    %297 = vector.broadcast %cst_79 : f32 to vector<8x128xf32>
    %298 = arith.addf %297, %296 : vector<8x128xf32>
    %299 = arith.divf %297, %298 : vector<8x128xf32>
    %300 = vector.extract_strided_slice %280 {offsets = [0, 256], sizes = [8, 128], strides = [1, 1]} : vector<8x384xf32> to vector<8x128xf32>
    %301 = vector.extract_strided_slice %283 {offsets = [0, 256], sizes = [8, 128], strides = [1, 1]} : vector<8x384xf32> to vector<8x128xf32>
    %302 = arith.addf %301, %5 : vector<8x128xf32>
    %303 = arith.mulf %291, %302 : vector<8x128xf32>
    %304 = arith.addf %300, %303 : vector<8x128xf32>
    %305 = math.tanh %304 : vector<8x128xf32>
    %cst_80 = arith.constant 1.000000e+00 : f32
    %306 = vector.broadcast %cst_80 : f32 to vector<8x128xf32>
    %307 = arith.subf %306, %299 : vector<8x128xf32>
    %308 = arith.mulf %307, %305 : vector<8x128xf32>
    %309 = arith.mulf %299, %244 : vector<8x128xf32>
    %310 = arith.addf %308, %309 : vector<8x128xf32>
    %311 = tpu.concatenate %310, %271 in 1 : vector<8x128xf32>, vector<8x128xf32> -> vector<8x256xf32>
    %312 = arith.truncf %311 : vector<8x256xf32> to vector<8x256xbf16>
    %c0_81 = arith.constant 0 : index
    %c0_82 = arith.constant 0 : index
    %313 = vector.load %arg6[%c0_81, %c0_82] : memref<256x512xbf16, #tpu.memory_space<vmem>>, vector<256x512xbf16>
    %cst_83 = arith.constant dense<0.000000e+00> : vector<8x512xf32>
    %314 = tpu.matmul %312, %313, %cst_83 {dimension_numbers = #tpu.dot_dimension_numbers<[1], [0], [0], [1], [0, 0, 1, 1], [], []>} : vector<8x256xbf16>, vector<256x512xbf16>, vector<8x512xf32> -> vector<8x512xf32>
    %315 = arith.addf %314, %8 : vector<8x512xf32>
    %316 = vector.extract_strided_slice %315 {offsets = [0, 0], sizes = [8, 128], strides = [1, 1]} : vector<8x512xf32> to vector<8x128xf32>
    %317 = arith.negf %316 : vector<8x128xf32>
    %318 = math.exp %317 : vector<8x128xf32>
    %cst_84 = arith.constant 1.000000e+00 : f32
    %319 = vector.broadcast %cst_84 : f32 to vector<8x128xf32>
    %320 = arith.addf %319, %318 : vector<8x128xf32>
    %321 = arith.divf %319, %320 : vector<8x128xf32>
    %322 = vector.extract_strided_slice %315 {offsets = [0, 128], sizes = [8, 128], strides = [1, 1]} : vector<8x512xf32> to vector<8x128xf32>
    %323 = arith.negf %322 : vector<8x128xf32>
    %324 = math.exp %323 : vector<8x128xf32>
    %cst_85 = arith.constant 1.000000e+00 : f32
    %325 = vector.broadcast %cst_85 : f32 to vector<8x128xf32>
    %326 = arith.addf %325, %324 : vector<8x128xf32>
    %327 = arith.divf %325, %326 : vector<8x128xf32>
    %328 = vector.extract_strided_slice %315 {offsets = [0, 256], sizes = [8, 128], strides = [1, 1]} : vector<8x512xf32> to vector<8x128xf32>
    %329 = vector.extract_strided_slice %315 {offsets = [0, 384], sizes = [8, 128], strides = [1, 1]} : vector<8x512xf32> to vector<8x128xf32>
    %330 = arith.mulf %321, %329 : vector<8x128xf32>
    %331 = arith.addf %328, %330 : vector<8x128xf32>
    %332 = math.tanh %331 : vector<8x128xf32>
    %cst_86 = arith.constant 1.000000e+00 : f32
    %333 = vector.broadcast %cst_86 : f32 to vector<8x128xf32>
    %334 = arith.subf %333, %327 : vector<8x128xf32>
    %335 = arith.mulf %334, %332 : vector<8x128xf32>
    %336 = arith.mulf %327, %271 : vector<8x128xf32>
    %337 = arith.addf %335, %336 : vector<8x128xf32>
    %338 = arith.truncf %337 : vector<8x128xf32> to vector<8x128xbf16>
    %339 = arith.index_cast %c4_i32 : i32 to index
    %c0_87 = arith.constant 0 : index
    %c0_88 = arith.constant 0 : index
    %340 = vector.load %arg8[%339, %c0_87, %c0_88] : memref<8x8x128xbf16, #tpu.memory_space<vmem>>, vector<1x8x128xbf16>
    %341 = vector.shape_cast %340 : vector<1x8x128xbf16> to vector<8x128xbf16>
    %342 = vector.shape_cast %338 : vector<8x128xbf16> to vector<1x8x128xbf16>
    tpu.vector_store %arg8[%339, %c0_87, %c0_88], %342 {strides = array<i32>} : memref<8x8x128xbf16, #tpu.memory_space<vmem>>, vector<1x8x128xbf16>,
    %c5_i32 = arith.constant 5 : i32
    %343 = arith.index_cast %c5_i32 : i32 to index
    %c0_89 = arith.constant 0 : index
    %c0_90 = arith.constant 0 : index
    %344 = vector.load %arg2[%343, %c0_89, %c0_90] : memref<8x8x384xbf16, #tpu.memory_space<vmem>>, vector<1x8x384xbf16>
    %345 = vector.shape_cast %344 : vector<1x8x384xbf16> to vector<8x384xbf16>
    %346 = arith.extf %345 : vector<8x384xbf16> to vector<8x384xf32>
    %347 = arith.truncf %310 : vector<8x128xf32> to vector<8x128xbf16>
    %c0_91 = arith.constant 0 : index
    %c0_92 = arith.constant 0 : index
    %348 = vector.load %arg4[%c0_91, %c0_92] : memref<128x384xbf16, #tpu.memory_space<vmem>>, vector<128x384xbf16>
    %cst_93 = arith.constant dense<0.000000e+00> : vector<8x384xf32>
    %349 = tpu.matmul %347, %348, %cst_93 {dimension_numbers = #tpu.dot_dimension_numbers<[1], [0], [0], [1], [0, 0, 1, 1], [], []>} : vector<8x128xbf16>, vector<128x384xbf16>, vector<8x384xf32> -> vector<8x384xf32>
    %350 = vector.extract_strided_slice %346 {offsets = [0, 0], sizes = [8, 128], strides = [1, 1]} : vector<8x384xf32> to vector<8x128xf32>
    %351 = vector.extract_strided_slice %349 {offsets = [0, 0], sizes = [8, 128], strides = [1, 1]} : vector<8x384xf32> to vector<8x128xf32>
    %352 = arith.addf %350, %351 : vector<8x128xf32>
    %353 = arith.negf %352 : vector<8x128xf32>
    %354 = math.exp %353 : vector<8x128xf32>
    %cst_94 = arith.constant 1.000000e+00 : f32
    %355 = vector.broadcast %cst_94 : f32 to vector<8x128xf32>
    %356 = arith.addf %355, %354 : vector<8x128xf32>
    %357 = arith.divf %355, %356 : vector<8x128xf32>
    %358 = vector.extract_strided_slice %346 {offsets = [0, 128], sizes = [8, 128], strides = [1, 1]} : vector<8x384xf32> to vector<8x128xf32>
    %359 = vector.extract_strided_slice %349 {offsets = [0, 128], sizes = [8, 128], strides = [1, 1]} : vector<8x384xf32> to vector<8x128xf32>
    %360 = arith.addf %358, %359 : vector<8x128xf32>
    %361 = arith.negf %360 : vector<8x128xf32>
    %362 = math.exp %361 : vector<8x128xf32>
    %cst_95 = arith.constant 1.000000e+00 : f32
    %363 = vector.broadcast %cst_95 : f32 to vector<8x128xf32>
    %364 = arith.addf %363, %362 : vector<8x128xf32>
    %365 = arith.divf %363, %364 : vector<8x128xf32>
    %366 = vector.extract_strided_slice %346 {offsets = [0, 256], sizes = [8, 128], strides = [1, 1]} : vector<8x384xf32> to vector<8x128xf32>
    %367 = vector.extract_strided_slice %349 {offsets = [0, 256], sizes = [8, 128], strides = [1, 1]} : vector<8x384xf32> to vector<8x128xf32>
    %368 = arith.addf %367, %5 : vector<8x128xf32>
    %369 = arith.mulf %357, %368 : vector<8x128xf32>
    %370 = arith.addf %366, %369 : vector<8x128xf32>
    %371 = math.tanh %370 : vector<8x128xf32>
    %cst_96 = arith.constant 1.000000e+00 : f32
    %372 = vector.broadcast %cst_96 : f32 to vector<8x128xf32>
    %373 = arith.subf %372, %365 : vector<8x128xf32>
    %374 = arith.mulf %373, %371 : vector<8x128xf32>
    %375 = arith.mulf %365, %310 : vector<8x128xf32>
    %376 = arith.addf %374, %375 : vector<8x128xf32>
    %377 = tpu.concatenate %376, %337 in 1 : vector<8x128xf32>, vector<8x128xf32> -> vector<8x256xf32>
    %378 = arith.truncf %377 : vector<8x256xf32> to vector<8x256xbf16>
    %c0_97 = arith.constant 0 : index
    %c0_98 = arith.constant 0 : index
    %379 = vector.load %arg6[%c0_97, %c0_98] : memref<256x512xbf16, #tpu.memory_space<vmem>>, vector<256x512xbf16>
    %cst_99 = arith.constant dense<0.000000e+00> : vector<8x512xf32>
    %380 = tpu.matmul %378, %379, %cst_99 {dimension_numbers = #tpu.dot_dimension_numbers<[1], [0], [0], [1], [0, 0, 1, 1], [], []>} : vector<8x256xbf16>, vector<256x512xbf16>, vector<8x512xf32> -> vector<8x512xf32>
    %381 = arith.addf %380, %8 : vector<8x512xf32>
    %382 = vector.extract_strided_slice %381 {offsets = [0, 0], sizes = [8, 128], strides = [1, 1]} : vector<8x512xf32> to vector<8x128xf32>
    %383 = arith.negf %382 : vector<8x128xf32>
    %384 = math.exp %383 : vector<8x128xf32>
    %cst_100 = arith.constant 1.000000e+00 : f32
    %385 = vector.broadcast %cst_100 : f32 to vector<8x128xf32>
    %386 = arith.addf %385, %384 : vector<8x128xf32>
    %387 = arith.divf %385, %386 : vector<8x128xf32>
    %388 = vector.extract_strided_slice %381 {offsets = [0, 128], sizes = [8, 128], strides = [1, 1]} : vector<8x512xf32> to vector<8x128xf32>
    %389 = arith.negf %388 : vector<8x128xf32>
    %390 = math.exp %389 : vector<8x128xf32>
    %cst_101 = arith.constant 1.000000e+00 : f32
    %391 = vector.broadcast %cst_101 : f32 to vector<8x128xf32>
    %392 = arith.addf %391, %390 : vector<8x128xf32>
    %393 = arith.divf %391, %392 : vector<8x128xf32>
    %394 = vector.extract_strided_slice %381 {offsets = [0, 256], sizes = [8, 128], strides = [1, 1]} : vector<8x512xf32> to vector<8x128xf32>
    %395 = vector.extract_strided_slice %381 {offsets = [0, 384], sizes = [8, 128], strides = [1, 1]} : vector<8x512xf32> to vector<8x128xf32>
    %396 = arith.mulf %387, %395 : vector<8x128xf32>
    %397 = arith.addf %394, %396 : vector<8x128xf32>
    %398 = math.tanh %397 : vector<8x128xf32>
    %cst_102 = arith.constant 1.000000e+00 : f32
    %399 = vector.broadcast %cst_102 : f32 to vector<8x128xf32>
    %400 = arith.subf %399, %393 : vector<8x128xf32>
    %401 = arith.mulf %400, %398 : vector<8x128xf32>
    %402 = arith.mulf %393, %337 : vector<8x128xf32>
    %403 = arith.addf %401, %402 : vector<8x128xf32>
    %404 = arith.truncf %403 : vector<8x128xf32> to vector<8x128xbf16>
    %405 = arith.index_cast %c5_i32 : i32 to index
    %c0_103 = arith.constant 0 : index
    %c0_104 = arith.constant 0 : index
    %406 = vector.load %arg8[%405, %c0_103, %c0_104] : memref<8x8x128xbf16, #tpu.memory_space<vmem>>, vector<1x8x128xbf16>
    %407 = vector.shape_cast %406 : vector<1x8x128xbf16> to vector<8x128xbf16>
    %408 = vector.shape_cast %404 : vector<8x128xbf16> to vector<1x8x128xbf16>
    tpu.vector_store %arg8[%405, %c0_103, %c0_104], %408 {strides = array<i32>} : memref<8x8x128xbf16, #tpu.memory_space<vmem>>, vector<1x8x128xbf16>,
    %c6_i32 = arith.constant 6 : i32
    %409 = arith.index_cast %c6_i32 : i32 to index
    %c0_105 = arith.constant 0 : index
    %c0_106 = arith.constant 0 : index
    %410 = vector.load %arg2[%409, %c0_105, %c0_106] : memref<8x8x384xbf16, #tpu.memory_space<vmem>>, vector<1x8x384xbf16>
    %411 = vector.shape_cast %410 : vector<1x8x384xbf16> to vector<8x384xbf16>
    %412 = arith.extf %411 : vector<8x384xbf16> to vector<8x384xf32>
    %413 = arith.truncf %376 : vector<8x128xf32> to vector<8x128xbf16>
    %c0_107 = arith.constant 0 : index
    %c0_108 = arith.constant 0 : index
    %414 = vector.load %arg4[%c0_107, %c0_108] : memref<128x384xbf16, #tpu.memory_space<vmem>>, vector<128x384xbf16>
    %cst_109 = arith.constant dense<0.000000e+00> : vector<8x384xf32>
    %415 = tpu.matmul %413, %414, %cst_109 {dimension_numbers = #tpu.dot_dimension_numbers<[1], [0], [0], [1], [0, 0, 1, 1], [], []>} : vector<8x128xbf16>, vector<128x384xbf16>, vector<8x384xf32> -> vector<8x384xf32>
    %416 = vector.extract_strided_slice %412 {offsets = [0, 0], sizes = [8, 128], strides = [1, 1]} : vector<8x384xf32> to vector<8x128xf32>
    %417 = vector.extract_strided_slice %415 {offsets = [0, 0], sizes = [8, 128], strides = [1, 1]} : vector<8x384xf32> to vector<8x128xf32>
    %418 = arith.addf %416, %417 : vector<8x128xf32>
    %419 = arith.negf %418 : vector<8x128xf32>
    %420 = math.exp %419 : vector<8x128xf32>
    %cst_110 = arith.constant 1.000000e+00 : f32
    %421 = vector.broadcast %cst_110 : f32 to vector<8x128xf32>
    %422 = arith.addf %421, %420 : vector<8x128xf32>
    %423 = arith.divf %421, %422 : vector<8x128xf32>
    %424 = vector.extract_strided_slice %412 {offsets = [0, 128], sizes = [8, 128], strides = [1, 1]} : vector<8x384xf32> to vector<8x128xf32>
    %425 = vector.extract_strided_slice %415 {offsets = [0, 128], sizes = [8, 128], strides = [1, 1]} : vector<8x384xf32> to vector<8x128xf32>
    %426 = arith.addf %424, %425 : vector<8x128xf32>
    %427 = arith.negf %426 : vector<8x128xf32>
    %428 = math.exp %427 : vector<8x128xf32>
    %cst_111 = arith.constant 1.000000e+00 : f32
    %429 = vector.broadcast %cst_111 : f32 to vector<8x128xf32>
    %430 = arith.addf %429, %428 : vector<8x128xf32>
    %431 = arith.divf %429, %430 : vector<8x128xf32>
    %432 = vector.extract_strided_slice %412 {offsets = [0, 256], sizes = [8, 128], strides = [1, 1]} : vector<8x384xf32> to vector<8x128xf32>
    %433 = vector.extract_strided_slice %415 {offsets = [0, 256], sizes = [8, 128], strides = [1, 1]} : vector<8x384xf32> to vector<8x128xf32>
    %434 = arith.addf %433, %5 : vector<8x128xf32>
    %435 = arith.mulf %423, %434 : vector<8x128xf32>
    %436 = arith.addf %432, %435 : vector<8x128xf32>
    %437 = math.tanh %436 : vector<8x128xf32>
    %cst_112 = arith.constant 1.000000e+00 : f32
    %438 = vector.broadcast %cst_112 : f32 to vector<8x128xf32>
    %439 = arith.subf %438, %431 : vector<8x128xf32>
    %440 = arith.mulf %439, %437 : vector<8x128xf32>
    %441 = arith.mulf %431, %376 : vector<8x128xf32>
    %442 = arith.addf %440, %441 : vector<8x128xf32>
    %443 = tpu.concatenate %442, %403 in 1 : vector<8x128xf32>, vector<8x128xf32> -> vector<8x256xf32>
    %444 = arith.truncf %443 : vector<8x256xf32> to vector<8x256xbf16>
    %c0_113 = arith.constant 0 : index
    %c0_114 = arith.constant 0 : index
    %445 = vector.load %arg6[%c0_113, %c0_114] : memref<256x512xbf16, #tpu.memory_space<vmem>>, vector<256x512xbf16>
    %cst_115 = arith.constant dense<0.000000e+00> : vector<8x512xf32>
    %446 = tpu.matmul %444, %445, %cst_115 {dimension_numbers = #tpu.dot_dimension_numbers<[1], [0], [0], [1], [0, 0, 1, 1], [], []>} : vector<8x256xbf16>, vector<256x512xbf16>, vector<8x512xf32> -> vector<8x512xf32>
    %447 = arith.addf %446, %8 : vector<8x512xf32>
    %448 = vector.extract_strided_slice %447 {offsets = [0, 0], sizes = [8, 128], strides = [1, 1]} : vector<8x512xf32> to vector<8x128xf32>
    %449 = arith.negf %448 : vector<8x128xf32>
    %450 = math.exp %449 : vector<8x128xf32>
    %cst_116 = arith.constant 1.000000e+00 : f32
    %451 = vector.broadcast %cst_116 : f32 to vector<8x128xf32>
    %452 = arith.addf %451, %450 : vector<8x128xf32>
    %453 = arith.divf %451, %452 : vector<8x128xf32>
    %454 = vector.extract_strided_slice %447 {offsets = [0, 128], sizes = [8, 128], strides = [1, 1]} : vector<8x512xf32> to vector<8x128xf32>
    %455 = arith.negf %454 : vector<8x128xf32>
    %456 = math.exp %455 : vector<8x128xf32>
    %cst_117 = arith.constant 1.000000e+00 : f32
    %457 = vector.broadcast %cst_117 : f32 to vector<8x128xf32>
    %458 = arith.addf %457, %456 : vector<8x128xf32>
    %459 = arith.divf %457, %458 : vector<8x128xf32>
    %460 = vector.extract_strided_slice %447 {offsets = [0, 256], sizes = [8, 128], strides = [1, 1]} : vector<8x512xf32> to vector<8x128xf32>
    %461 = vector.extract_strided_slice %447 {offsets = [0, 384], sizes = [8, 128], strides = [1, 1]} : vector<8x512xf32> to vector<8x128xf32>
    %462 = arith.mulf %453, %461 : vector<8x128xf32>
    %463 = arith.addf %460, %462 : vector<8x128xf32>
    %464 = math.tanh %463 : vector<8x128xf32>
    %cst_118 = arith.constant 1.000000e+00 : f32
    %465 = vector.broadcast %cst_118 : f32 to vector<8x128xf32>
    %466 = arith.subf %465, %459 : vector<8x128xf32>
    %467 = arith.mulf %466, %464 : vector<8x128xf32>
    %468 = arith.mulf %459, %403 : vector<8x128xf32>
    %469 = arith.addf %467, %468 : vector<8x128xf32>
    %470 = arith.truncf %469 : vector<8x128xf32> to vector<8x128xbf16>
    %471 = arith.index_cast %c6_i32 : i32 to index
    %c0_119 = arith.constant 0 : index
    %c0_120 = arith.constant 0 : index
    %472 = vector.load %arg8[%471, %c0_119, %c0_120] : memref<8x8x128xbf16, #tpu.memory_space<vmem>>, vector<1x8x128xbf16>
    %473 = vector.shape_cast %472 : vector<1x8x128xbf16> to vector<8x128xbf16>
    %474 = vector.shape_cast %470 : vector<8x128xbf16> to vector<1x8x128xbf16>
    tpu.vector_store %arg8[%471, %c0_119, %c0_120], %474 {strides = array<i32>} : memref<8x8x128xbf16, #tpu.memory_space<vmem>>, vector<1x8x128xbf16>,
    %c7_i32 = arith.constant 7 : i32
    %475 = arith.index_cast %c7_i32 : i32 to index
    %c0_121 = arith.constant 0 : index
    %c0_122 = arith.constant 0 : index
    %476 = vector.load %arg2[%475, %c0_121, %c0_122] : memref<8x8x384xbf16, #tpu.memory_space<vmem>>, vector<1x8x384xbf16>
    %477 = vector.shape_cast %476 : vector<1x8x384xbf16> to vector<8x384xbf16>
    %478 = arith.extf %477 : vector<8x384xbf16> to vector<8x384xf32>
    %479 = arith.truncf %442 : vector<8x128xf32> to vector<8x128xbf16>
    %c0_123 = arith.constant 0 : index
    %c0_124 = arith.constant 0 : index
    %480 = vector.load %arg4[%c0_123, %c0_124] : memref<128x384xbf16, #tpu.memory_space<vmem>>, vector<128x384xbf16>
    %cst_125 = arith.constant dense<0.000000e+00> : vector<8x384xf32>
    %481 = tpu.matmul %479, %480, %cst_125 {dimension_numbers = #tpu.dot_dimension_numbers<[1], [0], [0], [1], [0, 0, 1, 1], [], []>} : vector<8x128xbf16>, vector<128x384xbf16>, vector<8x384xf32> -> vector<8x384xf32>
    %482 = vector.extract_strided_slice %478 {offsets = [0, 0], sizes = [8, 128], strides = [1, 1]} : vector<8x384xf32> to vector<8x128xf32>
    %483 = vector.extract_strided_slice %481 {offsets = [0, 0], sizes = [8, 128], strides = [1, 1]} : vector<8x384xf32> to vector<8x128xf32>
    %484 = arith.addf %482, %483 : vector<8x128xf32>
    %485 = arith.negf %484 : vector<8x128xf32>
    %486 = math.exp %485 : vector<8x128xf32>
    %cst_126 = arith.constant 1.000000e+00 : f32
    %487 = vector.broadcast %cst_126 : f32 to vector<8x128xf32>
    %488 = arith.addf %487, %486 : vector<8x128xf32>
    %489 = arith.divf %487, %488 : vector<8x128xf32>
    %490 = vector.extract_strided_slice %478 {offsets = [0, 128], sizes = [8, 128], strides = [1, 1]} : vector<8x384xf32> to vector<8x128xf32>
    %491 = vector.extract_strided_slice %481 {offsets = [0, 128], sizes = [8, 128], strides = [1, 1]} : vector<8x384xf32> to vector<8x128xf32>
    %492 = arith.addf %490, %491 : vector<8x128xf32>
    %493 = arith.negf %492 : vector<8x128xf32>
    %494 = math.exp %493 : vector<8x128xf32>
    %cst_127 = arith.constant 1.000000e+00 : f32
    %495 = vector.broadcast %cst_127 : f32 to vector<8x128xf32>
    %496 = arith.addf %495, %494 : vector<8x128xf32>
    %497 = arith.divf %495, %496 : vector<8x128xf32>
    %498 = vector.extract_strided_slice %478 {offsets = [0, 256], sizes = [8, 128], strides = [1, 1]} : vector<8x384xf32> to vector<8x128xf32>
    %499 = vector.extract_strided_slice %481 {offsets = [0, 256], sizes = [8, 128], strides = [1, 1]} : vector<8x384xf32> to vector<8x128xf32>
    %500 = arith.addf %499, %5 : vector<8x128xf32>
    %501 = arith.mulf %489, %500 : vector<8x128xf32>
    %502 = arith.addf %498, %501 : vector<8x128xf32>
    %503 = math.tanh %502 : vector<8x128xf32>
    %cst_128 = arith.constant 1.000000e+00 : f32
    %504 = vector.broadcast %cst_128 : f32 to vector<8x128xf32>
    %505 = arith.subf %504, %497 : vector<8x128xf32>
    %506 = arith.mulf %505, %503 : vector<8x128xf32>
    %507 = arith.mulf %497, %442 : vector<8x128xf32>
    %508 = arith.addf %506, %507 : vector<8x128xf32>
    %509 = tpu.concatenate %508, %469 in 1 : vector<8x128xf32>, vector<8x128xf32> -> vector<8x256xf32>
    %510 = arith.truncf %509 : vector<8x256xf32> to vector<8x256xbf16>
    %c0_129 = arith.constant 0 : index
    %c0_130 = arith.constant 0 : index
    %511 = vector.load %arg6[%c0_129, %c0_130] : memref<256x512xbf16, #tpu.memory_space<vmem>>, vector<256x512xbf16>
    %cst_131 = arith.constant dense<0.000000e+00> : vector<8x512xf32>
    %512 = tpu.matmul %510, %511, %cst_131 {dimension_numbers = #tpu.dot_dimension_numbers<[1], [0], [0], [1], [0, 0, 1, 1], [], []>} : vector<8x256xbf16>, vector<256x512xbf16>, vector<8x512xf32> -> vector<8x512xf32>
    %513 = arith.addf %512, %8 : vector<8x512xf32>
    %514 = vector.extract_strided_slice %513 {offsets = [0, 0], sizes = [8, 128], strides = [1, 1]} : vector<8x512xf32> to vector<8x128xf32>
    %515 = arith.negf %514 : vector<8x128xf32>
    %516 = math.exp %515 : vector<8x128xf32>
    %cst_132 = arith.constant 1.000000e+00 : f32
    %517 = vector.broadcast %cst_132 : f32 to vector<8x128xf32>
    %518 = arith.addf %517, %516 : vector<8x128xf32>
    %519 = arith.divf %517, %518 : vector<8x128xf32>
    %520 = vector.extract_strided_slice %513 {offsets = [0, 128], sizes = [8, 128], strides = [1, 1]} : vector<8x512xf32> to vector<8x128xf32>
    %521 = arith.negf %520 : vector<8x128xf32>
    %522 = math.exp %521 : vector<8x128xf32>
    %cst_133 = arith.constant 1.000000e+00 : f32
    %523 = vector.broadcast %cst_133 : f32 to vector<8x128xf32>
    %524 = arith.addf %523, %522 : vector<8x128xf32>
    %525 = arith.divf %523, %524 : vector<8x128xf32>
    %526 = vector.extract_strided_slice %513 {offsets = [0, 256], sizes = [8, 128], strides = [1, 1]} : vector<8x512xf32> to vector<8x128xf32>
    %527 = vector.extract_strided_slice %513 {offsets = [0, 384], sizes = [8, 128], strides = [1, 1]} : vector<8x512xf32> to vector<8x128xf32>
    %528 = arith.mulf %519, %527 : vector<8x128xf32>
    %529 = arith.addf %526, %528 : vector<8x128xf32>
    %530 = math.tanh %529 : vector<8x128xf32>
    %cst_134 = arith.constant 1.000000e+00 : f32
    %531 = vector.broadcast %cst_134 : f32 to vector<8x128xf32>
    %532 = arith.subf %531, %525 : vector<8x128xf32>
    %533 = arith.mulf %532, %530 : vector<8x128xf32>
    %534 = arith.mulf %525, %469 : vector<8x128xf32>
    %535 = arith.addf %533, %534 : vector<8x128xf32>
    %536 = arith.truncf %535 : vector<8x128xf32> to vector<8x128xbf16>
    %537 = arith.index_cast %c7_i32 : i32 to index
    %c0_135 = arith.constant 0 : index
    %c0_136 = arith.constant 0 : index
    %538 = vector.load %arg8[%537, %c0_135, %c0_136] : memref<8x8x128xbf16, #tpu.memory_space<vmem>>, vector<1x8x128xbf16>
    %539 = vector.shape_cast %538 : vector<1x8x128xbf16> to vector<8x128xbf16>
    %540 = vector.shape_cast %536 : vector<8x128xbf16> to vector<1x8x128xbf16>
    tpu.vector_store %arg8[%537, %c0_135, %c0_136], %540 {strides = array<i32>} : memref<8x8x128xbf16, #tpu.memory_space<vmem>>, vector<1x8x128xbf16>,
    %c8_i32 = arith.constant 8 : i32
    %c0_137 = arith.constant 0 : index
    %c0_138 = arith.constant 0 : index
    %c0_139 = arith.constant 0 : index
    %541 = vector.load %arg9[%c0_137, %c0_138, %c0_139] : memref<2x8x128xf32, #tpu.memory_space<vmem>>, vector<1x8x128xf32>
    %542 = vector.shape_cast %541 : vector<1x8x128xf32> to vector<8x128xf32>
    %543 = vector.shape_cast %508 : vector<8x128xf32> to vector<1x8x128xf32>
    tpu.vector_store %arg9[%c0_137, %c0_138, %c0_139], %543 {strides = array<i32>} : memref<2x8x128xf32, #tpu.memory_space<vmem>>, vector<1x8x128xf32>,
    %c1_140 = arith.constant 1 : index
    %c0_141 = arith.constant 0 : index
    %c0_142 = arith.constant 0 : index
    %544 = vector.load %arg9[%c1_140, %c0_141, %c0_142] : memref<2x8x128xf32, #tpu.memory_space<vmem>>, vector<1x8x128xf32>
    %545 = vector.shape_cast %544 : vector<1x8x128xf32> to vector<8x128xf32>
    %546 = vector.shape_cast %535 : vector<8x128xf32> to vector<1x8x128xf32>
    tpu.vector_store %arg9[%c1_140, %c0_141, %c0_142], %546 {strides = array<i32>} : memref<2x8x128xf32, #tpu.memory_space<vmem>>, vector<1x8x128xf32>,
    return
  }
  func.func @transform_0(%arg0: i32, %arg1: i32) -> (i32, i32, i32) {
    %c0_i32 = arith.constant 0 : i32
    %c0_i32_0 = arith.constant 0 : i32
    return %arg1, %arg0, %c0_i32 : i32, i32, i32
  }
  func.func @transform_1(%arg0: i32, %arg1: i32) -> (i32, i32, i32) {
    %c0_i32 = arith.constant 0 : i32
    %c0_i32_0 = arith.constant 0 : i32
    %c0_i32_1 = arith.constant 0 : i32
    return %c0_i32, %arg0, %c0_i32_0 : i32, i32, i32
  }
  func.func @transform_2(%arg0: i32, %arg1: i32) -> (i32, i32) {
    %c0_i32 = arith.constant 0 : i32
    %c0_i32_0 = arith.constant 0 : i32
    %c0_i32_1 = arith.constant 0 : i32
    return %c0_i32, %c0_i32_0 : i32, i32
  }
  func.func @transform_3(%arg0: i32, %arg1: i32) -> (i32, i32) {
    %c0_i32 = arith.constant 0 : i32
    %c0_i32_0 = arith.constant 0 : i32
    %c0_i32_1 = arith.constant 0 : i32
    return %c0_i32, %c0_i32_0 : i32, i32
  }
  func.func @transform_4(%arg0: i32, %arg1: i32) -> (i32, i32) {
    %c0_i32 = arith.constant 0 : i32
    %c0_i32_0 = arith.constant 0 : i32
    %c0_i32_1 = arith.constant 0 : i32
    return %c0_i32, %c0_i32_0 : i32, i32
  }
  func.func @transform_5(%arg0: i32, %arg1: i32) -> (i32, i32) {
    %c0_i32 = arith.constant 0 : i32
    %c0_i32_0 = arith.constant 0 : i32
    %c0_i32_1 = arith.constant 0 : i32
    return %c0_i32, %c0_i32_0 : i32, i32
  }
  func.func @transform_6(%arg0: i32, %arg1: i32) -> (i32, i32, i32) {
    %c0_i32 = arith.constant 0 : i32
    %c0_i32_0 = arith.constant 0 : i32
    return %arg1, %arg0, %c0_i32 : i32, i32, i32
  }
  func.func @transform_7(%arg0: i32, %arg1: i32) -> (i32, i32, i32) {
    %c0_i32 = arith.constant 0 : i32
    %c0_i32_0 = arith.constant 0 : i32
    %c0_i32_1 = arith.constant 0 : i32
    return %c0_i32, %arg0, %c0_i32_0 : i32, i32, i32
  }
}

</mosaic_0001>

<llo_original>
// kernel: grunet_forward.1
$region0: #{grunet_forward.1}
  #allocation0 [shape = 'u32[]', space=smem, size = 0x4, offset = 0x4, fixed_abs, tag = 'smem constant byte address 0x4 - core index']
  #allocation1 [shape = 'u32[144,128]{1,0:T(1,128)}', space=vmem, size = 0x12000, scoped, tag = 'internal scratch']
  %s0 = inlined_call_operand.vmem [shape: bf16[8,8,384], index: 0, kind: input, shape index: {}]
  %s1 = inlined_call_operand.vmem [shape: f32[2,8,128], index: 1, kind: input, shape index: {}]
  %s2 = inlined_call_operand.vmem [shape: bf16[128,384], index: 2, kind: input, shape index: {}]
  %s3 = inlined_call_operand.vmem [shape: f32[1,128], index: 3, kind: input, shape index: {}]
  %s4 = inlined_call_operand.vmem [shape: bf16[256,512], index: 4, kind: input, shape index: {}]
  %s5 = inlined_call_operand.vmem [shape: f32[1,512], index: 5, kind: input, shape index: {}]
  %s6 = inlined_call_operand.vmem [shape: bf16[8,8,128], index: 6, kind: output, shape index: {0}]
  %s7 = inlined_call_operand.vmem [shape: f32[2,8,128], index: 7, kind: output, shape index: {1}]
  %8 = xla_tuple %s6, %s7
  %s9 = sld [smem:[#allocation0]]
  $region46: #{grunet_forward.1} parent=0
    _
  %s11 = ssub.s32 1, %s9
  %s12 = scalar_select 0, %s11, %s9
  // Predicated region
  $region2: #{grunet_forward.1} parent=0 // pred_check
    _
  $region3: #{grunet_forward.1} parent=0 // pred_check_branch
    %14 = sbr.rel (0) target = $region5
  $region4: #{grunet_forward.1} parent=0 // pred_region
    _
  $region5: #{grunet_forward.1} parent=0 // pred_fallthru
    _
  // Predicated region
  $region6: #{grunet_forward.1} parent=0 // pred_check
    _
  $region7: #{grunet_forward.1} parent=0 // pred_check_branch
    %16 = sbr.rel (0) target = $region9
  $region8: #{grunet_forward.1} parent=0 // pred_region
    _
  $region9: #{grunet_forward.1} parent=0 // pred_fallthru
    _
  // Predicated region
  $region10: #{grunet_forward.1} parent=0 // pred_check
    _
  $region11: #{grunet_forward.1} parent=0 // pred_check_branch
    %18 = sbr.rel (0) target = $region13
  $region12: #{grunet_forward.1} parent=0 // pred_region
    _
  $region13: #{grunet_forward.1} parent=0 // pred_fallthru
    _
  // Predicated region
  $region14: #{grunet_forward.1} parent=0 // pred_check
    _
  $region15: #{grunet_forward.1} parent=0 // pred_check_branch
    %20 = sbr.rel (0) target = $region17
  $region16: #{grunet_forward.1} parent=0 // pred_region
    _
  $region17: #{grunet_forward.1} parent=0 // pred_fallthru
    _
  // Predicated region
  $region18: #{grunet_forward.1} parent=0 // pred_check
    _
  $region19: #{grunet_forward.1} parent=0 // pred_check_branch
    %22 = sbr.rel (0) target = $region21
  $region20: #{grunet_forward.1} parent=0 // pred_region
    _
  $region21: #{grunet_forward.1} parent=0 // pred_fallthru
    _
  // Predicated region
  $region22: #{grunet_forward.1} parent=0 // pred_check
    _
  $region23: #{grunet_forward.1} parent=0 // pred_check_branch
    %24 = sbr.rel (0) target = $region25
  $region24: #{grunet_forward.1} parent=0 // pred_region
    _
  $region25: #{grunet_forward.1} parent=0 // pred_fallthru
    _
  %p26 = scmp.eq.s32.totalorder 0, 0
  // Predicated region
  $region26: #{grunet_forward.1} parent=0 // pred_check
    %p27 = pneg %p26
  $region27: #{grunet_forward.1} parent=0 // pred_check_branch
    %29 = sbr.rel (%p27) target = $region29
  $region28: #{grunet_forward.1} parent=0 // pred_region
    %v30 = vld [vmem:[%s1] sm:$0xff]
    %v31 = vld [vmem:[%s1 + $0x8] sm:$0xff]
    %32 = vst [vmem:[%s7] sm:$0xff] %v30
    %33 = vst [vmem:[%s7 + $0x8] sm:$0xff] %v31
  $region29: #{grunet_forward.1} parent=0 // pred_fallthru
    _
  %v34 = vld [vmem:[%s3] sm:$0x1]
  %v36 = vlaneseq
  %v37 = vshrl.u32 %v36, 7
  %v38 = vsub.s32 0, %v37
  %v39 = vrot.slane %v34, %v38
  %v41 = vld [vmem:[%s5] sm:$0xf]
  %v43 = vlaneseq
  %v44 = vshrl.u32 %v43, 7
  %v45 = vsub.s32 0, %v44
  %v46 = vrot.slane %v41, %v45
  %v47 = vlaneseq
  %v48 = vshrl.u32 %v47, 7
  %v49 = vsub.s32 1, %v48
  %v50 = vrot.slane %v41, %v49
  %v51 = vlaneseq
  %v52 = vshrl.u32 %v51, 7
  %v53 = vsub.s32 2, %v52
  %v54 = vrot.slane %v41, %v53
  %v55 = vlaneseq
  %v56 = vshrl.u32 %v55, 7
  %v57 = vsub.s32 3, %v56
  %v58 = vrot.slane %v41, %v57
  %v63 = vld [vmem:[%s7] sm:$0xff]
  %s64 = scalar_lea.vmem %s7, 8
  %v65 = vld [vmem:[%s64] sm:$0xff]
  %v66 = vld [vmem:[%s0] sm:$0xff]
  %v67 = vld [vmem:[%s0 + $0x8] sm:$0xf]
  %v68 = vunpack.c.l.bf16 %v66
  %v69 = vunpack.c.h.bf16 %v66
  %v70 = vunpack.c.l.bf16 %v67
  %v71 = vpack.c.bf16 %v63, %v63
  %v72 = vld [vmem:[%s2] sm:$0xff]
  %v73 = vld [vmem:[%s2 + $0x8] sm:$0xf]
  %v74 = vld [vmem:[%s2 + $0xc] sm:$0xff]
  %v75 = vld [vmem:[%s2 + $0x14] sm:$0xf]
  %v76 = vld [vmem:[%s2 + $0x18] sm:$0xff]
  %v77 = vld [vmem:[%s2 + $0x20] sm:$0xf]
  %v78 = vld [vmem:[%s2 + $0x24] sm:$0xff]
  %v79 = vld [vmem:[%s2 + $0x2c] sm:$0xf]
  %v80 = vld [vmem:[%s2 + $0x30] sm:$0xff]
  %v81 = vld [vmem:[%s2 + $0x38] sm:$0xf]
  %v82 = vld [vmem:[%s2 + $0x3c] sm:$0xff]
  %v83 = vld [vmem:[%s2 + $0x44] sm:$0xf]
  %v84 = vld [vmem:[%s2 + $0x48] sm:$0xff]
  %v85 = vld [vmem:[%s2 + $0x50] sm:$0xf]
  %v86 = vld [vmem:[%s2 + $0x54] sm:$0xff]
  %v87 = vld [vmem:[%s2 + $0x5c] sm:$0xf]
  %v88 = vld [vmem:[%s2 + $0x60] sm:$0xff]
  %v89 = vld [vmem:[%s2 + $0x68] sm:$0xf]
  %v90 = vld [vmem:[%s2 + $0x6c] sm:$0xff]
  %v91 = vld [vmem:[%s2 + $0x74] sm:$0xf]
  %v92 = vld [vmem:[%s2 + $0x78] sm:$0xff]
  %v93 = vld [vmem:[%s2 + $0x80] sm:$0xf]
  %v94 = vld [vmem:[%s2 + $0x84] sm:$0xff]
  %v95 = vld [vmem:[%s2 + $0x8c] sm:$0xf]
  %v96 = vld [vmem:[%s2 + $0x90] sm:$0xff]
  %v97 = vld [vmem:[%s2 + $0x98] sm:$0xf]
  %v98 = vld [vmem:[%s2 + $0x9c] sm:$0xff]
  %v99 = vld [vmem:[%s2 + $0xa4] sm:$0xf]
  %v100 = vld [vmem:[%s2 + $0xa8] sm:$0xff]
  %v101 = vld [vmem:[%s2 + $0xb0] sm:$0xf]
  %v102 = vld [vmem:[%s2 + $0xb4] sm:$0xff]
  %v103 = vld [vmem:[%s2 + $0xbc] sm:$0xf]
  %v136 = vunpack.c.l.b16 %v72
  %v137 = vunpack.c.h.b16 %v72
  %v138 = vunpack.c.l.b16 %v73
  %v139 = vunpack.c.l.b16 %v74
  %v140 = vunpack.c.h.b16 %v74
  %v141 = vunpack.c.l.b16 %v75
  %v142 = vunpack.c.l.b16 %v76
  %v143 = vunpack.c.h.b16 %v76
  %v144 = vunpack.c.l.b16 %v77
  %v145 = vunpack.c.l.b16 %v78
  %v146 = vunpack.c.h.b16 %v78
  %v147 = vunpack.c.l.b16 %v79
  %v148 = vunpack.c.l.b16 %v80
  %v149 = vunpack.c.h.b16 %v80
  %v150 = vunpack.c.l.b16 %v81
  %v151 = vunpack.c.l.b16 %v82
  %v152 = vunpack.c.h.b16 %v82
  %v153 = vunpack.c.l.b16 %v83
  %v154 = vunpack.c.l.b16 %v84
  %v155 = vunpack.c.h.b16 %v84
  %v156 = vunpack.c.l.b16 %v85
  %v157 = vunpack.c.l.b16 %v86
  %v158 = vunpack.c.h.b16 %v86
  %v159 = vunpack.c.l.b16 %v87
  %v160 = vunpack.c.l.b16 %v88
  %v161 = vunpack.c.h.b16 %v88
  %v162 = vunpack.c.l.b16 %v89
  %v163 = vunpack.c.l.b16 %v90
  %v164 = vunpack.c.h.b16 %v90
  %v165 = vunpack.c.l.b16 %v91
  %v166 = vunpack.c.l.b16 %v92
  %v167 = vunpack.c.h.b16 %v92
  %v168 = vunpack.c.l.b16 %v93
  %v169 = vunpack.c.l.b16 %v94
  %v170 = vunpack.c.h.b16 %v94
  %v171 = vunpack.c.l.b16 %v95
  %v172 = vunpack.c.l.b16 %v96
  %v173 = vunpack.c.h.b16 %v96
  %v174 = vunpack.c.l.b16 %v97
  %v175 = vunpack.c.l.b16 %v98
  %v176 = vunpack.c.h.b16 %v98
  %v177 = vunpack.c.l.b16 %v99
  %v178 = vunpack.c.l.b16 %v100
  %v179 = vunpack.c.h.b16 %v100
  %v180 = vunpack.c.l.b16 %v101
  %v181 = vunpack.c.l.b16 %v102
  %v182 = vunpack.c.h.b16 %v102
  %v183 = vunpack.c.l.b16 %v103
  %v184 = vpack.c.b16 %v139, %v136
  %v185 = vpack.c.b16 %v140, %v137
  %v186 = vpack.c.b16 %v141, %v138
  %v187 = vpack.c.b16 %v145, %v142
  %v188 = vpack.c.b16 %v146, %v143
  %v189 = vpack.c.b16 %v147, %v144
  %v190 = vpack.c.b16 %v151, %v148
  %v191 = vpack.c.b16 %v152, %v149
  %v192 = vpack.c.b16 %v153, %v150
  %v193 = vpack.c.b16 %v157, %v154
  %v194 = vpack.c.b16 %v158, %v155
  %v195 = vpack.c.b16 %v159, %v156
  %v196 = vpack.c.b16 %v163, %v160
  %v197 = vpack.c.b16 %v164, %v161
  %v198 = vpack.c.b16 %v165, %v162
  %v199 = vpack.c.b16 %v169, %v166
  %v200 = vpack.c.b16 %v170, %v167
  %v201 = vpack.c.b16 %v171, %v168
  %v202 = vpack.c.b16 %v175, %v172
  %v203 = vpack.c.b16 %v176, %v173
  %v204 = vpack.c.b16 %v177, %v174
  %v205 = vpack.c.b16 %v181, %v178
  %v206 = vpack.c.b16 %v182, %v179
  %v207 = vpack.c.b16 %v183, %v180
  %232 = vmatprep.subr.bf16.mxu0 %v206
  %233 = vmatpush1.bf16.msra.mxu0 %v205
  %234 = vmatprep.subr.bf16.mxu0 %v203
  %235 = vmatpush1.bf16.msra.mxu0 %v202
  %236 = vmatprep.subr.bf16.mxu0 %v200
  %237 = vmatpush1.bf16.msra.mxu0 %v199
  %238 = vmatprep.subr.bf16.mxu0 %v197
  %239 = vmatpush1.bf16.msra.mxu0 %v196
  %240 = vmatprep.subr.bf16.mxu0 %v194
  %241 = vmatpush1.bf16.msra.mxu0 %v193
  %242 = vmatprep.subr.bf16.mxu0 %v191
  %243 = vmatpush1.bf16.msra.mxu0 %v190
  %244 = vmatprep.subr.bf16.mxu0 %v188
  %245 = vmatpush1.bf16.msra.mxu0 %v187
  %246 = vmatprep.subr.bf16.mxu0 %v185
  %247 = vmatpush1.bf16.msra.mxu0 %v184
  %248 = vmatprep.subr.bf16.mxu0 0
  %249 = vmatpush2.bf16.msra.mxu0 0
  %250 = vmatprep.subr.bf16.mxu0 0
  %251 = vmatpush2.bf16.msra.mxu0 0
  %252 = vmatprep.subr.bf16.mxu0 0
  %253 = vmatpush2.bf16.msra.mxu0 0
  %254 = vmatprep.subr.bf16.mxu0 0
  %255 = vmatpush2.bf16.msra.mxu0 0
  %256 = vmatprep.subr.bf16.mxu0 0
  %257 = vmatpush2.bf16.msra.mxu0 0
  %258 = vmatprep.subr.bf16.mxu0 0
  %259 = vmatpush2.bf16.msra.mxu0 0
  %260 = vmatprep.subr.bf16.mxu0 0
  %261 = vmatpush2.bf16.msra.mxu0 0
  %262 = vmatprep.subr.bf16.mxu0 0
  %263 = vmatpush2.bf16.msra.mxu0 0
  %264 = vmatprep.mubr.bf16.mxu0 0
  %265 = vmatmul.mubr.bf16.gmra.mxu0 %v71
  %v266 = vpop.f32.mrf.mxu0
  %v267 = vadd.f32 0.0, %v266
  %v268 = vpop.f32.mrf.mxu0
  %v269 = vadd.f32 0.0, %v268
  %v270 = vpop.f32.mrf.mxu0
  %v271 = vpop.f32.mrf.mxu0
  %272 = vdwg.mxu0
  %273 = vmatprep.subr.bf16.mxu0 0
  %274 = vmatpush1.bf16.msra.mxu0 %v207
  %275 = vmatprep.subr.bf16.mxu0 0
  %276 = vmatpush1.bf16.msra.mxu0 %v204
  %277 = vmatprep.subr.bf16.mxu0 0
  %278 = vmatpush1.bf16.msra.mxu0 %v201
  %279 = vmatprep.subr.bf16.mxu0 0
  %280 = vmatpush1.bf16.msra.mxu0 %v198
  %281 = vmatprep.subr.bf16.mxu0 0
  %282 = vmatpush1.bf16.msra.mxu0 %v195
  %283 = vmatprep.subr.bf16.mxu0 0
  %284 = vmatpush1.bf16.msra.mxu0 %v192
  %285 = vmatprep.subr.bf16.mxu0 0
  %286 = vmatpush1.bf16.msra.mxu0 %v189
  %287 = vmatprep.subr.bf16.mxu0 0
  %288 = vmatpush1.bf16.msra.mxu0 %v186
  %289 = vmatprep.subr.bf16.mxu0 0
  %290 = vmatpush2.bf16.msra.mxu0 0
  %291 = vmatprep.subr.bf16.mxu0 0
  %292 = vmatpush2.bf16.msra.mxu0 0
  %293 = vmatprep.subr.bf16.mxu0 0
  %294 = vmatpush2.bf16.msra.mxu0 0
  %295 = vmatprep.subr.bf16.mxu0 0
  %296 = vmatpush2.bf16.msra.mxu0 0
  %297 = vmatprep.subr.bf16.mxu0 0
  %298 = vmatpush2.bf16.msra.mxu0 0
  %299 = vmatprep.subr.bf16.mxu0 0
  %300 = vmatpush2.bf16.msra.mxu0 0
  %301 = vmatprep.subr.bf16.mxu0 0
  %302 = vmatpush2.bf16.msra.mxu0 0
  %303 = vmatprep.subr.bf16.mxu0 0
  %304 = vmatpush2.bf16.msra.mxu0 0
  %305 = vmatprep.mubr.bf16.mxu0 0
  %306 = vmatmul.mubr.bf16.gmra.mxu0 %v71
  %v307 = vpop.f32.mrf.mxu0
  %v308 = vadd.f32 0.0, %v307
  %v309 = vpop.f32.mrf.mxu0
  %v310 = vpop.f32.mrf.mxu0
  %v311 = vpop.f32.mrf.mxu0
  %312 = vdwg.mxu0
  %v313 = vadd.f32 %v68, %v267
  %v314 = vxor.u32 %v313, 2147483648
  %v315 = vmul.f32 %v314, 1.442695
  %v316 = vpow.pop %v315
  %v317 = vadd.f32 %v316, 1.0
  %v318 = vrcp.pop %v317
  %v319 = vmul.f32 1.0, %v318
  %v320 = vadd.f32 %v69, %v269
  %v321 = vxor.u32 %v320, 2147483648
  %v322 = vmul.f32 %v321, 1.442695
  %v323 = vpow.pop %v322
  %v324 = vadd.f32 %v323, 1.0
  %v325 = vrcp.pop %v324
  %v326 = vmul.f32 1.0, %v325
  %v327 = vadd.f32 %v308, %v39
  %v328 = vmul.f32 %v319, %v327
  %v329 = vadd.f32 %v70, %v328
  %v330 = vtanh.pop %v329
  %v331 = vsub.f32 1.0, %v326
  %v332 = vmul.f32 %v331, %v330
  %v333 = vmul.f32 %v326, %v63
  %v334 = vadd.f32 %v332, %v333
  %v335 = vpack.c.bf16 %v334, %v334
  %v336 = vpack.c.bf16 %v65, %v65
  %v337 = vld [vmem:[%s4] sm:$0xff]
  %v338 = vld [vmem:[%s4 + $0x8] sm:$0xff]
  %v339 = vld [vmem:[%s4 + $0x10] sm:$0xff]
  %v340 = vld [vmem:[%s4 + $0x18] sm:$0xff]
  %v341 = vld [vmem:[%s4 + $0x20] sm:$0xff]
  %v342 = vld [vmem:[%s4 + $0x28] sm:$0xff]
  %v343 = vld [vmem:[%s4 + $0x30] sm:$0xff]
  %v344 = vld [vmem:[%s4 + $0x38] sm:$0xff]
  %v345 = vld [vmem:[%s4 + $0x40] sm:$0xff]
  %v346 = vld [vmem:[%s4 + $0x48] sm:$0xff]
  %v347 = vld [vmem:[%s4 + $0x50] sm:$0xff]
  %v348 = vld [vmem:[%s4 + $0x58] sm:$0xff]
  %v349 = vld [vmem:[%s4 + $0x60] sm:$0xff]
  %v350 = vld [vmem:[%s4 + $0x68] sm:$0xff]
  %v351 = vld [vmem:[%s4 + $0x70] sm:$0xff]
  %v352 = vld [vmem:[%s4 + $0x78] sm:$0xff]
  %v353 = vld [vmem:[%s4 + $0x80] sm:$0xff]
  %v354 = vld [vmem:[%s4 + $0x88] sm:$0xff]
  %v355 = vld [vmem:[%s4 + $0x90] sm:$0xff]
  %v356 = vld [vmem:[%s4 + $0x98] sm:$0xff]
  %v357 = vld [vmem:[%s4 + $0xa0] sm:$0xff]
  %v358 = vld [vmem:[%s4 + $0xa8] sm:$0xff]
  %v359 = vld [vmem:[%s4 + $0xb0] sm:$0xff]
  %v360 = vld [vmem:[%s4 + $0xb8] sm:$0xff]
  %v361 = vld [vmem:[%s4 + $0xc0] sm:$0xff]
  %v362 = vld [vmem:[%s4 + $0xc8] sm:$0xff]
  %v363 = vld [vmem:[%s4 + $0xd0] sm:$0xff]
  %v364 = vld [vmem:[%s4 + $0xd8] sm:$0xff]
  %v365 = vld [vmem:[%s4 + $0xe0] sm:$0xff]
  %v366 = vld [vmem:[%s4 + $0xe8] sm:$0xff]
  %v367 = vld [vmem:[%s4 + $0xf0] sm:$0xff]
  %v368 = vld [vmem:[%s4 + $0xf8] sm:$0xff]
  %v369 = vld [vmem:[%s4 + $0x100] sm:$0xff]
  %v370 = vld [vmem:[%s4 + $0x108] sm:$0xff]
  %v371 = vld [vmem:[%s4 + $0x110] sm:$0xff]
  %v372 = vld [vmem:[%s4 + $0x118] sm:$0xff]
  %v373 = vld [vmem:[%s4 + $0x120] sm:$0xff]
  %v374 = vld [vmem:[%s4 + $0x128] sm:$0xff]
  %v375 = vld [vmem:[%s4 + $0x130] sm:$0xff]
  %v376 = vld [vmem:[%s4 + $0x138] sm:$0xff]
  %v377 = vld [vmem:[%s4 + $0x140] sm:$0xff]
  %v378 = vld [vmem:[%s4 + $0x148] sm:$0xff]
  %v379 = vld [vmem:[%s4 + $0x150] sm:$0xff]
  %v380 = vld [vmem:[%s4 + $0x158] sm:$0xff]
  %v381 = vld [vmem:[%s4 + $0x160] sm:$0xff]
  %v382 = vld [vmem:[%s4 + $0x168] sm:$0xff]
  %v383 = vld [vmem:[%s4 + $0x170] sm:$0xff]
  %v384 = vld [vmem:[%s4 + $0x178] sm:$0xff]
  %v385 = vld [vmem:[%s4 + $0x180] sm:$0xff]
  %v386 = vld [vmem:[%s4 + $0x188] sm:$0xff]
  %v387 = vld [vmem:[%s4 + $0x190] sm:$0xff]
  %v388 = vld [vmem:[%s4 + $0x198] sm:$0xff]
  %v389 = vld [vmem:[%s4 + $0x1a0] sm:$0xff]
  %v390 = vld [vmem:[%s4 + $0x1a8] sm:$0xff]
  %v391 = vld [vmem:[%s4 + $0x1b0] sm:$0xff]
  %v392 = vld [vmem:[%s4 + $0x1b8] sm:$0xff]
  %v393 = vld [vmem:[%s4 + $0x1c0] sm:$0xff]
  %v394 = vld [vmem:[%s4 + $0x1c8] sm:$0xff]
  %v395 = vld [vmem:[%s4 + $0x1d0] sm:$0xff]
  %v396 = vld [vmem:[%s4 + $0x1d8] sm:$0xff]
  %v397 = vld [vmem:[%s4 + $0x1e0] sm:$0xff]
  %v398 = vld [vmem:[%s4 + $0x1e8] sm:$0xff]
  %v399 = vld [vmem:[%s4 + $0x1f0] sm:$0xff]
  %v400 = vld [vmem:[%s4 + $0x1f8] sm:$0xff]
  %v465 = vunpack.c.l.b16 %v337
  %v466 = vunpack.c.h.b16 %v337
  %v467 = vunpack.c.l.b16 %v338
  %v468 = vunpack.c.h.b16 %v338
  %v469 = vunpack.c.l.b16 %v339
  %v470 = vunpack.c.h.b16 %v339
  %v471 = vunpack.c.l.b16 %v340
  %v472 = vunpack.c.h.b16 %v340
  %v473 = vunpack.c.l.b16 %v341
  %v474 = vunpack.c.h.b16 %v341
  %v475 = vunpack.c.l.b16 %v342
  %v476 = vunpack.c.h.b16 %v342
  %v477 = vunpack.c.l.b16 %v343
  %v478 = vunpack.c.h.b16 %v343
  %v479 = vunpack.c.l.b16 %v344
  %v480 = vunpack.c.h.b16 %v344
  %v481 = vunpack.c.l.b16 %v345
  %v482 = vunpack.c.h.b16 %v345
  %v483 = vunpack.c.l.b16 %v346
  %v484 = vunpack.c.h.b16 %v346
  %v485 = vunpack.c.l.b16 %v347
  %v486 = vunpack.c.h.b16 %v347
  %v487 = vunpack.c.l.b16 %v348
  %v488 = vunpack.c.h.b16 %v348
  %v489 = vunpack.c.l.b16 %v349
  %v490 = vunpack.c.h.b16 %v349
  %v491 = vunpack.c.l.b16 %v350
  %v492 = vunpack.c.h.b16 %v350
  %v493 = vunpack.c.l.b16 %v351
  %v494 = vunpack.c.h.b16 %v351
  %v495 = vunpack.c.l.b16 %v352
  %v496 = vunpack.c.h.b16 %v352
  %v497 = vunpack.c.l.b16 %v353
  %v498 = vunpack.c.h.b16 %v353
  %v499 = vunpack.c.l.b16 %v354
  %v500 = vunpack.c.h.b16 %v354
  %v501 = vunpack.c.l.b16 %v355
  %v502 = vunpack.c.h.b16 %v355
  %v503 = vunpack.c.l.b16 %v356
  %v504 = vunpack.c.h.b16 %v356
  %v505 = vunpack.c.l.b16 %v357
  %v506 = vunpack.c.h.b16 %v357
  %v507 = vunpack.c.l.b16 %v358
  %v508 = vunpack.c.h.b16 %v358
  %v509 = vunpack.c.l.b16 %v359
  %v510 = vunpack.c.h.b16 %v359
  %v511 = vunpack.c.l.b16 %v360
  %v512 = vunpack.c.h.b16 %v360
  %v513 = vunpack.c.l.b16 %v361
  %v514 = vunpack.c.h.b16 %v361
  %v515 = vunpack.c.l.b16 %v362
  %v516 = vunpack.c.h.b16 %v362
  %v517 = vunpack.c.l.b16 %v363
  %v518 = vunpack.c.h.b16 %v363
  %v519 = vunpack.c.l.b16 %v364
  %v520 = vunpack.c.h.b16 %v364
  %v521 = vunpack.c.l.b16 %v365
  %v522 = vunpack.c.h.b16 %v365
  %v523 = vunpack.c.l.b16 %v366
  %v524 = vunpack.c.h.b16 %v366
  %v525 = vunpack.c.l.b16 %v367
  %v526 = vunpack.c.h.b16 %v367
  %v527 = vunpack.c.l.b16 %v368
  %v528 = vunpack.c.h.b16 %v368
  %v529 = vunpack.c.l.b16 %v369
  %v530 = vunpack.c.h.b16 %v369
  %v531 = vunpack.c.l.b16 %v370
  %v532 = vunpack.c.h.b16 %v370
  %v533 = vunpack.c.l.b16 %v371
  %v534 = vunpack.c.h.b16 %v371
  %v535 = vunpack.c.l.b16 %v372
  %v536 = vunpack.c.h.b16 %v372
  %v537 = vunpack.c.l.b16 %v373
  %v538 = vunpack.c.h.b16 %v373
  %v539 = vunpack.c.l.b16 %v374
  %v540 = vunpack.c.h.b16 %v374
  %v541 = vunpack.c.l.b16 %v375
  %v542 = vunpack.c.h.b16 %v375
  %v543 = vunpack.c.l.b16 %v376
  %v544 = vunpack.c.h.b16 %v376
  %v545 = vunpack.c.l.b16 %v377
  %v546 = vunpack.c.h.b16 %v377
  %v547 = vunpack.c.l.b16 %v378
  %v548 = vunpack.c.h.b16 %v378
  %v549 = vunpack.c.l.b16 %v379
  %v550 = vunpack.c.h.b16 %v379
  %v551 = vunpack.c.l.b16 %v380
  %v552 = vunpack.c.h.b16 %v380
  %v553 = vunpack.c.l.b16 %v381
  %v554 = vunpack.c.h.b16 %v381
  %v555 = vunpack.c.l.b16 %v382
  %v556 = vunpack.c.h.b16 %v382
  %v557 = vunpack.c.l.b16 %v383
  %v558 = vunpack.c.h.b16 %v383
  %v559 = vunpack.c.l.b16 %v384
  %v560 = vunpack.c.h.b16 %v384
  %v561 = vunpack.c.l.b16 %v385
  %v562 = vunpack.c.h.b16 %v385
  %v563 = vunpack.c.l.b16 %v386
  %v564 = vunpack.c.h.b16 %v386
  %v565 = vunpack.c.l.b16 %v387
  %v566 = vunpack.c.h.b16 %v387
  %v567 = vunpack.c.l.b16 %v388
  %v568 = vunpack.c.h.b16 %v388
  %v569 = vunpack.c.l.b16 %v389
  %v570 = vunpack.c.h.b16 %v389
  %v571 = vunpack.c.l.b16 %v390
  %v572 = vunpack.c.h.b16 %v390
  %v573 = vunpack.c.l.b16 %v391
  %v574 = vunpack.c.h.b16 %v391
  %v575 = vunpack.c.l.b16 %v392
  %v576 = vunpack.c.h.b16 %v392
  %v577 = vunpack.c.l.b16 %v393
  %v578 = vunpack.c.h.b16 %v393
  %v579 = vunpack.c.l.b16 %v394
  %v580 = vunpack.c.h.b16 %v394
  %v581 = vunpack.c.l.b16 %v395
  %v582 = vunpack.c.h.b16 %v395
  %v583 = vunpack.c.l.b16 %v396
  %v584 = vunpack.c.h.b16 %v396
  %v585 = vunpack.c.l.b16 %v397
  %v586 = vunpack.c.h.b16 %v397
  %v587 = vunpack.c.l.b16 %v398
  %v588 = vunpack.c.h.b16 %v398
  %v589 = vunpack.c.l.b16 %v399
  %v590 = vunpack.c.h.b16 %v399
  %v591 = vunpack.c.l.b16 %v400
  %v592 = vunpack.c.h.b16 %v400
  %v593 = vpack.c.b16 %v469, %v465
  %v594 = vpack.c.b16 %v470, %v466
  %v595 = vpack.c.b16 %v471, %v467
  %v596 = vpack.c.b16 %v472, %v468
  %v597 = vpack.c.b16 %v477, %v473
  %v598 = vpack.c.b16 %v478, %v474
  %v599 = vpack.c.b16 %v479, %v475
  %v600 = vpack.c.b16 %v480, %v476
  %v601 = vpack.c.b16 %v485, %v481
  %v602 = vpack.c.b16 %v486, %v482
  %v603 = vpack.c.b16 %v487, %v483
  %v604 = vpack.c.b16 %v488, %v484
  %v605 = vpack.c.b16 %v493, %v489
  %v606 = vpack.c.b16 %v494, %v490
  %v607 = vpack.c.b16 %v495, %v491
  %v608 = vpack.c.b16 %v496, %v492
  %v609 = vpack.c.b16 %v501, %v497
  %v610 = vpack.c.b16 %v502, %v498
  %v611 = vpack.c.b16 %v503, %v499
  %v612 = vpack.c.b16 %v504, %v500
  %v613 = vpack.c.b16 %v509, %v505
  %v614 = vpack.c.b16 %v510, %v506
  %v615 = vpack.c.b16 %v511, %v507
  %v616 = vpack.c.b16 %v512, %v508
  %v617 = vpack.c.b16 %v517, %v513
  %v618 = vpack.c.b16 %v518, %v514
  %v619 = vpack.c.b16 %v519, %v515
  %v620 = vpack.c.b16 %v520, %v516
  %v621 = vpack.c.b16 %v525, %v521
  %v622 = vpack.c.b16 %v526, %v522
  %v623 = vpack.c.b16 %v527, %v523
  %v624 = vpack.c.b16 %v528, %v524
  %v625 = vpack.c.b16 %v533, %v529
  %v626 = vpack.c.b16 %v534, %v530
  %v627 = vpack.c.b16 %v535, %v531
  %v628 = vpack.c.b16 %v536, %v532
  %v629 = vpack.c.b16 %v541, %v537
  %v630 = vpack.c.b16 %v542, %v538
  %v631 = vpack.c.b16 %v543, %v539
  %v632 = vpack.c.b16 %v544, %v540
  %v633 = vpack.c.b16 %v549, %v545
  %v634 = vpack.c.b16 %v550, %v546
  %v635 = vpack.c.b16 %v551, %v547
  %v636 = vpack.c.b16 %v552, %v548
  %v637 = vpack.c.b16 %v557, %v553
  %v638 = vpack.c.b16 %v558, %v554
  %v639 = vpack.c.b16 %v559, %v555
  %v640 = vpack.c.b16 %v560, %v556
  %v641 = vpack.c.b16 %v565, %v561
  %v642 = vpack.c.b16 %v566, %v562
  %v643 = vpack.c.b16 %v567, %v563
  %v644 = vpack.c.b16 %v568, %v564
  %v645 = vpack.c.b16 %v573, %v569
  %v646 = vpack.c.b16 %v574, %v570
  %v647 = vpack.c.b16 %v575, %v571
  %v648 = vpack.c.b16 %v576, %v572
  %v649 = vpack.c.b16 %v581, %v577
  %v650 = vpack.c.b16 %v582, %v578
  %v651 = vpack.c.b16 %v583, %v579
  %v652 = vpack.c.b16 %v584, %v580
  %v653 = vpack.c.b16 %v589, %v585
  %v654 = vpack.c.b16 %v590, %v586
  %v655 = vpack.c.b16 %v591, %v587
  %v656 = vpack.c.b16 %v592, %v588
  %721 = vmatprep.subr.bf16.mxu0 %v622
  %722 = vmatpush1.bf16.msra.mxu0 %v621
  %723 = vmatprep.subr.bf16.mxu0 %v618
  %724 = vmatpush1.bf16.msra.mxu0 %v617
  %725 = vmatprep.subr.bf16.mxu0 %v614
  %726 = vmatpush1.bf16.msra.mxu0 %v613
  %727 = vmatprep.subr.bf16.mxu0 %v610
  %728 = vmatpush1.bf16.msra.mxu0 %v609
  %729 = vmatprep.subr.bf16.mxu0 %v606
  %730 = vmatpush1.bf16.msra.mxu0 %v605
  %731 = vmatprep.subr.bf16.mxu0 %v602
  %732 = vmatpush1.bf16.msra.mxu0 %v601
  %733 = vmatprep.subr.bf16.mxu0 %v598
  %734 = vmatpush1.bf16.msra.mxu0 %v597
  %735 = vmatprep.subr.bf16.mxu0 %v594
  %736 = vmatpush1.bf16.msra.mxu0 %v593
  %737 = vmatprep.subr.bf16.mxu0 %v654
  %738 = vmatpush2.bf16.msra.mxu0 %v653
  %739 = vmatprep.subr.bf16.mxu0 %v650
  %740 = vmatpush2.bf16.msra.mxu0 %v649
  %741 = vmatprep.subr.bf16.mxu0 %v646
  %742 = vmatpush2.bf16.msra.mxu0 %v645
  %743 = vmatprep.subr.bf16.mxu0 %v642
  %744 = vmatpush2.bf16.msra.mxu0 %v641
  %745 = vmatprep.subr.bf16.mxu0 %v638
  %746 = vmatpush2.bf16.msra.mxu0 %v637
  %747 = vmatprep.subr.bf16.mxu0 %v634
  %748 = vmatpush2.bf16.msra.mxu0 %v633
  %749 = vmatprep.subr.bf16.mxu0 %v630
  %750 = vmatpush2.bf16.msra.mxu0 %v629
  %751 = vmatprep.subr.bf16.mxu0 %v626
  %752 = vmatpush2.bf16.msra.mxu0 %v625
  %753 = vmatprep.mubr.bf16.mxu0 %v336
  %754 = vmatmul.mubr.bf16.gmra.mxu0 %v335
  %v755 = vpop.f32.mrf.mxu0
  %v756 = vadd.f32 %v46, %v755
  %v757 = vpop.f32.mrf.mxu0
  %v758 = vadd.f32 %v50, %v757
  %v759 = vpop.f32.mrf.mxu0
  %v760 = vpop.f32.mrf.mxu0
  %761 = vdwg.mxu0
  %762 = vmatprep.subr.bf16.mxu0 %v624
  %763 = vmatpush1.bf16.msra.mxu0 %v623
  %764 = vmatprep.subr.bf16.mxu0 %v620
  %765 = vmatpush1.bf16.msra.mxu0 %v619
  %766 = vmatprep.subr.bf16.mxu0 %v616
  %767 = vmatpush1.bf16.msra.mxu0 %v615
  %768 = vmatprep.subr.bf16.mxu0 %v612
  %769 = vmatpush1.bf16.msra.mxu0 %v611
  %770 = vmatprep.subr.bf16.mxu0 %v608
  %771 = vmatpush1.bf16.msra.mxu0 %v607
  %772 = vmatprep.subr.bf16.mxu0 %v604
  %773 = vmatpush1.bf16.msra.mxu0 %v603
  %774 = vmatprep.subr.bf16.mxu0 %v600
  %775 = vmatpush1.bf16.msra.mxu0 %v599
  %776 = vmatprep.subr.bf16.mxu0 %v596
  %777 = vmatpush1.bf16.msra.mxu0 %v595
  %778 = vmatprep.subr.bf16.mxu0 %v656
  %779 = vmatpush2.bf16.msra.mxu0 %v655
  %780 = vmatprep.subr.bf16.mxu0 %v652
  %781 = vmatpush2.bf16.msra.mxu0 %v651
  %782 = vmatprep.subr.bf16.mxu0 %v648
  %783 = vmatpush2.bf16.msra.mxu0 %v647
  %784 = vmatprep.subr.bf16.mxu0 %v644
  %785 = vmatpush2.bf16.msra.mxu0 %v643
  %786 = vmatprep.subr.bf16.mxu0 %v640
  %787 = vmatpush2.bf16.msra.mxu0 %v639
  %788 = vmatprep.subr.bf16.mxu0 %v636
  %789 = vmatpush2.bf16.msra.mxu0 %v635
  %790 = vmatprep.subr.bf16.mxu0 %v632
  %791 = vmatpush2.bf16.msra.mxu0 %v631
  %792 = vmatprep.subr.bf16.mxu0 %v628
  %793 = vmatpush2.bf16.msra.mxu0 %v627
  %794 = vmatprep.mubr.bf16.mxu0 %v336
  %795 = vmatmul.mubr.bf16.gmra.mxu0 %v335
  %v796 = vpop.f32.mrf.mxu0
  %v797 = vadd.f32 %v54, %v796
  %v798 = vpop.f32.mrf.mxu0
  %v799 = vadd.f32 %v58, %v798
  %v800 = vpop.f32.mrf.mxu0
  %v801 = vpop.f32.mrf.mxu0
  %802 = vdwg.mxu0
  %v803 = vxor.u32 %v756, 2147483648
  %v804 = vmul.f32 %v803, 1.442695
  %v805 = vpow.pop %v804
  %v806 = vadd.f32 %v805, 1.0
  %v807 = vrcp.pop %v806
  %v808 = vmul.f32 1.0, %v807
  %v809 = vxor.u32 %v758, 2147483648
  %v810 = vmul.f32 %v809, 1.442695
  %v811 = vpow.pop %v810
  %v812 = vadd.f32 %v811, 1.0
  %v813 = vrcp.pop %v812
  %v814 = vmul.f32 1.0, %v813
  %v815 = vmul.f32 %v808, %v799
  %v816 = vadd.f32 %v797, %v815
  %v817 = vtanh.pop %v816
  %v818 = vsub.f32 1.0, %v814
  %v819 = vmul.f32 %v818, %v817
  %v820 = vmul.f32 %v814, %v65
  %v821 = vadd.f32 %v819, %v820
  %v822 = vpack.c.bf16 %v821, %v821
  %823 = vst [vmem:[%s6] sm:$0xf] %v822
  %s824 = scalar_lea.vmem %s0, 12
  %v825 = vld [vmem:[%s824] sm:$0xff]
  %v826 = vld [vmem:[%s824 + $0x8] sm:$0xf]
  %v827 = vunpack.c.l.bf16 %v825
  %v828 = vunpack.c.h.bf16 %v825
  %v829 = vunpack.c.l.bf16 %v826
  %v830 = vld [vmem:[%s2] sm:$0xff]
  %v831 = vld [vmem:[%s2 + $0x8] sm:$0xf]
  %v832 = vld [vmem:[%s2 + $0xc] sm:$0xff]
  %v833 = vld [vmem:[%s2 + $0x14] sm:$0xf]
  %v834 = vld [vmem:[%s2 + $0x18] sm:$0xff]
  %v835 = vld [vmem:[%s2 + $0x20] sm:$0xf]
  %v836 = vld [vmem:[%s2 + $0x24] sm:$0xff]
  %v837 = vld [vmem:[%s2 + $0x2c] sm:$0xf]
  %v838 = vld [vmem:[%s2 + $0x30] sm:$0xff]
  %v839 = vld [vmem:[%s2 + $0x38] sm:$0xf]
  %v840 = vld [vmem:[%s2 + $0x3c] sm:$0xff]
  %v841 = vld [vmem:[%s2 + $0x44] sm:$0xf]
  %v842 = vld [vmem:[%s2 + $0x48] sm:$0xff]
  %v843 = vld [vmem:[%s2 + $0x50] sm:$0xf]
  %v844 = vld [vmem:[%s2 + $0x54] sm:$0xff]
  %v845 = vld [vmem:[%s2 + $0x5c] sm:$0xf]
  %v846 = vld [vmem:[%s2 + $0x60] sm:$0xff]
  %v847 = vld [vmem:[%s2 + $0x68] sm:$0xf]
  %v848 = vld [vmem:[%s2 + $0x6c] sm:$0xff]
  %v849 = vld [vmem:[%s2 + $0x74] sm:$0xf]
  %v850 = vld [vmem:[%s2 + $0x78] sm:$0xff]
  %v851 = vld [vmem:[%s2 + $0x80] sm:$0xf]
  %v852 = vld [vmem:[%s2 + $0x84] sm:$0xff]
  %v853 = vld [vmem:[%s2 + $0x8c] sm:$0xf]
  %v854 = vld [vmem:[%s2 + $0x90] sm:$0xff]
  %v855 = vld [vmem:[%s2 + $0x98] sm:$0xf]
  %v856 = vld [vmem:[%s2 + $0x9c] sm:$0xff]
  %v857 = vld [vmem:[%s2 + $0xa4] sm:$0xf]
  %v858 = vld [vmem:[%s2 + $0xa8] sm:$0xff]
  %v859 = vld [vmem:[%s2 + $0xb0] sm:$0xf]
  %v860 = vld [vmem:[%s2 + $0xb4] sm:$0xff]
  %v861 = vld [vmem:[%s2 + $0xbc] sm:$0xf]
  %v894 = vunpack.c.l.b16 %v830
  %v895 = vunpack.c.h.b16 %v830
  %v896 = vunpack.c.l.b16 %v831
  %v897 = vunpack.c.l.b16 %v832
  %v898 = vunpack.c.h.b16 %v832
  %v899 = vunpack.c.l.b16 %v833
  %v900 = vunpack.c.l.b16 %v834
  %v901 = vunpack.c.h.b16 %v834
  %v902 = vunpack.c.l.b16 %v835
  %v903 = vunpack.c.l.b16 %v836
  %v904 = vunpack.c.h.b16 %v836
  %v905 = vunpack.c.l.b16 %v837
  %v906 = vunpack.c.l.b16 %v838
  %v907 = vunpack.c.h.b16 %v838
  %v908 = vunpack.c.l.b16 %v839
  %v909 = vunpack.c.l.b16 %v840
  %v910 = vunpack.c.h.b16 %v840
  %v911 = vunpack.c.l.b16 %v841
  %v912 = vunpack.c.l.b16 %v842
  %v913 = vunpack.c.h.b16 %v842
  %v914 = vunpack.c.l.b16 %v843
  %v915 = vunpack.c.l.b16 %v844
  %v916 = vunpack.c.h.b16 %v844
  %v917 = vunpack.c.l.b16 %v845
  %v918 = vunpack.c.l.b16 %v846
  %v919 = vunpack.c.h.b16 %v846
  %v920 = vunpack.c.l.b16 %v847
  %v921 = vunpack.c.l.b16 %v848
  %v922 = vunpack.c.h.b16 %v848
  %v923 = vunpack.c.l.b16 %v849
  %v924 = vunpack.c.l.b16 %v850
  %v925 = vunpack.c.h.b16 %v850
  %v926 = vunpack.c.l.b16 %v851
  %v927 = vunpack.c.l.b16 %v852
  %v928 = vunpack.c.h.b16 %v852
  %v929 = vunpack.c.l.b16 %v853
  %v930 = vunpack.c.l.b16 %v854
  %v931 = vunpack.c.h.b16 %v854
  %v932 = vunpack.c.l.b16 %v855
  %v933 = vunpack.c.l.b16 %v856
  %v934 = vunpack.c.h.b16 %v856
  %v935 = vunpack.c.l.b16 %v857
  %v936 = vunpack.c.l.b16 %v858
  %v937 = vunpack.c.h.b16 %v858
  %v938 = vunpack.c.l.b16 %v859
  %v939 = vunpack.c.l.b16 %v860
  %v940 = vunpack.c.h.b16 %v860
  %v941 = vunpack.c.l.b16 %v861
  %v942 = vpack.c.b16 %v897, %v894
  %v943 = vpack.c.b16 %v898, %v895
  %v944 = vpack.c.b16 %v899, %v896
  %v945 = vpack.c.b16 %v903, %v900
  %v946 = vpack.c.b16 %v904, %v901
  %v947 = vpack.c.b16 %v905, %v902
  %v948 = vpack.c.b16 %v909, %v906
  %v949 = vpack.c.b16 %v910, %v907
  %v950 = vpack.c.b16 %v911, %v908
  %v951 = vpack.c.b16 %v915, %v912
  %v952 = vpack.c.b16 %v916, %v913
  %v953 = vpack.c.b16 %v917, %v914
  %v954 = vpack.c.b16 %v921, %v918
  %v955 = vpack.c.b16 %v922, %v919
  %v956 = vpack.c.b16 %v923, %v920
  %v957 = vpack.c.b16 %v927, %v924
  %v958 = vpack.c.b16 %v928, %v925
  %v959 = vpack.c.b16 %v929, %v926
  %v960 = vpack.c.b16 %v933, %v930
  %v961 = vpack.c.b16 %v934, %v931
  %v962 = vpack.c.b16 %v935, %v932
  %v963 = vpack.c.b16 %v939, %v936
  %v964 = vpack.c.b16 %v940, %v937
  %v965 = vpack.c.b16 %v941, %v938
  %990 = vmatprep.subr.bf16.mxu0 %v964
  %991 = vmatpush1.bf16.msra.mxu0 %v963
  %992 = vmatprep.subr.bf16.mxu0 %v961
  %993 = vmatpush1.bf16.msra.mxu0 %v960
  %994 = vmatprep.subr.bf16.mxu0 %v958
  %995 = vmatpush1.bf16.msra.mxu0 %v957
  %996 = vmatprep.subr.bf16.mxu0 %v955
  %997 = vmatpush1.bf16.msra.mxu0 %v954
  %998 = vmatprep.subr.bf16.mxu0 %v952
  %999 = vmatpush1.bf16.msra.mxu0 %v951
  %1000 = vmatprep.subr.bf16.mxu0 %v949
  %1001 = vmatpush1.bf16.msra.mxu0 %v948
  %1002 = vmatprep.subr.bf16.mxu0 %v946
  %1003 = vmatpush1.bf16.msra.mxu0 %v945
  %1004 = vmatprep.subr.bf16.mxu0 %v943
  %1005 = vmatpush1.bf16.msra.mxu0 %v942
  %1006 = vmatprep.subr.bf16.mxu0 0
  %1007 = vmatpush2.bf16.msra.mxu0 0
  %1008 = vmatprep.subr.bf16.mxu0 0
  %1009 = vmatpush2.bf16.msra.mxu0 0
  %1010 = vmatprep.subr.bf16.mxu0 0
  %1011 = vmatpush2.bf16.msra.mxu0 0
  %1012 = vmatprep.subr.bf16.mxu0 0
  %1013 = vmatpush2.bf16.msra.mxu0 0
  %1014 = vmatprep.subr.bf16.mxu0 0
  %1015 = vmatpush2.bf16.msra.mxu0 0
  %1016 = vmatprep.subr.bf16.mxu0 0
  %1017 = vmatpush2.bf16.msra.mxu0 0
  %1018 = vmatprep.subr.bf16.mxu0 0
  %1019 = vmatpush2.bf16.msra.mxu0 0
  %1020 = vmatprep.subr.bf16.mxu0 0
  %1021 = vmatpush2.bf16.msra.mxu0 0
  %1022 = vmatprep.mubr.bf16.mxu0 0
  %1023 = vmatmul.mubr.bf16.gmra.mxu0 %v335
  %v1024 = vpop.f32.mrf.mxu0
  %v1025 = vadd.f32 0.0, %v1024
  %v1026 = vpop.f32.mrf.mxu0
  %v1027 = vadd.f32 0.0, %v1026
  %v1028 = vpop.f32.mrf.mxu0
  %v1029 = vpop.f32.mrf.mxu0
  %1030 = vdwg.mxu0
  %1031 = vmatprep.subr.bf16.mxu0 0
  %1032 = vmatpush1.bf16.msra.mxu0 %v965
  %1033 = vmatprep.subr.bf16.mxu0 0
  %1034 = vmatpush1.bf16.msra.mxu0 %v962
  %1035 = vmatprep.subr.bf16.mxu0 0
  %1036 = vmatpush1.bf16.msra.mxu0 %v959
  %1037 = vmatprep.subr.bf16.mxu0 0
  %1038 = vmatpush1.bf16.msra.mxu0 %v956
  %1039 = vmatprep.subr.bf16.mxu0 0
  %1040 = vmatpush1.bf16.msra.mxu0 %v953
  %1041 = vmatprep.subr.bf16.mxu0 0
  %1042 = vmatpush1.bf16.msra.mxu0 %v950
  %1043 = vmatprep.subr.bf16.mxu0 0
  %1044 = vmatpush1.bf16.msra.mxu0 %v947
  %1045 = vmatprep.subr.bf16.mxu0 0
  %1046 = vmatpush1.bf16.msra.mxu0 %v944
  %1047 = vmatprep.subr.bf16.mxu0 0
  %1048 = vmatpush2.bf16.msra.mxu0 0
  %1049 = vmatprep.subr.bf16.mxu0 0
  %1050 = vmatpush2.bf16.msra.mxu0 0
  %1051 = vmatprep.subr.bf16.mxu0 0
  %1052 = vmatpush2.bf16.msra.mxu0 0
  %1053 = vmatprep.subr.bf16.mxu0 0
  %1054 = vmatpush2.bf16.msra.mxu0 0
  %1055 = vmatprep.subr.bf16.mxu0 0
  %1056 = vmatpush2.bf16.msra.mxu0 0
  %1057 = vmatprep.subr.bf16.mxu0 0
  %1058 = vmatpush2.bf16.msra.mxu0 0
  %1059 = vmatprep.subr.bf16.mxu0 0
  %1060 = vmatpush2.bf16.msra.mxu0 0
  %1061 = vmatprep.subr.bf16.mxu0 0
  %1062 = vmatpush2.bf16.msra.mxu0 0
  %1063 = vmatprep.mubr.bf16.mxu0 0
  %1064 = vmatmul.mubr.bf16.gmra.mxu0 %v335
  %v1065 = vpop.f32.mrf.mxu0
  %v1066 = vadd.f32 0.0, %v1065
  %v1067 = vpop.f32.mrf.mxu0
  %v1068 = vpop.f32.mrf.mxu0
  %v1069 = vpop.f32.mrf.mxu0
  %1070 = vdwg.mxu0
  %v1071 = vadd.f32 %v827, %v1025
  %v1072 = vxor.u32 %v1071, 2147483648
  %v1073 = vmul.f32 %v1072, 1.442695
  %v1074 = vpow.pop %v1073
  %v1075 = vadd.f32 %v1074, 1.0
  %v1076 = vrcp.pop %v1075
  %v1077 = vmul.f32 1.0, %v1076
  %v1078 = vadd.f32 %v828, %v1027
  %v1079 = vxor.u32 %v1078, 2147483648
  %v1080 = vmul.f32 %v1079, 1.442695
  %v1081 = vpow.pop %v1080
  %v1082 = vadd.f32 %v1081, 1.0
  %v1083 = vrcp.pop %v1082
  %v1084 = vmul.f32 1.0, %v1083
  %v1085 = vadd.f32 %v1066, %v39
  %v1086 = vmul.f32 %v1077, %v1085
  %v1087 = vadd.f32 %v829, %v1086
  %v1088 = vtanh.pop %v1087
  %v1089 = vsub.f32 1.0, %v1084
  %v1090 = vmul.f32 %v1089, %v1088
  %v1091 = vmul.f32 %v1084, %v334
  %v1092 = vadd.f32 %v1090, %v1091
  %v1093 = vpack.c.bf16 %v1092, %v1092
  %v1094 = vld [vmem:[%s4] sm:$0xff]
  %v1095 = vld [vmem:[%s4 + $0x8] sm:$0xff]
  %v1096 = vld [vmem:[%s4 + $0x10] sm:$0xff]
  %v1097 = vld [vmem:[%s4 + $0x18] sm:$0xff]
  %v1098 = vld [vmem:[%s4 + $0x20] sm:$0xff]
  %v1099 = vld [vmem:[%s4 + $0x28] sm:$0xff]
  %v1100 = vld [vmem:[%s4 + $0x30] sm:$0xff]
  %v1101 = vld [vmem:[%s4 + $0x38] sm:$0xff]
  %v1102 = vld [vmem:[%s4 + $0x40] sm:$0xff]
  %v1103 = vld [vmem:[%s4 + $0x48] sm:$0xff]
  %v1104 = vld [vmem:[%s4 + $0x50] sm:$0xff]
  %v1105 = vld [vmem:[%s4 + $0x58] sm:$0xff]
  %v1106 = vld [vmem:[%s4 + $0x60] sm:$0xff]
  %v1107 = vld [vmem:[%s4 + $0x68] sm:$0xff]
  %v1108 = vld [vmem:[%s4 + $0x70] sm:$0xff]
  %v1109 = vld [vmem:[%s4 + $0x78] sm:$0xff]
  %v1110 = vld [vmem:[%s4 + $0x80] sm:$0xff]
  %v1111 = vld [vmem:[%s4 + $0x88] sm:$0xff]
  %v1112 = vld [vmem:[%s4 + $0x90] sm:$0xff]
  %v1113 = vld [vmem:[%s4 + $0x98] sm:$0xff]
  %v1114 = vld [vmem:[%s4 + $0xa0] sm:$0xff]
  %v1115 = vld [vmem:[%s4 + $0xa8] sm:$0xff]
  %v1116 = vld [vmem:[%s4 + $0xb0] sm:$0xff]
  %v1117 = vld [vmem:[%s4 + $0xb8] sm:$0xff]
  %v1118 = vld [vmem:[%s4 + $0xc0] sm:$0xff]
  %v1119 = vld [vmem:[%s4 + $0xc8] sm:$0xff]
  %v1120 = vld [vmem:[%s4 + $0xd0] sm:$0xff]
  %v1121 = vld [vmem:[%s4 + $0xd8] sm:$0xff]
  %v1122 = vld [vmem:[%s4 + $0xe0] sm:$0xff]
  %v1123 = vld [vmem:[%s4 + $0xe8] sm:$0xff]
  %v1124 = vld [vmem:[%s4 + $0xf0] sm:$0xff]
  %v1125 = vld [vmem:[%s4 + $0xf8] sm:$0xff]
  %v1126 = vld [vmem:[%s4 + $0x100] sm:$0xff]
  %v1127 = vld [vmem:[%s4 + $0x108] sm:$0xff]
  %v1128 = vld [vmem:[%s4 + $0x110] sm:$0xff]
  %v1129 = vld [vmem:[%s4 + $0x118] sm:$0xff]
  %v1130 = vld [vmem:[%s4 + $0x120] sm:$0xff]
  %v1131 = vld [vmem:[%s4 + $0x128] sm:$0xff]
  %v1132 = vld [vmem:[%s4 + $0x130] sm:$0xff]
  %v1133 = vld [vmem:[%s4 + $0x138] sm:$0xff]
  %v1134 = vld [vmem:[%s4 + $0x140] sm:$0xff]
  %v1135 = vld [vmem:[%s4 + $0x148] sm:$0xff]
  %v1136 = vld [vmem:[%s4 + $0x150] sm:$0xff]
  %v1137 = vld [vmem:[%s4 + $0x158] sm:$0xff]
  %v1138 = vld [vmem:[%s4 + $0x160] sm:$0xff]
  %v1139 = vld [vmem:[%s4 + $0x168] sm:$0xff]
  %v1140 = vld [vmem:[%s4 + $0x170] sm:$0xff]
  %v1141 = vld [vmem:[%s4 + $0x178] sm:$0xff]
  %v1142 = vld [vmem:[%s4 + $0x180] sm:$0xff]
  %v1143 = vld [vmem:[%s4 + $0x188] sm:$0xff]
  %v1144 = vld [vmem:[%s4 + $0x190] sm:$0xff]
  %v1145 = vld [vmem:[%s4 + $0x198] sm:$0xff]
  %v1146 = vld [vmem:[%s4 + $0x1a0] sm:$0xff]
  %v1147 = vld [vmem:[%s4 + $0x1a8] sm:$0xff]
  %v1148 = vld [vmem:[%s4 + $0x1b0] sm:$0xff]
  %v1149 = vld [vmem:[%s4 + $0x1b8] sm:$0xff]
  %v1150 = vld [vmem:[%s4 + $0x1c0] sm:$0xff]
  %v1151 = vld [vmem:[%s4 + $0x1c8] sm:$0xff]
  %v1152 = vld [vmem:[%s4 + $0x1d0] sm:$0xff]
  %v1153 = vld [vmem:[%s4 + $0x1d8] sm:$0xff]
  %v1154 = vld [vmem:[%s4 + $0x1e0] sm:$0xff]
  %v1155 = vld [vmem:[%s4 + $0x1e8] sm:$0xff]
  %v1156 = vld [vmem:[%s4 + $0x1f0] sm:$0xff]
  %v1157 = vld [vmem:[%s4 + $0x1f8] sm:$0xff]
  %v1222 = vunpack.c.l.b16 %v1094
  %v1223 = vunpack.c.h.b16 %v1094
  %v1224 = vunpack.c.l.b16 %v1095
  %v1225 = vunpack.c.h.b16 %v1095
  %v1226 = vunpack.c.l.b16 %v1096
  %v1227 = vunpack.c.h.b16 %v1096
  %v1228 = vunpack.c.l.b16 %v1097
  %v1229 = vunpack.c.h.b16 %v1097
  %v1230 = vunpack.c.l.b16 %v1098
  %v1231 = vunpack.c.h.b16 %v1098
  %v1232 = vunpack.c.l.b16 %v1099
  %v1233 = vunpack.c.h.b16 %v1099
  %v1234 = vunpack.c.l.b16 %v1100
  %v1235 = vunpack.c.h.b16 %v1100
  %v1236 = vunpack.c.l.b16 %v1101
  %v1237 = vunpack.c.h.b16 %v1101
  %v1238 = vunpack.c.l.b16 %v1102
  %v1239 = vunpack.c.h.b16 %v1102
  %v1240 = vunpack.c.l.b16 %v1103
  %v1241 = vunpack.c.h.b16 %v1103
  %v1242 = vunpack.c.l.b16 %v1104
  %v1243 = vunpack.c.h.b16 %v1104
  %v1244 = vunpack.c.l.b16 %v1105
  %v1245 = vunpack.c.h.b16 %v1105
  %v1246 = vunpack.c.l.b16 %v1106
  %v1247 = vunpack.c.h.b16 %v1106
  %v1248 = vunpack.c.l.b16 %v1107
  %v1249 = vunpack.c.h.b16 %v1107
  %v1250 = vunpack.c.l.b16 %v1108
  %v1251 = vunpack.c.h.b16 %v1108
  %v1252 = vunpack.c.l.b16 %v1109
  %v1253 = vunpack.c.h.b16 %v1109
  %v1254 = vunpack.c.l.b16 %v1110
  %v1255 = vunpack.c.h.b16 %v1110
  %v1256 = vunpack.c.l.b16 %v1111
  %v1257 = vunpack.c.h.b16 %v1111
  %v1258 = vunpack.c.l.b16 %v1112
  %v1259 = vunpack.c.h.b16 %v1112
  %v1260 = vunpack.c.l.b16 %v1113
  %v1261 = vunpack.c.h.b16 %v1113
  %v1262 = vunpack.c.l.b16 %v1114
  %v1263 = vunpack.c.h.b16 %v1114
  %v1264 = vunpack.c.l.b16 %v1115
  %v1265 = vunpack.c.h.b16 %v1115
  %v1266 = vunpack.c.l.b16 %v1116
  %v1267 = vunpack.c.h.b16 %v1116
  %v1268 = vunpack.c.l.b16 %v1117
  %v1269 = vunpack.c.h.b16 %v1117
  %v1270 = vunpack.c.l.b16 %v1118
  %v1271 = vunpack.c.h.b16 %v1118
  %v1272 = vunpack.c.l.b16 %v1119
  %v1273 = vunpack.c.h.b16 %v1119
  %v1274 = vunpack.c.l.b16 %v1120
  %v1275 = vunpack.c.h.b16 %v1120
  %v1276 = vunpack.c.l.b16 %v1121
  %v1277 = vunpack.c.h.b16 %v1121
  %v1278 = vunpack.c.l.b16 %v1122
  %v1279 = vunpack.c.h.b16 %v1122
  %v1280 = vunpack.c.l.b16 %v1123
  %v1281 = vunpack.c.h.b16 %v1123
  %v1282 = vunpack.c.l.b16 %v1124
  %v1283 = vunpack.c.h.b16 %v1124
  %v1284 = vunpack.c.l.b16 %v1125
  %v1285 = vunpack.c.h.b16 %v1125
  %v1286 = vunpack.c.l.b16 %v1126
  %v1287 = vunpack.c.h.b16 %v1126
  %v1288 = vunpack.c.l.b16 %v1127
  %v1289 = vunpack.c.h.b16 %v1127
  %v1290 = vunpack.c.l.b16 %v1128
  %v1291 = vunpack.c.h.b16 %v1128
  %v1292 = vunpack.c.l.b16 %v1129
  %v1293 = vunpack.c.h.b16 %v1129
  %v1294 = vunpack.c.l.b16 %v1130
  %v1295 = vunpack.c.h.b16 %v1130
  %v1296 = vunpack.c.l.b16 %v1131
  %v1297 = vunpack.c.h.b16 %v1131
  %v1298 = vunpack.c.l.b16 %v1132
  %v1299 = vunpack.c.h.b16 %v1132
  %v1300 = vunpack.c.l.b16 %v1133
  %v1301 = vunpack.c.h.b16 %v1133
  %v1302 = vunpack.c.l.b16 %v1134
  %v1303 = vunpack.c.h.b16 %v1134
  %v1304 = vunpack.c.l.b16 %v1135
  %v1305 = vunpack.c.h.b16 %v1135
  %v1306 = vunpack.c.l.b16 %v1136
  %v1307 = vunpack.c.h.b16 %v1136
  %v1308 = vunpack.c.l.b16 %v1137
  %v1309 = vunpack.c.h.b16 %v1137
  %v1310 = vunpack.c.l.b16 %v1138
  %v1311 = vunpack.c.h.b16 %v1138
  %v1312 = vunpack.c.l.b16 %v1139
  %v1313 = vunpack.c.h.b16 %v1139
  %v1314 = vunpack.c.l.b16 %v1140
  %v1315 = vunpack.c.h.b16 %v1140
  %v1316 = vunpack.c.l.b16 %v1141
  %v1317 = vunpack.c.h.b16 %v1141
  %v1318 = vunpack.c.l.b16 %v1142
  %v1319 = vunpack.c.h.b16 %v1142
  %v1320 = vunpack.c.l.b16 %v1143
  %v1321 = vunpack.c.h.b16 %v1143
  %v1322 = vunpack.c.l.b16 %v1144
  %v1323 = vunpack.c.h.b16 %v1144
  %v1324 = vunpack.c.l.b16 %v1145
  %v1325 = vunpack.c.h.b16 %v1145
  %v1326 = vunpack.c.l.b16 %v1146
  %v1327 = vunpack.c.h.b16 %v1146
  %v1328 = vunpack.c.l.b16 %v1147
  %v1329 = vunpack.c.h.b16 %v1147
  %v1330 = vunpack.c.l.b16 %v1148
  %v1331 = vunpack.c.h.b16 %v1148
  %v1332 = vunpack.c.l.b16 %v1149
  %v1333 = vunpack.c.h.b16 %v1149
  %v1334 = vunpack.c.l.b16 %v1150
  %v1335 = vunpack.c.h.b16 %v1150
  %v1336 = vunpack.c.l.b16 %v1151
  %v1337 = vunpack.c.h.b16 %v1151
  %v1338 = vunpack.c.l.b16 %v1152
  %v1339 = vunpack.c.h.b16 %v1152
  %v1340 = vunpack.c.l.b16 %v1153
  %v1341 = vunpack.c.h.b16 %v1153
  %v1342 = vunpack.c.l.b16 %v1154
  %v1343 = vunpack.c.h.b16 %v1154
  %v1344 = vunpack.c.l.b16 %v1155
  %v1345 = vunpack.c.h.b16 %v1155
  %v1346 = vunpack.c.l.b16 %v1156
  %v1347 = vunpack.c.h.b16 %v1156
  %v1348 = vunpack.c.l.b16 %v1157
  %v1349 = vunpack.c.h.b16 %v1157
  %v1350 = vpack.c.b16 %v1226, %v1222
  %v1351 = vpack.c.b16 %v1227, %v1223
  %v1352 = vpack.c.b16 %v1228, %v1224
  %v1353 = vpack.c.b16 %v1229, %v1225
  %v1354 = vpack.c.b16 %v1234, %v1230
  %v1355 = vpack.c.b16 %v1235, %v1231
  %v1356 = vpack.c.b16 %v1236, %v1232
  %v1357 = vpack.c.b16 %v1237, %v1233
  %v1358 = vpack.c.b16 %v1242, %v1238
  %v1359 = vpack.c.b16 %v1243, %v1239
  %v1360 = vpack.c.b16 %v1244, %v1240
  %v1361 = vpack.c.b16 %v1245, %v1241
  %v1362 = vpack.c.b16 %v1250, %v1246
  %v1363 = vpack.c.b16 %v1251, %v1247
  %v1364 = vpack.c.b16 %v1252, %v1248
  %v1365 = vpack.c.b16 %v1253, %v1249
  %v1366 = vpack.c.b16 %v1258, %v1254
  %v1367 = vpack.c.b16 %v1259, %v1255
  %v1368 = vpack.c.b16 %v1260, %v1256
  %v1369 = vpack.c.b16 %v1261, %v1257
  %v1370 = vpack.c.b16 %v1266, %v1262
  %v1371 = vpack.c.b16 %v1267, %v1263
  %v1372 = vpack.c.b16 %v1268, %v1264
  %v1373 = vpack.c.b16 %v1269, %v1265
  %v1374 = vpack.c.b16 %v1274, %v1270
  %v1375 = vpack.c.b16 %v1275, %v1271
  %v1376 = vpack.c.b16 %v1276, %v1272
  %v1377 = vpack.c.b16 %v1277, %v1273
  %v1378 = vpack.c.b16 %v1282, %v1278
  %v1379 = vpack.c.b16 %v1283, %v1279
  %v1380 = vpack.c.b16 %v1284, %v1280
  %v1381 = vpack.c.b16 %v1285, %v1281
  %v1382 = vpack.c.b16 %v1290, %v1286
  %v1383 = vpack.c.b16 %v1291, %v1287
  %v1384 = vpack.c.b16 %v1292, %v1288
  %v1385 = vpack.c.b16 %v1293, %v1289
  %v1386 = vpack.c.b16 %v1298, %v1294
  %v1387 = vpack.c.b16 %v1299, %v1295
  %v1388 = vpack.c.b16 %v1300, %v1296
  %v1389 = vpack.c.b16 %v1301, %v1297
  %v1390 = vpack.c.b16 %v1306, %v1302
  %v1391 = vpack.c.b16 %v1307, %v1303
  %v1392 = vpack.c.b16 %v1308, %v1304
  %v1393 = vpack.c.b16 %v1309, %v1305
  %v1394 = vpack.c.b16 %v1314, %v1310
  %v1395 = vpack.c.b16 %v1315, %v1311
  %v1396 = vpack.c.b16 %v1316, %v1312
  %v1397 = vpack.c.b16 %v1317, %v1313
  %v1398 = vpack.c.b16 %v1322, %v1318
  %v1399 = vpack.c.b16 %v1323, %v1319
  %v1400 = vpack.c.b16 %v1324, %v1320
  %v1401 = vpack.c.b16 %v1325, %v1321
  %v1402 = vpack.c.b16 %v1330, %v1326
  %v1403 = vpack.c.b16 %v1331, %v1327
  %v1404 = vpack.c.b16 %v1332, %v1328
  %v1405 = vpack.c.b16 %v1333, %v1329
  %v1406 = vpack.c.b16 %v1338, %v1334
  %v1407 = vpack.c.b16 %v1339, %v1335
  %v1408 = vpack.c.b16 %v1340, %v1336
  %v1409 = vpack.c.b16 %v1341, %v1337
  %v1410 = vpack.c.b16 %v1346, %v1342
  %v1411 = vpack.c.b16 %v1347, %v1343
  %v1412 = vpack.c.b16 %v1348, %v1344
  %v1413 = vpack.c.b16 %v1349, %v1345
  %1478 = vmatprep.subr.bf16.mxu0 %v1379
  %1479 = vmatpush1.bf16.msra.mxu0 %v1378
  %1480 = vmatprep.subr.bf16.mxu0 %v1375
  %1481 = vmatpush1.bf16.msra.mxu0 %v1374
  %1482 = vmatprep.subr.bf16.mxu0 %v1371
  %1483 = vmatpush1.bf16.msra.mxu0 %v1370
  %1484 = vmatprep.subr.bf16.mxu0 %v1367
  %1485 = vmatpush1.bf16.msra.mxu0 %v1366
  %1486 = vmatprep.subr.bf16.mxu0 %v1363
  %1487 = vmatpush1.bf16.msra.mxu0 %v1362
  %1488 = vmatprep.subr.bf16.mxu0 %v1359
  %1489 = vmatpush1.bf16.msra.mxu0 %v1358
  %1490 = vmatprep.subr.bf16.mxu0 %v1355
  %1491 = vmatpush1.bf16.msra.mxu0 %v1354
  %1492 = vmatprep.subr.bf16.mxu0 %v1351
  %1493 = vmatpush1.bf16.msra.mxu0 %v1350
  %1494 = vmatprep.subr.bf16.mxu0 %v1411
  %1495 = vmatpush2.bf16.msra.mxu0 %v1410
  %1496 = vmatprep.subr.bf16.mxu0 %v1407
  %1497 = vmatpush2.bf16.msra.mxu0 %v1406
  %1498 = vmatprep.subr.bf16.mxu0 %v1403
  %1499 = vmatpush2.bf16.msra.mxu0 %v1402
  %1500 = vmatprep.subr.bf16.mxu0 %v1399
  %1501 = vmatpush2.bf16.msra.mxu0 %v1398
  %1502 = vmatprep.subr.bf16.mxu0 %v1395
  %1503 = vmatpush2.bf16.msra.mxu0 %v1394
  %1504 = vmatprep.subr.bf16.mxu0 %v1391
  %1505 = vmatpush2.bf16.msra.mxu0 %v1390
  %1506 = vmatprep.subr.bf16.mxu0 %v1387
  %1507 = vmatpush2.bf16.msra.mxu0 %v1386
  %1508 = vmatprep.subr.bf16.mxu0 %v1383
  %1509 = vmatpush2.bf16.msra.mxu0 %v1382
  %1510 = vmatprep.mubr.bf16.mxu0 %v822
  %1511 = vmatmul.mubr.bf16.gmra.mxu0 %v1093
  %v1512 = vpop.f32.mrf.mxu0
  %v1513 = vadd.f32 %v46, %v1512
  %v1514 = vpop.f32.mrf.mxu0
  %v1515 = vadd.f32 %v50, %v1514
  %v1516 = vpop.f32.mrf.mxu0
  %v1517 = vpop.f32.mrf.mxu0
  %1518 = vdwg.mxu0
  %1519 = vmatprep.subr.bf16.mxu0 %v1381
  %1520 = vmatpush1.bf16.msra.mxu0 %v1380
  %1521 = vmatprep.subr.bf16.mxu0 %v1377
  %1522 = vmatpush1.bf16.msra.mxu0 %v1376
  %1523 = vmatprep.subr.bf16.mxu0 %v1373
  %1524 = vmatpush1.bf16.msra.mxu0 %v1372
  %1525 = vmatprep.subr.bf16.mxu0 %v1369
  %1526 = vmatpush1.bf16.msra.mxu0 %v1368
  %1527 = vmatprep.subr.bf16.mxu0 %v1365
  %1528 = vmatpush1.bf16.msra.mxu0 %v1364
  %1529 = vmatprep.subr.bf16.mxu0 %v1361
  %1530 = vmatpush1.bf16.msra.mxu0 %v1360
  %1531 = vmatprep.subr.bf16.mxu0 %v1357
  %1532 = vmatpush1.bf16.msra.mxu0 %v1356
  %1533 = vmatprep.subr.bf16.mxu0 %v1353
  %1534 = vmatpush1.bf16.msra.mxu0 %v1352
  %1535 = vmatprep.subr.bf16.mxu0 %v1413
  %1536 = vmatpush2.bf16.msra.mxu0 %v1412
  %1537 = vmatprep.subr.bf16.mxu0 %v1409
  %1538 = vmatpush2.bf16.msra.mxu0 %v1408
  %1539 = vmatprep.subr.bf16.mxu0 %v1405
  %1540 = vmatpush2.bf16.msra.mxu0 %v1404
  %1541 = vmatprep.subr.bf16.mxu0 %v1401
  %1542 = vmatpush2.bf16.msra.mxu0 %v1400
  %1543 = vmatprep.subr.bf16.mxu0 %v1397
  %1544 = vmatpush2.bf16.msra.mxu0 %v1396
  %1545 = vmatprep.subr.bf16.mxu0 %v1393
  %1546 = vmatpush2.bf16.msra.mxu0 %v1392
  %1547 = vmatprep.subr.bf16.mxu0 %v1389
  %1548 = vmatpush2.bf16.msra.mxu0 %v1388
  %1549 = vmatprep.subr.bf16.mxu0 %v1385
  %1550 = vmatpush2.bf16.msra.mxu0 %v1384
  %1551 = vmatprep.mubr.bf16.mxu0 %v822
  %1552 = vmatmul.mubr.bf16.gmra.mxu0 %v1093
  %v1553 = vpop.f32.mrf.mxu0
  %v1554 = vadd.f32 %v54, %v1553
  %v1555 = vpop.f32.mrf.mxu0
  %v1556 = vadd.f32 %v58, %v1555
  %v1557 = vpop.f32.mrf.mxu0
  %v1558 = vpop.f32.mrf.mxu0
  %1559 = vdwg.mxu0
  %v1560 = vxor.u32 %v1513, 2147483648
  %v1561 = vmul.f32 %v1560, 1.442695
  %v1562 = vpow.pop %v1561
  %v1563 = vadd.f32 %v1562, 1.0
  %v1564 = vrcp.pop %v1563
  %v1565 = vmul.f32 1.0, %v1564
  %v1566 = vxor.u32 %v1515, 2147483648
  %v1567 = vmul.f32 %v1566, 1.442695
  %v1568 = vpow.pop %v1567
  %v1569 = vadd.f32 %v1568, 1.0
  %v1570 = vrcp.pop %v1569
  %v1571 = vmul.f32 1.0, %v1570
  %v1572 = vmul.f32 %v1565, %v1556
  %v1573 = vadd.f32 %v1554, %v1572
  %v1574 = vtanh.pop %v1573
  %v1575 = vsub.f32 1.0, %v1571
  %v1576 = vmul.f32 %v1575, %v1574
  %v1577 = vmul.f32 %v1571, %v821
  %v1578 = vadd.f32 %v1576, %v1577
  %v1579 = vpack.c.bf16 %v1578, %v1578
  %s1580 = scalar_lea.vmem %s6, 4
  %1581 = vst [vmem:[%s1580] sm:$0xf] %v1579
  %s1582 = scalar_lea.vmem %s0, 24
  %v1583 = vld [vmem:[%s1582] sm:$0xff]
  %v1584 = vld [vmem:[%s1582 + $0x8] sm:$0xf]
  %v1585 = vunpack.c.l.bf16 %v1583
  %v1586 = vunpack.c.h.bf16 %v1583
  %v1587 = vunpack.c.l.bf16 %v1584
  %v1588 = vld [vmem:[%s2] sm:$0xff]
  %v1589 = vld [vmem:[%s2 + $0x8] sm:$0xf]
  %v1590 = vld [vmem:[%s2 + $0xc] sm:$0xff]
  %v1591 = vld [vmem:[%s2 + $0x14] sm:$0xf]
  %v1592 = vld [vmem:[%s2 + $0x18] sm:$0xff]
  %v1593 = vld [vmem:[%s2 + $0x20] sm:$0xf]
  %v1594 = vld [vmem:[%s2 + $0x24] sm:$0xff]
  %v1595 = vld [vmem:[%s2 + $0x2c] sm:$0xf]
  %v1596 = vld [vmem:[%s2 + $0x30] sm:$0xff]
  %v1597 = vld [vmem:[%s2 + $0x38] sm:$0xf]
  %v1598 = vld [vmem:[%s2 + $0x3c] sm:$0xff]
  %v1599 = vld [vmem:[%s2 + $0x44] sm:$0xf]
  %v1600 = vld [vmem:[%s2 + $0x48] sm:$0xff]
  %v1601 = vld [vmem:[%s2 + $0x50] sm:$0xf]
  %v1602 = vld [vmem:[%s2 + $0x54] sm:$0xff]
  %v1603 = vld [vmem:[%s2 + $0x5c] sm:$0xf]
  %v1604 = vld [vmem:[%s2 + $0x60] sm:$0xff]
  %v1605 = vld [vmem:[%s2 + $0x68] sm:$0xf]
  %v1606 = vld [vmem:[%s2 + $0x6c] sm:$0xff]
  %v1607 = vld [vmem:[%s2 + $0x74] sm:$0xf]
  %v1608 = vld [vmem:[%s2 + $0x78] sm:$0xff]
  %v1609 = vld [vmem:[%s2 + $0x80] sm:$0xf]
  %v1610 = vld [vmem:[%s2 + $0x84] sm:$0xff]
  %v1611 = vld [vmem:[%s2 + $0x8c] sm:$0xf]
  %v1612 = vld [vmem:[%s2 + $0x90] sm:$0xff]
  %v1613 = vld [vmem:[%s2 + $0x98] sm:$0xf]
  %v1614 = vld [vmem:[%s2 + $0x9c] sm:$0xff]
  %v1615 = vld [vmem:[%s2 + $0xa4] sm:$0xf]
  %v1616 = vld [vmem:[%s2 + $0xa8] sm:$0xff]
  %v1617 = vld [vmem:[%s2 + $0xb0] sm:$0xf]
  %v1618 = vld [vmem:[%s2 + $0xb4] sm:$0xff]
  %v1619 = vld [vmem:[%s2 + $0xbc] sm:$0xf]
  %v1652 = vunpack.c.l.b16 %v1588
  %v1653 = vunpack.c.h.b16 %v1588
  %v1654 = vunpack.c.l.b16 %v1589
  %v1655 = vunpack.c.l.b16 %v1590
  %v1656 = vunpack.c.h.b16 %v1590
  %v1657 = vunpack.c.l.b16 %v1591
  %v1658 = vunpack.c.l.b16 %v1592
  %v1659 = vunpack.c.h.b16 %v1592
  %v1660 = vunpack.c.l.b16 %v1593
  %v1661 = vunpack.c.l.b16 %v1594
  %v1662 = vunpack.c.h.b16 %v1594
  %v1663 = vunpack.c.l.b16 %v1595
  %v1664 = vunpack.c.l.b16 %v1596
  %v1665 = vunpack.c.h.b16 %v1596
  %v1666 = vunpack.c.l.b16 %v1597
  %v1667 = vunpack.c.l.b16 %v1598
  %v1668 = vunpack.c.h.b16 %v1598
  %v1669 = vunpack.c.l.b16 %v1599
  %v1670 = vunpack.c.l.b16 %v1600
  %v1671 = vunpack.c.h.b16 %v1600
  %v1672 = vunpack.c.l.b16 %v1601
  %v1673 = vunpack.c.l.b16 %v1602
  %v1674 = vunpack.c.h.b16 %v1602
  %v1675 = vunpack.c.l.b16 %v1603
  %v1676 = vunpack.c.l.b16 %v1604
  %v1677 = vunpack.c.h.b16 %v1604
  %v1678 = vunpack.c.l.b16 %v1605
  %v1679 = vunpack.c.l.b16 %v1606
  %v1680 = vunpack.c.h.b16 %v1606
  %v1681 = vunpack.c.l.b16 %v1607
  %v1682 = vunpack.c.l.b16 %v1608
  %v1683 = vunpack.c.h.b16 %v1608
  %v1684 = vunpack.c.l.b16 %v1609
  %v1685 = vunpack.c.l.b16 %v1610
  %v1686 = vunpack.c.h.b16 %v1610
  %v1687 = vunpack.c.l.b16 %v1611
  %v1688 = vunpack.c.l.b16 %v1612
  %v1689 = vunpack.c.h.b16 %v1612
  %v1690 = vunpack.c.l.b16 %v1613
  %v1691 = vunpack.c.l.b16 %v1614
  %v1692 = vunpack.c.h.b16 %v1614
  %v1693 = vunpack.c.l.b16 %v1615
  %v1694 = vunpack.c.l.b16 %v1616
  %v1695 = vunpack.c.h.b16 %v1616
  %v1696 = vunpack.c.l.b16 %v1617
  %v1697 = vunpack.c.l.b16 %v1618
  %v1698 = vunpack.c.h.b16 %v1618
  %v1699 = vunpack.c.l.b16 %v1619
  %v1700 = vpack.c.b16 %v1655, %v1652
  %v1701 = vpack.c.b16 %v1656, %v1653
  %v1702 = vpack.c.b16 %v1657, %v1654
  %v1703 = vpack.c.b16 %v1661, %v1658
  %v1704 = vpack.c.b16 %v1662, %v1659
  %v1705 = vpack.c.b16 %v1663, %v1660
  %v1706 = vpack.c.b16 %v1667, %v1664
  %v1707 = vpack.c.b16 %v1668, %v1665
  %v1708 = vpack.c.b16 %v1669, %v1666
  %v1709 = vpack.c.b16 %v1673, %v1670
  %v1710 = vpack.c.b16 %v1674, %v1671
  %v1711 = vpack.c.b16 %v1675, %v1672
  %v1712 = vpack.c.b16 %v1679, %v1676
  %v1713 = vpack.c.b16 %v1680, %v1677
  %v1714 = vpack.c.b16 %v1681, %v1678
  %v1715 = vpack.c.b16 %v1685, %v1682
  %v1716 = vpack.c.b16 %v1686, %v1683
  %v1717 = vpack.c.b16 %v1687, %v1684
  %v1718 = vpack.c.b16 %v1691, %v1688
  %v1719 = vpack.c.b16 %v1692, %v1689
  %v1720 = vpack.c.b16 %v1693, %v1690
  %v1721 = vpack.c.b16 %v1697, %v1694
  %v1722 = vpack.c.b16 %v1698, %v1695
  %v1723 = vpack.c.b16 %v1699, %v1696
  %1748 = vmatprep.subr.bf16.mxu0 %v1722
  %1749 = vmatpush1.bf16.msra.mxu0 %v1721
  %1750 = vmatprep.subr.bf16.mxu0 %v1719
  %1751 = vmatpush1.bf16.msra.mxu0 %v1718
  %1752 = vmatprep.subr.bf16.mxu0 %v1716
  %1753 = vmatpush1.bf16.msra.mxu0 %v1715
  %1754 = vmatprep.subr.bf16.mxu0 %v1713
  %1755 = vmatpush1.bf16.msra.mxu0 %v1712
  %1756 = vmatprep.subr.bf16.mxu0 %v1710
  %1757 = vmatpush1.bf16.msra.mxu0 %v1709
  %1758 = vmatprep.subr.bf16.mxu0 %v1707
  %1759 = vmatpush1.bf16.msra.mxu0 %v1706
  %1760 = vmatprep.subr.bf16.mxu0 %v1704
  %1761 = vmatpush1.bf16.msra.mxu0 %v1703
  %1762 = vmatprep.subr.bf16.mxu0 %v1701
  %1763 = vmatpush1.bf16.msra.mxu0 %v1700
  %1764 = vmatprep.subr.bf16.mxu0 0
  %1765 = vmatpush2.bf16.msra.mxu0 0
  %1766 = vmatprep.subr.bf16.mxu0 0
  %1767 = vmatpush2.bf16.msra.mxu0 0
  %1768 = vmatprep.subr.bf16.mxu0 0
  %1769 = vmatpush2.bf16.msra.mxu0 0
  %1770 = vmatprep.subr.bf16.mxu0 0
  %1771 = vmatpush2.bf16.msra.mxu0 0
  %1772 = vmatprep.subr.bf16.mxu0 0
  %1773 = vmatpush2.bf16.msra.mxu0 0
  %1774 = vmatprep.subr.bf16.mxu0 0
  %1775 = vmatpush2.bf16.msra.mxu0 0
  %1776 = vmatprep.subr.bf16.mxu0 0
  %1777 = vmatpush2.bf16.msra.mxu0 0
  %1778 = vmatprep.subr.bf16.mxu0 0
  %1779 = vmatpush2.bf16.msra.mxu0 0
  %1780 = vmatprep.mubr.bf16.mxu0 0
  %1781 = vmatmul.mubr.bf16.gmra.mxu0 %v1093
  %v1782 = vpop.f32.mrf.mxu0
  %v1783 = vadd.f32 0.0, %v1782
  %v1784 = vpop.f32.mrf.mxu0
  %v1785 = vadd.f32 0.0, %v1784
  %v1786 = vpop.f32.mrf.mxu0
  %v1787 = vpop.f32.mrf.mxu0
  %1788 = vdwg.mxu0
  %1789 = vmatprep.subr.bf16.mxu0 0
  %1790 = vmatpush1.bf16.msra.mxu0 %v1723
  %1791 = vmatprep.subr.bf16.mxu0 0
  %1792 = vmatpush1.bf16.msra.mxu0 %v1720
  %1793 = vmatprep.subr.bf16.mxu0 0
  %1794 = vmatpush1.bf16.msra.mxu0 %v1717
  %1795 = vmatprep.subr.bf16.mxu0 0
  %1796 = vmatpush1.bf16.msra.mxu0 %v1714
  %1797 = vmatprep.subr.bf16.mxu0 0
  %1798 = vmatpush1.bf16.msra.mxu0 %v1711
  %1799 = vmatprep.subr.bf16.mxu0 0
  %1800 = vmatpush1.bf16.msra.mxu0 %v1708
  %1801 = vmatprep.subr.bf16.mxu0 0
  %1802 = vmatpush1.bf16.msra.mxu0 %v1705
  %1803 = vmatprep.subr.bf16.mxu0 0
  %1804 = vmatpush1.bf16.msra.mxu0 %v1702
  %1805 = vmatprep.subr.bf16.mxu0 0
  %1806 = vmatpush2.bf16.msra.mxu0 0
  %1807 = vmatprep.subr.bf16.mxu0 0
  %1808 = vmatpush2.bf16.msra.mxu0 0
  %1809 = vmatprep.subr.bf16.mxu0 0
  %1810 = vmatpush2.bf16.msra.mxu0 0
  %1811 = vmatprep.subr.bf16.mxu0 0
  %1812 = vmatpush2.bf16.msra.mxu0 0
  %1813 = vmatprep.subr.bf16.mxu0 0
  %1814 = vmatpush2.bf16.msra.mxu0 0
  %1815 = vmatprep.subr.bf16.mxu0 0
  %1816 = vmatpush2.bf16.msra.mxu0 0
  %1817 = vmatprep.subr.bf16.mxu0 0
  %1818 = vmatpush2.bf16.msra.mxu0 0
  %1819 = vmatprep.subr.bf16.mxu0 0
  %1820 = vmatpush2.bf16.msra.mxu0 0
  %1821 = vmatprep.mubr.bf16.mxu0 0
  %1822 = vmatmul.mubr.bf16.gmra.mxu0 %v1093
  %v1823 = vpop.f32.mrf.mxu0
  %v1824 = vadd.f32 0.0, %v1823
  %v1825 = vpop.f32.mrf.mxu0
  %v1826 = vpop.f32.mrf.mxu0
  %v1827 = vpop.f32.mrf.mxu0
  %1828 = vdwg.mxu0
  %v1829 = vadd.f32 %v1585, %v1783
  %v1830 = vxor.u32 %v1829, 2147483648
  %v1831 = vmul.f32 %v1830, 1.442695
  %v1832 = vpow.pop %v1831
  %v1833 = vadd.f32 %v1832, 1.0
  %v1834 = vrcp.pop %v1833
  %v1835 = vmul.f32 1.0, %v1834
  %v1836 = vadd.f32 %v1586, %v1785
  %v1837 = vxor.u32 %v1836, 2147483648
  %v1838 = vmul.f32 %v1837, 1.442695
  %v1839 = vpow.pop %v1838
  %v1840 = vadd.f32 %v1839, 1.0
  %v1841 = vrcp.pop %v1840
  %v1842 = vmul.f32 1.0, %v1841
  %v1843 = vadd.f32 %v1824, %v39
  %v1844 = vmul.f32 %v1835, %v1843
  %v1845 = vadd.f32 %v1587, %v1844
  %v1846 = vtanh.pop %v1845
  %v1847 = vsub.f32 1.0, %v1842
  %v1848 = vmul.f32 %v1847, %v1846
  %v1849 = vmul.f32 %v1842, %v1092
  %v1850 = vadd.f32 %v1848, %v1849
  %v1851 = vpack.c.bf16 %v1850, %v1850
  %v1852 = vld [vmem:[%s4] sm:$0xff]
  %v1853 = vld [vmem:[%s4 + $0x8] sm:$0xff]
  %v1854 = vld [vmem:[%s4 + $0x10] sm:$0xff]
  %v1855 = vld [vmem:[%s4 + $0x18] sm:$0xff]
  %v1856 = vld [vmem:[%s4 + $0x20] sm:$0xff]
  %v1857 = vld [vmem:[%s4 + $0x28] sm:$0xff]
  %v1858 = vld [vmem:[%s4 + $0x30] sm:$0xff]
  %v1859 = vld [vmem:[%s4 + $0x38] sm:$0xff]
  %v1860 = vld [vmem:[%s4 + $0x40] sm:$0xff]
  %v1861 = vld [vmem:[%s4 + $0x48] sm:$0xff]
  %v1862 = vld [vmem:[%s4 + $0x50] sm:$0xff]
  %v1863 = vld [vmem:[%s4 + $0x58] sm:$0xff]
  %v1864 = vld [vmem:[%s4 + $0x60] sm:$0xff]
  %v1865 = vld [vmem:[%s4 + $0x68] sm:$0xff]
  %v1866 = vld [vmem:[%s4 + $0x70] sm:$0xff]
  %v1867 = vld [vmem:[%s4 + $0x78] sm:$0xff]
  %v1868 = vld [vmem:[%s4 + $0x80] sm:$0xff]
  %v1869 = vld [vmem:[%s4 + $0x88] sm:$0xff]
  %v1870 = vld [vmem:[%s4 + $0x90] sm:$0xff]
  %v1871 = vld [vmem:[%s4 + $0x98] sm:$0xff]
  %v1872 = vld [vmem:[%s4 + $0xa0] sm:$0xff]
  %v1873 = vld [vmem:[%s4 + $0xa8] sm:$0xff]
  %v1874 = vld [vmem:[%s4 + $0xb0] sm:$0xff]
  %v1875 = vld [vmem:[%s4 + $0xb8] sm:$0xff]
  %v1876 = vld [vmem:[%s4 + $0xc0] sm:$0xff]
  %v1877 = vld [vmem:[%s4 + $0xc8] sm:$0xff]
  %v1878 = vld [vmem:[%s4 + $0xd0] sm:$0xff]
  %v1879 = vld [vmem:[%s4 + $0xd8] sm:$0xff]
  %v1880 = vld [vmem:[%s4 + $0xe0] sm:$0xff]
  %v1881 = vld [vmem:[%s4 + $0xe8] sm:$0xff]
  %v1882 = vld [vmem:[%s4 + $0xf0] sm:$0xff]
  %v1883 = vld [vmem:[%s4 + $0xf8] sm:$0xff]
  %v1884 = vld [vmem:[%s4 + $0x100] sm:$0xff]
  %v1885 = vld [vmem:[%s4 + $0x108] sm:$0xff]
  %v1886 = vld [vmem:[%s4 + $0x110] sm:$0xff]
  %v1887 = vld [vmem:[%s4 + $0x118] sm:$0xff]
  %v1888 = vld [vmem:[%s4 + $0x120] sm:$0xff]
  %v1889 = vld [vmem:[%s4 + $0x128] sm:$0xff]
  %v1890 = vld [vmem:[%s4 + $0x130] sm:$0xff]
  %v1891 = vld [vmem:[%s4 + $0x138] sm:$0xff]
  %v1892 = vld [vmem:[%s4 + $0x140] sm:$0xff]
  %v1893 = vld [vmem:[%s4 + $0x148] sm:$0xff]
  %v1894 = vld [vmem:[%s4 + $0x150] sm:$0xff]
  %v1895 = vld [vmem:[%s4 + $0x158] sm:$0xff]
  %v1896 = vld [vmem:[%s4 + $0x160] sm:$0xff]
  %v1897 = vld [vmem:[%s4 + $0x168] sm:$0xff]
  %v1898 = vld [vmem:[%s4 + $0x170] sm:$0xff]
  %v1899 = vld [vmem:[%s4 + $0x178] sm:$0xff]
  %v1900 = vld [vmem:[%s4 + $0x180] sm:$0xff]
  %v1901 = vld [vmem:[%s4 + $0x188] sm:$0xff]
  %v1902 = vld [vmem:[%s4 + $0x190] sm:$0xff]
  %v1903 = vld [vmem:[%s4 + $0x198] sm:$0xff]
  %v1904 = vld [vmem:[%s4 + $0x1a0] sm:$0xff]
  %v1905 = vld [vmem:[%s4 + $0x1a8] sm:$0xff]
  %v1906 = vld [vmem:[%s4 + $0x1b0] sm:$0xff]
  %v1907 = vld [vmem:[%s4 + $0x1b8] sm:$0xff]
  %v1908 = vld [vmem:[%s4 + $0x1c0] sm:$0xff]
  %v1909 = vld [vmem:[%s4 + $0x1c8] sm:$0xff]
  %v1910 = vld [vmem:[%s4 + $0x1d0] sm:$0xff]
  %v1911 = vld [vmem:[%s4 + $0x1d8] sm:$0xff]
  %v1912 = vld [vmem:[%s4 + $0x1e0] sm:$0xff]
  %v1913 = vld [vmem:[%s4 + $0x1e8] sm:$0xff]
  %v1914 = vld [vmem:[%s4 + $0x1f0] sm:$0xff]
  %v1915 = vld [vmem:[%s4 + $0x1f8] sm:$0xff]
  %v1980 = vunpack.c.l.b16 %v1852
  %v1981 = vunpack.c.h.b16 %v1852
  %v1982 = vunpack.c.l.b16 %v1853
  %v1983 = vunpack.c.h.b16 %v1853
  %v1984 = vunpack.c.l.b16 %v1854
  %v1985 = vunpack.c.h.b16 %v1854
  %v1986 = vunpack.c.l.b16 %v1855
  %v1987 = vunpack.c.h.b16 %v1855
  %v1988 = vunpack.c.l.b16 %v1856
  %v1989 = vunpack.c.h.b16 %v1856
  %v1990 = vunpack.c.l.b16 %v1857
  %v1991 = vunpack.c.h.b16 %v1857
  %v1992 = vunpack.c.l.b16 %v1858
  %v1993 = vunpack.c.h.b16 %v1858
  %v1994 = vunpack.c.l.b16 %v1859
  %v1995 = vunpack.c.h.b16 %v1859
  %v1996 = vunpack.c.l.b16 %v1860
  %v1997 = vunpack.c.h.b16 %v1860
  %v1998 = vunpack.c.l.b16 %v1861
  %v1999 = vunpack.c.h.b16 %v1861
  %v2000 = vunpack.c.l.b16 %v1862
  %v2001 = vunpack.c.h.b16 %v1862
  %v2002 = vunpack.c.l.b16 %v1863
  %v2003 = vunpack.c.h.b16 %v1863
  %v2004 = vunpack.c.l.b16 %v1864
  %v2005 = vunpack.c.h.b16 %v1864
  %v2006 = vunpack.c.l.b16 %v1865
  %v2007 = vunpack.c.h.b16 %v1865
  %v2008 = vunpack.c.l.b16 %v1866
  %v2009 = vunpack.c.h.b16 %v1866
  %v2010 = vunpack.c.l.b16 %v1867
  %v2011 = vunpack.c.h.b16 %v1867
  %v2012 = vunpack.c.l.b16 %v1868
  %v2013 = vunpack.c.h.b16 %v1868
  %v2014 = vunpack.c.l.b16 %v1869
  %v2015 = vunpack.c.h.b16 %v1869
  %v2016 = vunpack.c.l.b16 %v1870
  %v2017 = vunpack.c.h.b16 %v1870
  %v2018 = vunpack.c.l.b16 %v1871
  %v2019 = vunpack.c.h.b16 %v1871
  %v2020 = vunpack.c.l.b16 %v1872
  %v2021 = vunpack.c.h.b16 %v1872
  %v2022 = vunpack.c.l.b16 %v1873
  %v2023 = vunpack.c.h.b16 %v1873
  %v2024 = vunpack.c.l.b16 %v1874
  %v2025 = vunpack.c.h.b16 %v1874
  %v2026 = vunpack.c.l.b16 %v1875
  %v2027 = vunpack.c.h.b16 %v1875
  %v2028 = vunpack.c.l.b16 %v1876
  %v2029 = vunpack.c.h.b16 %v1876
  %v2030 = vunpack.c.l.b16 %v1877
  %v2031 = vunpack.c.h.b16 %v1877
  %v2032 = vunpack.c.l.b16 %v1878
  %v2033 = vunpack.c.h.b16 %v1878
  %v2034 = vunpack.c.l.b16 %v1879
  %v2035 = vunpack.c.h.b16 %v1879
  %v2036 = vunpack.c.l.b16 %v1880
  %v2037 = vunpack.c.h.b16 %v1880
  %v2038 = vunpack.c.l.b16 %v1881
  %v2039 = vunpack.c.h.b16 %v1881
  %v2040 = vunpack.c.l.b16 %v1882
  %v2041 = vunpack.c.h.b16 %v1882
  %v2042 = vunpack.c.l.b16 %v1883
  %v2043 = vunpack.c.h.b16 %v1883
  %v2044 = vunpack.c.l.b16 %v1884
  %v2045 = vunpack.c.h.b16 %v1884
  %v2046 = vunpack.c.l.b16 %v1885
  %v2047 = vunpack.c.h.b16 %v1885
  %v2048 = vunpack.c.l.b16 %v1886
  %v2049 = vunpack.c.h.b16 %v1886
  %v2050 = vunpack.c.l.b16 %v1887
  %v2051 = vunpack.c.h.b16 %v1887
  %v2052 = vunpack.c.l.b16 %v1888
  %v2053 = vunpack.c.h.b16 %v1888
  %v2054 = vunpack.c.l.b16 %v1889
  %v2055 = vunpack.c.h.b16 %v1889
  %v2056 = vunpack.c.l.b16 %v1890
  %v2057 = vunpack.c.h.b16 %v1890
  %v2058 = vunpack.c.l.b16 %v1891
  %v2059 = vunpack.c.h.b16 %v1891
  %v2060 = vunpack.c.l.b16 %v1892
  %v2061 = vunpack.c.h.b16 %v1892
  %v2062 = vunpack.c.l.b16 %v1893
  %v2063 = vunpack.c.h.b16 %v1893
  %v2064 = vunpack.c.l.b16 %v1894
  %v2065 = vunpack.c.h.b16 %v1894
  %v2066 = vunpack.c.l.b16 %v1895
  %v2067 = vunpack.c.h.b16 %v1895
  %v2068 = vunpack.c.l.b16 %v1896
  %v2069 = vunpack.c.h.b16 %v1896
  %v2070 = vunpack.c.l.b16 %v1897
  %v2071 = vunpack.c.h.b16 %v1897
  %v2072 = vunpack.c.l.b16 %v1898
  %v2073 = vunpack.c.h.b16 %v1898
  %v2074 = vunpack.c.l.b16 %v1899
  %v2075 = vunpack.c.h.b16 %v1899
  %v2076 = vunpack.c.l.b16 %v1900
  %v2077 = vunpack.c.h.b16 %v1900
  %v2078 = vunpack.c.l.b16 %v1901
  %v2079 = vunpack.c.h.b16 %v1901
  %v2080 = vunpack.c.l.b16 %v1902
  %v2081 = vunpack.c.h.b16 %v1902
  %v2082 = vunpack.c.l.b16 %v1903
  %v2083 = vunpack.c.h.b16 %v1903
  %v2084 = vunpack.c.l.b16 %v1904
  %v2085 = vunpack.c.h.b16 %v1904
  %v2086 = vunpack.c.l.b16 %v1905
  %v2087 = vunpack.c.h.b16 %v1905
  %v2088 = vunpack.c.l.b16 %v1906
  %v2089 = vunpack.c.h.b16 %v1906
  %v2090 = vunpack.c.l.b16 %v1907
  %v2091 = vunpack.c.h.b16 %v1907
  %v2092 = vunpack.c.l.b16 %v1908
  %v2093 = vunpack.c.h.b16 %v1908
  %v2094 = vunpack.c.l.b16 %v1909
  %v2095 = vunpack.c.h.b16 %v1909
  %v2096 = vunpack.c.l.b16 %v1910
  %v2097 = vunpack.c.h.b16 %v1910
  %v2098 = vunpack.c.l.b16 %v1911
  %v2099 = vunpack.c.h.b16 %v1911
  %v2100 = vunpack.c.l.b16 %v1912
  %v2101 = vunpack.c.h.b16 %v1912
  %v2102 = vunpack.c.l.b16 %v1913
  %v2103 = vunpack.c.h.b16 %v1913
  %v2104 = vunpack.c.l.b16 %v1914
  %v2105 = vunpack.c.h.b16 %v1914
  %v2106 = vunpack.c.l.b16 %v1915
  %v2107 = vunpack.c.h.b16 %v1915
  %v2108 = vpack.c.b16 %v1984, %v1980
  %v2109 = vpack.c.b16 %v1985, %v1981
  %v2110 = vpack.c.b16 %v1986, %v1982
  %v2111 = vpack.c.b16 %v1987, %v1983
  %v2112 = vpack.c.b16 %v1992, %v1988
  %v2113 = vpack.c.b16 %v1993, %v1989
  %v2114 = vpack.c.b16 %v1994, %v1990
  %v2115 = vpack.c.b16 %v1995, %v1991
  %v2116 = vpack.c.b16 %v2000, %v1996
  %v2117 = vpack.c.b16 %v2001, %v1997
  %v2118 = vpack.c.b16 %v2002, %v1998
  %v2119 = vpack.c.b16 %v2003, %v1999
  %v2120 = vpack.c.b16 %v2008, %v2004
  %v2121 = vpack.c.b16 %v2009, %v2005
  %v2122 = vpack.c.b16 %v2010, %v2006
  %v2123 = vpack.c.b16 %v2011, %v2007
  %v2124 = vpack.c.b16 %v2016, %v2012
  %v2125 = vpack.c.b16 %v2017, %v2013
  %v2126 = vpack.c.b16 %v2018, %v2014
  %v2127 = vpack.c.b16 %v2019, %v2015
  %v2128 = vpack.c.b16 %v2024, %v2020
  %v2129 = vpack.c.b16 %v2025, %v2021
  %v2130 = vpack.c.b16 %v2026, %v2022
  %v2131 = vpack.c.b16 %v2027, %v2023
  %v2132 = vpack.c.b16 %v2032, %v2028
  %v2133 = vpack.c.b16 %v2033, %v2029
  %v2134 = vpack.c.b16 %v2034, %v2030
  %v2135 = vpack.c.b16 %v2035, %v2031
  %v2136 = vpack.c.b16 %v2040, %v2036
  %v2137 = vpack.c.b16 %v2041, %v2037
  %v2138 = vpack.c.b16 %v2042, %v2038
  %v2139 = vpack.c.b16 %v2043, %v2039
  %v2140 = vpack.c.b16 %v2048, %v2044
  %v2141 = vpack.c.b16 %v2049, %v2045
  %v2142 = vpack.c.b16 %v2050, %v2046
  %v2143 = vpack.c.b16 %v2051, %v2047
  %v2144 = vpack.c.b16 %v2056, %v2052
  %v2145 = vpack.c.b16 %v2057, %v2053
  %v2146 = vpack.c.b16 %v2058, %v2054
  %v2147 = vpack.c.b16 %v2059, %v2055
  %v2148 = vpack.c.b16 %v2064, %v2060
  %v2149 = vpack.c.b16 %v2065, %v2061
  %v2150 = vpack.c.b16 %v2066, %v2062
  %v2151 = vpack.c.b16 %v2067, %v2063
  %v2152 = vpack.c.b16 %v2072, %v2068
  %v2153 = vpack.c.b16 %v2073, %v2069
  %v2154 = vpack.c.b16 %v2074, %v2070
  %v2155 = vpack.c.b16 %v2075, %v2071
  %v2156 = vpack.c.b16 %v2080, %v2076
  %v2157 = vpack.c.b16 %v2081, %v2077
  %v2158 = vpack.c.b16 %v2082, %v2078
  %v2159 = vpack.c.b16 %v2083, %v2079
  %v2160 = vpack.c.b16 %v2088, %v2084
  %v2161 = vpack.c.b16 %v2089, %v2085
  %v2162 = vpack.c.b16 %v2090, %v2086
  %v2163 = vpack.c.b16 %v2091, %v2087
  %v2164 = vpack.c.b16 %v2096, %v2092
  %v2165 = vpack.c.b16 %v2097, %v2093
  %v2166 = vpack.c.b16 %v2098, %v2094
  %v2167 = vpack.c.b16 %v2099, %v2095
  %v2168 = vpack.c.b16 %v2104, %v2100
  %v2169 = vpack.c.b16 %v2105, %v2101
  %v2170 = vpack.c.b16 %v2106, %v2102
  %v2171 = vpack.c.b16 %v2107, %v2103
  %2236 = vmatprep.subr.bf16.mxu0 %v2137
  %2237 = vmatpush1.bf16.msra.mxu0 %v2136
  %2238 = vmatprep.subr.bf16.mxu0 %v2133
  %2239 = vmatpush1.bf16.msra.mxu0 %v2132
  %2240 = vmatprep.subr.bf16.mxu0 %v2129
  %2241 = vmatpush1.bf16.msra.mxu0 %v2128
  %2242 = vmatprep.subr.bf16.mxu0 %v2125
  %2243 = vmatpush1.bf16.msra.mxu0 %v2124
  %2244 = vmatprep.subr.bf16.mxu0 %v2121
  %2245 = vmatpush1.bf16.msra.mxu0 %v2120
  %2246 = vmatprep.subr.bf16.mxu0 %v2117
  %2247 = vmatpush1.bf16.msra.mxu0 %v2116
  %2248 = vmatprep.subr.bf16.mxu0 %v2113
  %2249 = vmatpush1.bf16.msra.mxu0 %v2112
  %2250 = vmatprep.subr.bf16.mxu0 %v2109
  %2251 = vmatpush1.bf16.msra.mxu0 %v2108
  %2252 = vmatprep.subr.bf16.mxu0 %v2169
  %2253 = vmatpush2.bf16.msra.mxu0 %v2168
  %2254 = vmatprep.subr.bf16.mxu0 %v2165
  %2255 = vmatpush2.bf16.msra.mxu0 %v2164
  %2256 = vmatprep.subr.bf16.mxu0 %v2161
  %2257 = vmatpush2.bf16.msra.mxu0 %v2160
  %2258 = vmatprep.subr.bf16.mxu0 %v2157
  %2259 = vmatpush2.bf16.msra.mxu0 %v2156
  %2260 = vmatprep.subr.bf16.mxu0 %v2153
  %2261 = vmatpush2.bf16.msra.mxu0 %v2152
  %2262 = vmatprep.subr.bf16.mxu0 %v2149
  %2263 = vmatpush2.bf16.msra.mxu0 %v2148
  %2264 = vmatprep.subr.bf16.mxu0 %v2145
  %2265 = vmatpush2.bf16.msra.mxu0 %v2144
  %2266 = vmatprep.subr.bf16.mxu0 %v2141
  %2267 = vmatpush2.bf16.msra.mxu0 %v2140
  %2268 = vmatprep.mubr.bf16.mxu0 %v1579
  %2269 = vmatmul.mubr.bf16.gmra.mxu0 %v1851
  %v2270 = vpop.f32.mrf.mxu0
  %v2271 = vadd.f32 %v46, %v2270
  %v2272 = vpop.f32.mrf.mxu0
  %v2273 = vadd.f32 %v50, %v2272
  %v2274 = vpop.f32.mrf.mxu0
  %v2275 = vpop.f32.mrf.mxu0
  %2276 = vdwg.mxu0
  %2277 = vmatprep.subr.bf16.mxu0 %v2139
  %2278 = vmatpush1.bf16.msra.mxu0 %v2138
  %2279 = vmatprep.subr.bf16.mxu0 %v2135
  %2280 = vmatpush1.bf16.msra.mxu0 %v2134
  %2281 = vmatprep.subr.bf16.mxu0 %v2131
  %2282 = vmatpush1.bf16.msra.mxu0 %v2130
  %2283 = vmatprep.subr.bf16.mxu0 %v2127
  %2284 = vmatpush1.bf16.msra.mxu0 %v2126
  %2285 = vmatprep.subr.bf16.mxu0 %v2123
  %2286 = vmatpush1.bf16.msra.mxu0 %v2122
  %2287 = vmatprep.subr.bf16.mxu0 %v2119
  %2288 = vmatpush1.bf16.msra.mxu0 %v2118
  %2289 = vmatprep.subr.bf16.mxu0 %v2115
  %2290 = vmatpush1.bf16.msra.mxu0 %v2114
  %2291 = vmatprep.subr.bf16.mxu0 %v2111
  %2292 = vmatpush1.bf16.msra.mxu0 %v2110
  %2293 = vmatprep.subr.bf16.mxu0 %v2171
  %2294 = vmatpush2.bf16.msra.mxu0 %v2170
  %2295 = vmatprep.subr.bf16.mxu0 %v2167
  %2296 = vmatpush2.bf16.msra.mxu0 %v2166
  %2297 = vmatprep.subr.bf16.mxu0 %v2163
  %2298 = vmatpush2.bf16.msra.mxu0 %v2162
  %2299 = vmatprep.subr.bf16.mxu0 %v2159
  %2300 = vmatpush2.bf16.msra.mxu0 %v2158
  %2301 = vmatprep.subr.bf16.mxu0 %v2155
  %2302 = vmatpush2.bf16.msra.mxu0 %v2154
  %2303 = vmatprep.subr.bf16.mxu0 %v2151
  %2304 = vmatpush2.bf16.msra.mxu0 %v2150
  %2305 = vmatprep.subr.bf16.mxu0 %v2147
  %2306 = vmatpush2.bf16.msra.mxu0 %v2146
  %2307 = vmatprep.subr.bf16.mxu0 %v2143
  %2308 = vmatpush2.bf16.msra.mxu0 %v2142
  %2309 = vmatprep.mubr.bf16.mxu0 %v1579
  %2310 = vmatmul.mubr.bf16.gmra.mxu0 %v1851
  %v2311 = vpop.f32.mrf.mxu0
  %v2312 = vadd.f32 %v54, %v2311
  %v2313 = vpop.f32.mrf.mxu0
  %v2314 = vadd.f32 %v58, %v2313
  %v2315 = vpop.f32.mrf.mxu0
  %v2316 = vpop.f32.mrf.mxu0
  %2317 = vdwg.mxu0
  %v2318 = vxor.u32 %v2271, 2147483648
  %v2319 = vmul.f32 %v2318, 1.442695
  %v2320 = vpow.pop %v2319
  %v2321 = vadd.f32 %v2320, 1.0
  %v2322 = vrcp.pop %v2321
  %v2323 = vmul.f32 1.0, %v2322
  %v2324 = vxor.u32 %v2273, 2147483648
  %v2325 = vmul.f32 %v2324, 1.442695
  %v2326 = vpow.pop %v2325
  %v2327 = vadd.f32 %v2326, 1.0
  %v2328 = vrcp.pop %v2327
  %v2329 = vmul.f32 1.0, %v2328
  %v2330 = vmul.f32 %v2323, %v2314
  %v2331 = vadd.f32 %v2312, %v2330
  %v2332 = vtanh.pop %v2331
  %v2333 = vsub.f32 1.0, %v2329
  %v2334 = vmul.f32 %v2333, %v2332
  %v2335 = vmul.f32 %v2329, %v1578
  %v2336 = vadd.f32 %v2334, %v2335
  %v2337 = vpack.c.bf16 %v2336, %v2336
  %s2338 = scalar_lea.vmem %s6, 8
  %2339 = vst [vmem:[%s2338] sm:$0xf] %v2337
  %s2340 = scalar_lea.vmem %s0, 36
  %v2341 = vld [vmem:[%s2340] sm:$0xff]
  %v2342 = vld [vmem:[%s2340 + $0x8] sm:$0xf]
  %v2343 = vunpack.c.l.bf16 %v2341
  %v2344 = vunpack.c.h.bf16 %v2341
  %v2345 = vunpack.c.l.bf16 %v2342
  %v2346 = vld [vmem:[%s2] sm:$0xff]
  %v2347 = vld [vmem:[%s2 + $0x8] sm:$0xf]
  %v2348 = vld [vmem:[%s2 + $0xc] sm:$0xff]
  %v2349 = vld [vmem:[%s2 + $0x14] sm:$0xf]
  %v2350 = vld [vmem:[%s2 + $0x18] sm:$0xff]
  %v2351 = vld [vmem:[%s2 + $0x20] sm:$0xf]
  %v2352 = vld [vmem:[%s2 + $0x24] sm:$0xff]
  %v2353 = vld [vmem:[%s2 + $0x2c] sm:$0xf]
  %v2354 = vld [vmem:[%s2 + $0x30] sm:$0xff]
  %v2355 = vld [vmem:[%s2 + $0x38] sm:$0xf]
  %v2356 = vld [vmem:[%s2 + $0x3c] sm:$0xff]
  %v2357 = vld [vmem:[%s2 + $0x44] sm:$0xf]
  %v2358 = vld [vmem:[%s2 + $0x48] sm:$0xff]
  %v2359 = vld [vmem:[%s2 + $0x50] sm:$0xf]
  %v2360 = vld [vmem:[%s2 + $0x54] sm:$0xff]
  %v2361 = vld [vmem:[%s2 + $0x5c] sm:$0xf]
  %v2362 = vld [vmem:[%s2 + $0x60] sm:$0xff]
  %v2363 = vld [vmem:[%s2 + $0x68] sm:$0xf]
  %v2364 = vld [vmem:[%s2 + $0x6c] sm:$0xff]
  %v2365 = vld [vmem:[%s2 + $0x74] sm:$0xf]
  %v2366 = vld [vmem:[%s2 + $0x78] sm:$0xff]
  %v2367 = vld [vmem:[%s2 + $0x80] sm:$0xf]
  %v2368 = vld [vmem:[%s2 + $0x84] sm:$0xff]
  %v2369 = vld [vmem:[%s2 + $0x8c] sm:$0xf]
  %v2370 = vld [vmem:[%s2 + $0x90] sm:$0xff]
  %v2371 = vld [vmem:[%s2 + $0x98] sm:$0xf]
  %v2372 = vld [vmem:[%s2 + $0x9c] sm:$0xff]
  %v2373 = vld [vmem:[%s2 + $0xa4] sm:$0xf]
  %v2374 = vld [vmem:[%s2 + $0xa8] sm:$0xff]
  %v2375 = vld [vmem:[%s2 + $0xb0] sm:$0xf]
  %v2376 = vld [vmem:[%s2 + $0xb4] sm:$0xff]
  %v2377 = vld [vmem:[%s2 + $0xbc] sm:$0xf]
  %v2410 = vunpack.c.l.b16 %v2346
  %v2411 = vunpack.c.h.b16 %v2346
  %v2412 = vunpack.c.l.b16 %v2347
  %v2413 = vunpack.c.l.b16 %v2348
  %v2414 = vunpack.c.h.b16 %v2348
  %v2415 = vunpack.c.l.b16 %v2349
  %v2416 = vunpack.c.l.b16 %v2350
  %v2417 = vunpack.c.h.b16 %v2350
  %v2418 = vunpack.c.l.b16 %v2351
  %v2419 = vunpack.c.l.b16 %v2352
  %v2420 = vunpack.c.h.b16 %v2352
  %v2421 = vunpack.c.l.b16 %v2353
  %v2422 = vunpack.c.l.b16 %v2354
  %v2423 = vunpack.c.h.b16 %v2354
  %v2424 = vunpack.c.l.b16 %v2355
  %v2425 = vunpack.c.l.b16 %v2356
  %v2426 = vunpack.c.h.b16 %v2356
  %v2427 = vunpack.c.l.b16 %v2357
  %v2428 = vunpack.c.l.b16 %v2358
  %v2429 = vunpack.c.h.b16 %v2358
  %v2430 = vunpack.c.l.b16 %v2359
  %v2431 = vunpack.c.l.b16 %v2360
  %v2432 = vunpack.c.h.b16 %v2360
  %v2433 = vunpack.c.l.b16 %v2361
  %v2434 = vunpack.c.l.b16 %v2362
  %v2435 = vunpack.c.h.b16 %v2362
  %v2436 = vunpack.c.l.b16 %v2363
  %v2437 = vunpack.c.l.b16 %v2364
  %v2438 = vunpack.c.h.b16 %v2364
  %v2439 = vunpack.c.l.b16 %v2365
  %v2440 = vunpack.c.l.b16 %v2366
  %v2441 = vunpack.c.h.b16 %v2366
  %v2442 = vunpack.c.l.b16 %v2367
  %v2443 = vunpack.c.l.b16 %v2368
  %v2444 = vunpack.c.h.b16 %v2368
  %v2445 = vunpack.c.l.b16 %v2369
  %v2446 = vunpack.c.l.b16 %v2370
  %v2447 = vunpack.c.h.b16 %v2370
  %v2448 = vunpack.c.l.b16 %v2371
  %v2449 = vunpack.c.l.b16 %v2372
  %v2450 = vunpack.c.h.b16 %v2372
  %v2451 = vunpack.c.l.b16 %v2373
  %v2452 = vunpack.c.l.b16 %v2374
  %v2453 = vunpack.c.h.b16 %v2374
  %v2454 = vunpack.c.l.b16 %v2375
  %v2455 = vunpack.c.l.b16 %v2376
  %v2456 = vunpack.c.h.b16 %v2376
  %v2457 = vunpack.c.l.b16 %v2377
  %v2458 = vpack.c.b16 %v2413, %v2410
  %v2459 = vpack.c.b16 %v2414, %v2411
  %v2460 = vpack.c.b16 %v2415, %v2412
  %v2461 = vpack.c.b16 %v2419, %v2416
  %v2462 = vpack.c.b16 %v2420, %v2417
  %v2463 = vpack.c.b16 %v2421, %v2418
  %v2464 = vpack.c.b16 %v2425, %v2422
  %v2465 = vpack.c.b16 %v2426, %v2423
  %v2466 = vpack.c.b16 %v2427, %v2424
  %v2467 = vpack.c.b16 %v2431, %v2428
  %v2468 = vpack.c.b16 %v2432, %v2429
  %v2469 = vpack.c.b16 %v2433, %v2430
  %v2470 = vpack.c.b16 %v2437, %v2434
  %v2471 = vpack.c.b16 %v2438, %v2435
  %v2472 = vpack.c.b16 %v2439, %v2436
  %v2473 = vpack.c.b16 %v2443, %v2440
  %v2474 = vpack.c.b16 %v2444, %v2441
  %v2475 = vpack.c.b16 %v2445, %v2442
  %v2476 = vpack.c.b16 %v2449, %v2446
  %v2477 = vpack.c.b16 %v2450, %v2447
  %v2478 = vpack.c.b16 %v2451, %v2448
  %v2479 = vpack.c.b16 %v2455, %v2452
  %v2480 = vpack.c.b16 %v2456, %v2453
  %v2481 = vpack.c.b16 %v2457, %v2454
  %2506 = vmatprep.subr.bf16.mxu0 %v2480
  %2507 = vmatpush1.bf16.msra.mxu0 %v2479
  %2508 = vmatprep.subr.bf16.mxu0 %v2477
  %2509 = vmatpush1.bf16.msra.mxu0 %v2476
  %2510 = vmatprep.subr.bf16.mxu0 %v2474
  %2511 = vmatpush1.bf16.msra.mxu0 %v2473
  %2512 = vmatprep.subr.bf16.mxu0 %v2471
  %2513 = vmatpush1.bf16.msra.mxu0 %v2470
  %2514 = vmatprep.subr.bf16.mxu0 %v2468
  %2515 = vmatpush1.bf16.msra.mxu0 %v2467
  %2516 = vmatprep.subr.bf16.mxu0 %v2465
  %2517 = vmatpush1.bf16.msra.mxu0 %v2464
  %2518 = vmatprep.subr.bf16.mxu0 %v2462
  %2519 = vmatpush1.bf16.msra.mxu0 %v2461
  %2520 = vmatprep.subr.bf16.mxu0 %v2459
  %2521 = vmatpush1.bf16.msra.mxu0 %v2458
  %2522 = vmatprep.subr.bf16.mxu0 0
  %2523 = vmatpush2.bf16.msra.mxu0 0
  %2524 = vmatprep.subr.bf16.mxu0 0
  %2525 = vmatpush2.bf16.msra.mxu0 0
  %2526 = vmatprep.subr.bf16.mxu0 0
  %2527 = vmatpush2.bf16.msra.mxu0 0
  %2528 = vmatprep.subr.bf16.mxu0 0
  %2529 = vmatpush2.bf16.msra.mxu0 0
  %2530 = vmatprep.subr.bf16.mxu0 0
  %2531 = vmatpush2.bf16.msra.mxu0 0
  %2532 = vmatprep.subr.bf16.mxu0 0
  %2533 = vmatpush2.bf16.msra.mxu0 0
  %2534 = vmatprep.subr.bf16.mxu0 0
  %2535 = vmatpush2.bf16.msra.mxu0 0
  %2536 = vmatprep.subr.bf16.mxu0 0
  %2537 = vmatpush2.bf16.msra.mxu0 0
  %2538 = vmatprep.mubr.bf16.mxu0 0
  %2539 = vmatmul.mubr.bf16.gmra.mxu0 %v1851
  %v2540 = vpop.f32.mrf.mxu0
  %v2541 = vadd.f32 0.0, %v2540
  %v2542 = vpop.f32.mrf.mxu0
  %v2543 = vadd.f32 0.0, %v2542
  %v2544 = vpop.f32.mrf.mxu0
  %v2545 = vpop.f32.mrf.mxu0
  %2546 = vdwg.mxu0
  %2547 = vmatprep.subr.bf16.mxu0 0
  %2548 = vmatpush1.bf16.msra.mxu0 %v2481
  %2549 = vmatprep.subr.bf16.mxu0 0
  %2550 = vmatpush1.bf16.msra.mxu0 %v2478
  %2551 = vmatprep.subr.bf16.mxu0 0
  %2552 = vmatpush1.bf16.msra.mxu0 %v2475
  %2553 = vmatprep.subr.bf16.mxu0 0
  %2554 = vmatpush1.bf16.msra.mxu0 %v2472
  %2555 = vmatprep.subr.bf16.mxu0 0
  %2556 = vmatpush1.bf16.msra.mxu0 %v2469
  %2557 = vmatprep.subr.bf16.mxu0 0
  %2558 = vmatpush1.bf16.msra.mxu0 %v2466
  %2559 = vmatprep.subr.bf16.mxu0 0
  %2560 = vmatpush1.bf16.msra.mxu0 %v2463
  %2561 = vmatprep.subr.bf16.mxu0 0
  %2562 = vmatpush1.bf16.msra.mxu0 %v2460
  %2563 = vmatprep.subr.bf16.mxu0 0
  %2564 = vmatpush2.bf16.msra.mxu0 0
  %2565 = vmatprep.subr.bf16.mxu0 0
  %2566 = vmatpush2.bf16.msra.mxu0 0
  %2567 = vmatprep.subr.bf16.mxu0 0
  %2568 = vmatpush2.bf16.msra.mxu0 0
  %2569 = vmatprep.subr.bf16.mxu0 0
  %2570 = vmatpush2.bf16.msra.mxu0 0
  %2571 = vmatprep.subr.bf16.mxu0 0
  %2572 = vmatpush2.bf16.msra.mxu0 0
  %2573 = vmatprep.subr.bf16.mxu0 0
  %2574 = vmatpush2.bf16.msra.mxu0 0
  %2575 = vmatprep.subr.bf16.mxu0 0
  %2576 = vmatpush2.bf16.msra.mxu0 0
  %2577 = vmatprep.subr.bf16.mxu0 0
  %2578 = vmatpush2.bf16.msra.mxu0 0
  %2579 = vmatprep.mubr.bf16.mxu0 0
  %2580 = vmatmul.mubr.bf16.gmra.mxu0 %v1851
  %v2581 = vpop.f32.mrf.mxu0
  %v2582 = vadd.f32 0.0, %v2581
  %v2583 = vpop.f32.mrf.mxu0
  %v2584 = vpop.f32.mrf.mxu0
  %v2585 = vpop.f32.mrf.mxu0
  %2586 = vdwg.mxu0
  %v2587 = vadd.f32 %v2343, %v2541
  %v2588 = vxor.u32 %v2587, 2147483648
  %v2589 = vmul.f32 %v2588, 1.442695
  %v2590 = vpow.pop %v2589
  %v2591 = vadd.f32 %v2590, 1.0
  %v2592 = vrcp.pop %v2591
  %v2593 = vmul.f32 1.0, %v2592
  %v2594 = vadd.f32 %v2344, %v2543
  %v2595 = vxor.u32 %v2594, 2147483648
  %v2596 = vmul.f32 %v2595, 1.442695
  %v2597 = vpow.pop %v2596
  %v2598 = vadd.f32 %v2597, 1.0
  %v2599 = vrcp.pop %v2598
  %v2600 = vmul.f32 1.0, %v2599
  %v2601 = vadd.f32 %v2582, %v39
  %v2602 = vmul.f32 %v2593, %v2601
  %v2603 = vadd.f32 %v2345, %v2602
  %v2604 = vtanh.pop %v2603
  %v2605 = vsub.f32 1.0, %v2600
  %v2606 = vmul.f32 %v2605, %v2604
  %v2607 = vmul.f32 %v2600, %v1850
  %v2608 = vadd.f32 %v2606, %v2607
  %v2609 = vpack.c.bf16 %v2608, %v2608
  %v2610 = vld [vmem:[%s4] sm:$0xff]
  %v2611 = vld [vmem:[%s4 + $0x8] sm:$0xff]
  %v2612 = vld [vmem:[%s4 + $0x10] sm:$0xff]
  %v2613 = vld [vmem:[%s4 + $0x18] sm:$0xff]
  %v2614 = vld [vmem:[%s4 + $0x20] sm:$0xff]
  %v2615 = vld [vmem:[%s4 + $0x28] sm:$0xff]
  %v2616 = vld [vmem:[%s4 + $0x30] sm:$0xff]
  %v2617 = vld [vmem:[%s4 + $0x38] sm:$0xff]
  %v2618 = vld [vmem:[%s4 + $0x40] sm:$0xff]
  %v2619 = vld [vmem:[%s4 + $0x48] sm:$0xff]
  %v2620 = vld [vmem:[%s4 + $0x50] sm:$0xff]
  %v2621 = vld [vmem:[%s4 + $0x58] sm:$0xff]
  %v2622 = vld [vmem:[%s4 + $0x60] sm:$0xff]
  %v2623 = vld [vmem:[%s4 + $0x68] sm:$0xff]
  %v2624 = vld [vmem:[%s4 + $0x70] sm:$0xff]
  %v2625 = vld [vmem:[%s4 + $0x78] sm:$0xff]
  %v2626 = vld [vmem:[%s4 + $0x80] sm:$0xff]
  %v2627 = vld [vmem:[%s4 + $0x88] sm:$0xff]
  %v2628 = vld [vmem:[%s4 + $0x90] sm:$0xff]
  %v2629 = vld [vmem:[%s4 + $0x98] sm:$0xff]
  %v2630 = vld [vmem:[%s4 + $0xa0] sm:$0xff]
  %v2631 = vld [vmem:[%s4 + $0xa8] sm:$0xff]
  %v2632 = vld [vmem:[%s4 + $0xb0] sm:$0xff]
  %v2633 = vld [vmem:[%s4 + $0xb8] sm:$0xff]
  %v2634 = vld [vmem:[%s4 + $0xc0] sm:$0xff]
  %v2635 = vld [vmem:[%s4 + $0xc8] sm:$0xff]
  %v2636 = vld [vmem:[%s4 + $0xd0] sm:$0xff]
  %v2637 = vld [vmem:[%s4 + $0xd8] sm:$0xff]
  %v2638 = vld [vmem:[%s4 + $0xe0] sm:$0xff]
  %v2639 = vld [vmem:[%s4 + $0xe8] sm:$0xff]
  %v2640 = vld [vmem:[%s4 + $0xf0] sm:$0xff]
  %v2641 = vld [vmem:[%s4 + $0xf8] sm:$0xff]
  %v2642 = vld [vmem:[%s4 + $0x100] sm:$0xff]
  %v2643 = vld [vmem:[%s4 + $0x108] sm:$0xff]
  %v2644 = vld [vmem:[%s4 + $0x110] sm:$0xff]
  %v2645 = vld [vmem:[%s4 + $0x118] sm:$0xff]
  %v2646 = vld [vmem:[%s4 + $0x120] sm:$0xff]
  %v2647 = vld [vmem:[%s4 + $0x128] sm:$0xff]
  %v2648 = vld [vmem:[%s4 + $0x130] sm:$0xff]
  %v2649 = vld [vmem:[%s4 + $0x138] sm:$0xff]
  %v2650 = vld [vmem:[%s4 + $0x140] sm:$0xff]
  %v2651 = vld [vmem:[%s4 + $0x148] sm:$0xff]
  %v2652 = vld [vmem:[%s4 + $0x150] sm:$0xff]
  %v2653 = vld [vmem:[%s4 + $0x158] sm:$0xff]
  %v2654 = vld [vmem:[%s4 + $0x160] sm:$0xff]
  %v2655 = vld [vmem:[%s4 + $0x168] sm:$0xff]
  %v2656 = vld [vmem:[%s4 + $0x170] sm:$0xff]
  %v2657 = vld [vmem:[%s4 + $0x178] sm:$0xff]
  %v2658 = vld [vmem:[%s4 + $0x180] sm:$0xff]
  %v2659 = vld [vmem:[%s4 + $0x188] sm:$0xff]
  %v2660 = vld [vmem:[%s4 + $0x190] sm:$0xff]
  %v2661 = vld [vmem:[%s4 + $0x198] sm:$0xff]
  %v2662 = vld [vmem:[%s4 + $0x1a0] sm:$0xff]
  %v2663 = vld [vmem:[%s4 + $0x1a8] sm:$0xff]
  %v2664 = vld [vmem:[%s4 + $0x1b0] sm:$0xff]
  %v2665 = vld [vmem:[%s4 + $0x1b8] sm:$0xff]
  %v2666 = vld [vmem:[%s4 + $0x1c0] sm:$0xff]
  %v2667 = vld [vmem:[%s4 + $0x1c8] sm:$0xff]
  %v2668 = vld [vmem:[%s4 + $0x1d0] sm:$0xff]
  %v2669 = vld [vmem:[%s4 + $0x1d8] sm:$0xff]
  %v2670 = vld [vmem:[%s4 + $0x1e0] sm:$0xff]
  %v2671 = vld [vmem:[%s4 + $0x1e8] sm:$0xff]
  %v2672 = vld [vmem:[%s4 + $0x1f0] sm:$0xff]
  %v2673 = vld [vmem:[%s4 + $0x1f8] sm:$0xff]
  %v2738 = vunpack.c.l.b16 %v2610
  %v2739 = vunpack.c.h.b16 %v2610
  %v2740 = vunpack.c.l.b16 %v2611
  %v2741 = vunpack.c.h.b16 %v2611
  %v2742 = vunpack.c.l.b16 %v2612
  %v2743 = vunpack.c.h.b16 %v2612
  %v2744 = vunpack.c.l.b16 %v2613
  %v2745 = vunpack.c.h.b16 %v2613
  %v2746 = vunpack.c.l.b16 %v2614
  %v2747 = vunpack.c.h.b16 %v2614
  %v2748 = vunpack.c.l.b16 %v2615
  %v2749 = vunpack.c.h.b16 %v2615
  %v2750 = vunpack.c.l.b16 %v2616
  %v2751 = vunpack.c.h.b16 %v2616
  %v2752 = vunpack.c.l.b16 %v2617
  %v2753 = vunpack.c.h.b16 %v2617
  %v2754 = vunpack.c.l.b16 %v2618
  %v2755 = vunpack.c.h.b16 %v2618
  %v2756 = vunpack.c.l.b16 %v2619
  %v2757 = vunpack.c.h.b16 %v2619
  %v2758 = vunpack.c.l.b16 %v2620
  %v2759 = vunpack.c.h.b16 %v2620
  %v2760 = vunpack.c.l.b16 %v2621
  %v2761 = vunpack.c.h.b16 %v2621
  %v2762 = vunpack.c.l.b16 %v2622
  %v2763 = vunpack.c.h.b16 %v2622
  %v2764 = vunpack.c.l.b16 %v2623
  %v2765 = vunpack.c.h.b16 %v2623
  %v2766 = vunpack.c.l.b16 %v2624
  %v2767 = vunpack.c.h.b16 %v2624
  %v2768 = vunpack.c.l.b16 %v2625
  %v2769 = vunpack.c.h.b16 %v2625
  %v2770 = vunpack.c.l.b16 %v2626
  %v2771 = vunpack.c.h.b16 %v2626
  %v2772 = vunpack.c.l.b16 %v2627
  %v2773 = vunpack.c.h.b16 %v2627
  %v2774 = vunpack.c.l.b16 %v2628
  %v2775 = vunpack.c.h.b16 %v2628
  %v2776 = vunpack.c.l.b16 %v2629
  %v2777 = vunpack.c.h.b16 %v2629
  %v2778 = vunpack.c.l.b16 %v2630
  %v2779 = vunpack.c.h.b16 %v2630
  %v2780 = vunpack.c.l.b16 %v2631
  %v2781 = vunpack.c.h.b16 %v2631
  %v2782 = vunpack.c.l.b16 %v2632
  %v2783 = vunpack.c.h.b16 %v2632
  %v2784 = vunpack.c.l.b16 %v2633
  %v2785 = vunpack.c.h.b16 %v2633
  %v2786 = vunpack.c.l.b16 %v2634
  %v2787 = vunpack.c.h.b16 %v2634
  %v2788 = vunpack.c.l.b16 %v2635
  %v2789 = vunpack.c.h.b16 %v2635
  %v2790 = vunpack.c.l.b16 %v2636
  %v2791 = vunpack.c.h.b16 %v2636
  %v2792 = vunpack.c.l.b16 %v2637
  %v2793 = vunpack.c.h.b16 %v2637
  %v2794 = vunpack.c.l.b16 %v2638
  %v2795 = vunpack.c.h.b16 %v2638
  %v2796 = vunpack.c.l.b16 %v2639
  %v2797 = vunpack.c.h.b16 %v2639
  %v2798 = vunpack.c.l.b16 %v2640
  %v2799 = vunpack.c.h.b16 %v2640
  %v2800 = vunpack.c.l.b16 %v2641
  %v2801 = vunpack.c.h.b16 %v2641
  %v2802 = vunpack.c.l.b16 %v2642
  %v2803 = vunpack.c.h.b16 %v2642
  %v2804 = vunpack.c.l.b16 %v2643
  %v2805 = vunpack.c.h.b16 %v2643
  %v2806 = vunpack.c.l.b16 %v2644
  %v2807 = vunpack.c.h.b16 %v2644
  %v2808 = vunpack.c.l.b16 %v2645
  %v2809 = vunpack.c.h.b16 %v2645
  %v2810 = vunpack.c.l.b16 %v2646
  %v2811 = vunpack.c.h.b16 %v2646
  %v2812 = vunpack.c.l.b16 %v2647
  %v2813 = vunpack.c.h.b16 %v2647
  %v2814 = vunpack.c.l.b16 %v2648
  %v2815 = vunpack.c.h.b16 %v2648
  %v2816 = vunpack.c.l.b16 %v2649
  %v2817 = vunpack.c.h.b16 %v2649
  %v2818 = vunpack.c.l.b16 %v2650
  %v2819 = vunpack.c.h.b16 %v2650
  %v2820 = vunpack.c.l.b16 %v2651
  %v2821 = vunpack.c.h.b16 %v2651
  %v2822 = vunpack.c.l.b16 %v2652
  %v2823 = vunpack.c.h.b16 %v2652
  %v2824 = vunpack.c.l.b16 %v2653
  %v2825 = vunpack.c.h.b16 %v2653
  %v2826 = vunpack.c.l.b16 %v2654
  %v2827 = vunpack.c.h.b16 %v2654
  %v2828 = vunpack.c.l.b16 %v2655
  %v2829 = vunpack.c.h.b16 %v2655
  %v2830 = vunpack.c.l.b16 %v2656
  %v2831 = vunpack.c.h.b16 %v2656
  %v2832 = vunpack.c.l.b16 %v2657
  %v2833 = vunpack.c.h.b16 %v2657
  %v2834 = vunpack.c.l.b16 %v2658
  %v2835 = vunpack.c.h.b16 %v2658
  %v2836 = vunpack.c.l.b16 %v2659
  %v2837 = vunpack.c.h.b16 %v2659
  %v2838 = vunpack.c.l.b16 %v2660
  %v2839 = vunpack.c.h.b16 %v2660
  %v2840 = vunpack.c.l.b16 %v2661
  %v2841 = vunpack.c.h.b16 %v2661
  %v2842 = vunpack.c.l.b16 %v2662
  %v2843 = vunpack.c.h.b16 %v2662
  %v2844 = vunpack.c.l.b16 %v2663
  %v2845 = vunpack.c.h.b16 %v2663
  %v2846 = vunpack.c.l.b16 %v2664
  %v2847 = vunpack.c.h.b16 %v2664
  %v2848 = vunpack.c.l.b16 %v2665
  %v2849 = vunpack.c.h.b16 %v2665
  %v2850 = vunpack.c.l.b16 %v2666
  %v2851 = vunpack.c.h.b16 %v2666
  %v2852 = vunpack.c.l.b16 %v2667
  %v2853 = vunpack.c.h.b16 %v2667
  %v2854 = vunpack.c.l.b16 %v2668
  %v2855 = vunpack.c.h.b16 %v2668
  %v2856 = vunpack.c.l.b16 %v2669
  %v2857 = vunpack.c.h.b16 %v2669
  %v2858 = vunpack.c.l.b16 %v2670
  %v2859 = vunpack.c.h.b16 %v2670
  %v2860 = vunpack.c.l.b16 %v2671
  %v2861 = vunpack.c.h.b16 %v2671
  %v2862 = vunpack.c.l.b16 %v2672
  %v2863 = vunpack.c.h.b16 %v2672
  %v2864 = vunpack.c.l.b16 %v2673
  %v2865 = vunpack.c.h.b16 %v2673
  %v2866 = vpack.c.b16 %v2742, %v2738
  %v2867 = vpack.c.b16 %v2743, %v2739
  %v2868 = vpack.c.b16 %v2744, %v2740
  %v2869 = vpack.c.b16 %v2745, %v2741
  %v2870 = vpack.c.b16 %v2750, %v2746
  %v2871 = vpack.c.b16 %v2751, %v2747
  %v2872 = vpack.c.b16 %v2752, %v2748
  %v2873 = vpack.c.b16 %v2753, %v2749
  %v2874 = vpack.c.b16 %v2758, %v2754
  %v2875 = vpack.c.b16 %v2759, %v2755
  %v2876 = vpack.c.b16 %v2760, %v2756
  %v2877 = vpack.c.b16 %v2761, %v2757
  %v2878 = vpack.c.b16 %v2766, %v2762
  %v2879 = vpack.c.b16 %v2767, %v2763
  %v2880 = vpack.c.b16 %v2768, %v2764
  %v2881 = vpack.c.b16 %v2769, %v2765
  %v2882 = vpack.c.b16 %v2774, %v2770
  %v2883 = vpack.c.b16 %v2775, %v2771
  %v2884 = vpack.c.b16 %v2776, %v2772
  %v2885 = vpack.c.b16 %v2777, %v2773
  %v2886 = vpack.c.b16 %v2782, %v2778
  %v2887 = vpack.c.b16 %v2783, %v2779
  %v2888 = vpack.c.b16 %v2784, %v2780
  %v2889 = vpack.c.b16 %v2785, %v2781
  %v2890 = vpack.c.b16 %v2790, %v2786
  %v2891 = vpack.c.b16 %v2791, %v2787
  %v2892 = vpack.c.b16 %v2792, %v2788
  %v2893 = vpack.c.b16 %v2793, %v2789
  %v2894 = vpack.c.b16 %v2798, %v2794
  %v2895 = vpack.c.b16 %v2799, %v2795
  %v2896 = vpack.c.b16 %v2800, %v2796
  %v2897 = vpack.c.b16 %v2801, %v2797
  %v2898 = vpack.c.b16 %v2806, %v2802
  %v2899 = vpack.c.b16 %v2807, %v2803
  %v2900 = vpack.c.b16 %v2808, %v2804
  %v2901 = vpack.c.b16 %v2809, %v2805
  %v2902 = vpack.c.b16 %v2814, %v2810
  %v2903 = vpack.c.b16 %v2815, %v2811
  %v2904 = vpack.c.b16 %v2816, %v2812
  %v2905 = vpack.c.b16 %v2817, %v2813
  %v2906 = vpack.c.b16 %v2822, %v2818
  %v2907 = vpack.c.b16 %v2823, %v2819
  %v2908 = vpack.c.b16 %v2824, %v2820
  %v2909 = vpack.c.b16 %v2825, %v2821
  %v2910 = vpack.c.b16 %v2830, %v2826
  %v2911 = vpack.c.b16 %v2831, %v2827
  %v2912 = vpack.c.b16 %v2832, %v2828
  %v2913 = vpack.c.b16 %v2833, %v2829
  %v2914 = vpack.c.b16 %v2838, %v2834
  %v2915 = vpack.c.b16 %v2839, %v2835
  %v2916 = vpack.c.b16 %v2840, %v2836
  %v2917 = vpack.c.b16 %v2841, %v2837
  %v2918 = vpack.c.b16 %v2846, %v2842
  %v2919 = vpack.c.b16 %v2847, %v2843
  %v2920 = vpack.c.b16 %v2848, %v2844
  %v2921 = vpack.c.b16 %v2849, %v2845
  %v2922 = vpack.c.b16 %v2854, %v2850
  %v2923 = vpack.c.b16 %v2855, %v2851
  %v2924 = vpack.c.b16 %v2856, %v2852
  %v2925 = vpack.c.b16 %v2857, %v2853
  %v2926 = vpack.c.b16 %v2862, %v2858
  %v2927 = vpack.c.b16 %v2863, %v2859
  %v2928 = vpack.c.b16 %v2864, %v2860
  %v2929 = vpack.c.b16 %v2865, %v2861
  %2994 = vmatprep.subr.bf16.mxu0 %v2895
  %2995 = vmatpush1.bf16.msra.mxu0 %v2894
  %2996 = vmatprep.subr.bf16.mxu0 %v2891
  %2997 = vmatpush1.bf16.msra.mxu0 %v2890
  %2998 = vmatprep.subr.bf16.mxu0 %v2887
  %2999 = vmatpush1.bf16.msra.mxu0 %v2886
  %3000 = vmatprep.subr.bf16.mxu0 %v2883
  %3001 = vmatpush1.bf16.msra.mxu0 %v2882
  %3002 = vmatprep.subr.bf16.mxu0 %v2879
  %3003 = vmatpush1.bf16.msra.mxu0 %v2878
  %3004 = vmatprep.subr.bf16.mxu0 %v2875
  %3005 = vmatpush1.bf16.msra.mxu0 %v2874
  %3006 = vmatprep.subr.bf16.mxu0 %v2871
  %3007 = vmatpush1.bf16.msra.mxu0 %v2870
  %3008 = vmatprep.subr.bf16.mxu0 %v2867
  %3009 = vmatpush1.bf16.msra.mxu0 %v2866
  %3010 = vmatprep.subr.bf16.mxu0 %v2927
  %3011 = vmatpush2.bf16.msra.mxu0 %v2926
  %3012 = vmatprep.subr.bf16.mxu0 %v2923
  %3013 = vmatpush2.bf16.msra.mxu0 %v2922
  %3014 = vmatprep.subr.bf16.mxu0 %v2919
  %3015 = vmatpush2.bf16.msra.mxu0 %v2918
  %3016 = vmatprep.subr.bf16.mxu0 %v2915
  %3017 = vmatpush2.bf16.msra.mxu0 %v2914
  %3018 = vmatprep.subr.bf16.mxu0 %v2911
  %3019 = vmatpush2.bf16.msra.mxu0 %v2910
  %3020 = vmatprep.subr.bf16.mxu0 %v2907
  %3021 = vmatpush2.bf16.msra.mxu0 %v2906
  %3022 = vmatprep.subr.bf16.mxu0 %v2903
  %3023 = vmatpush2.bf16.msra.mxu0 %v2902
  %3024 = vmatprep.subr.bf16.mxu0 %v2899
  %3025 = vmatpush2.bf16.msra.mxu0 %v2898
  %3026 = vmatprep.mubr.bf16.mxu0 %v2337
  %3027 = vmatmul.mubr.bf16.gmra.mxu0 %v2609
  %v3028 = vpop.f32.mrf.mxu0
  %v3029 = vadd.f32 %v46, %v3028
  %v3030 = vpop.f32.mrf.mxu0
  %v3031 = vadd.f32 %v50, %v3030
  %v3032 = vpop.f32.mrf.mxu0
  %v3033 = vpop.f32.mrf.mxu0
  %3034 = vdwg.mxu0
  %3035 = vmatprep.subr.bf16.mxu0 %v2897
  %3036 = vmatpush1.bf16.msra.mxu0 %v2896
  %3037 = vmatprep.subr.bf16.mxu0 %v2893
  %3038 = vmatpush1.bf16.msra.mxu0 %v2892
  %3039 = vmatprep.subr.bf16.mxu0 %v2889
  %3040 = vmatpush1.bf16.msra.mxu0 %v2888
  %3041 = vmatprep.subr.bf16.mxu0 %v2885
  %3042 = vmatpush1.bf16.msra.mxu0 %v2884
  %3043 = vmatprep.subr.bf16.mxu0 %v2881
  %3044 = vmatpush1.bf16.msra.mxu0 %v2880
  %3045 = vmatprep.subr.bf16.mxu0 %v2877
  %3046 = vmatpush1.bf16.msra.mxu0 %v2876
  %3047 = vmatprep.subr.bf16.mxu0 %v2873
  %3048 = vmatpush1.bf16.msra.mxu0 %v2872
  %3049 = vmatprep.subr.bf16.mxu0 %v2869
  %3050 = vmatpush1.bf16.msra.mxu0 %v2868
  %3051 = vmatprep.subr.bf16.mxu0 %v2929
  %3052 = vmatpush2.bf16.msra.mxu0 %v2928
  %3053 = vmatprep.subr.bf16.mxu0 %v2925
  %3054 = vmatpush2.bf16.msra.mxu0 %v2924
  %3055 = vmatprep.subr.bf16.mxu0 %v2921
  %3056 = vmatpush2.bf16.msra.mxu0 %v2920
  %3057 = vmatprep.subr.bf16.mxu0 %v2917
  %3058 = vmatpush2.bf16.msra.mxu0 %v2916
  %3059 = vmatprep.subr.bf16.mxu0 %v2913
  %3060 = vmatpush2.bf16.msra.mxu0 %v2912
  %3061 = vmatprep.subr.bf16.mxu0 %v2909
  %3062 = vmatpush2.bf16.msra.mxu0 %v2908
  %3063 = vmatprep.subr.bf16.mxu0 %v2905
  %3064 = vmatpush2.bf16.msra.mxu0 %v2904
  %3065 = vmatprep.subr.bf16.mxu0 %v2901
  %3066 = vmatpush2.bf16.msra.mxu0 %v2900
  %3067 = vmatprep.mubr.bf16.mxu0 %v2337
  %3068 = vmatmul.mubr.bf16.gmra.mxu0 %v2609
  %v3069 = vpop.f32.mrf.mxu0
  %v3070 = vadd.f32 %v54, %v3069
  %v3071 = vpop.f32.mrf.mxu0
  %v3072 = vadd.f32 %v58, %v3071
  %v3073 = vpop.f32.mrf.mxu0
  %v3074 = vpop.f32.mrf.mxu0
  %3075 = vdwg.mxu0
  %v3076 = vxor.u32 %v3029, 2147483648
  %v3077 = vmul.f32 %v3076, 1.442695
  %v3078 = vpow.pop %v3077
  %v3079 = vadd.f32 %v3078, 1.0
  %v3080 = vrcp.pop %v3079
  %v3081 = vmul.f32 1.0, %v3080
  %v3082 = vxor.u32 %v3031, 2147483648
  %v3083 = vmul.f32 %v3082, 1.442695
  %v3084 = vpow.pop %v3083
  %v3085 = vadd.f32 %v3084, 1.0
  %v3086 = vrcp.pop %v3085
  %v3087 = vmul.f32 1.0, %v3086
  %v3088 = vmul.f32 %v3081, %v3072
  %v3089 = vadd.f32 %v3070, %v3088
  %v3090 = vtanh.pop %v3089
  %v3091 = vsub.f32 1.0, %v3087
  %v3092 = vmul.f32 %v3091, %v3090
  %v3093 = vmul.f32 %v3087, %v2336
  %v3094 = vadd.f32 %v3092, %v3093
  %v3095 = vpack.c.bf16 %v3094, %v3094
  %s3096 = scalar_lea.vmem %s6, 12
  %3097 = vst [vmem:[%s3096] sm:$0xf] %v3095
  %s3098 = scalar_lea.vmem %s0, 48
  %v3099 = vld [vmem:[%s3098] sm:$0xff]
  %v3100 = vld [vmem:[%s3098 + $0x8] sm:$0xf]
  %v3101 = vunpack.c.l.bf16 %v3099
  %v3102 = vunpack.c.h.bf16 %v3099
  %v3103 = vunpack.c.l.bf16 %v3100
  %v3104 = vld [vmem:[%s2] sm:$0xff]
  %v3105 = vld [vmem:[%s2 + $0x8] sm:$0xf]
  %v3106 = vld [vmem:[%s2 + $0xc] sm:$0xff]
  %v3107 = vld [vmem:[%s2 + $0x14] sm:$0xf]
  %v3108 = vld [vmem:[%s2 + $0x18] sm:$0xff]
  %v3109 = vld [vmem:[%s2 + $0x20] sm:$0xf]
  %v3110 = vld [vmem:[%s2 + $0x24] sm:$0xff]
  %v3111 = vld [vmem:[%s2 + $0x2c] sm:$0xf]
  %v3112 = vld [vmem:[%s2 + $0x30] sm:$0xff]
  %v3113 = vld [vmem:[%s2 + $0x38] sm:$0xf]
  %v3114 = vld [vmem:[%s2 + $0x3c] sm:$0xff]
  %v3115 = vld [vmem:[%s2 + $0x44] sm:$0xf]
  %v3116 = vld [vmem:[%s2 + $0x48] sm:$0xff]
  %v3117 = vld [vmem:[%s2 + $0x50] sm:$0xf]
  %v3118 = vld [vmem:[%s2 + $0x54] sm:$0xff]
  %v3119 = vld [vmem:[%s2 + $0x5c] sm:$0xf]
  %v3120 = vld [vmem:[%s2 + $0x60] sm:$0xff]
  %v3121 = vld [vmem:[%s2 + $0x68] sm:$0xf]
  %v3122 = vld [vmem:[%s2 + $0x6c] sm:$0xff]
  %v3123 = vld [vmem:[%s2 + $0x74] sm:$0xf]
  %v3124 = vld [vmem:[%s2 + $0x78] sm:$0xff]
  %v3125 = vld [vmem:[%s2 + $0x80] sm:$0xf]
  %v3126 = vld [vmem:[%s2 + $0x84] sm:$0xff]
  %v3127 = vld [vmem:[%s2 + $0x8c] sm:$0xf]
  %v3128 = vld [vmem:[%s2 + $0x90] sm:$0xff]
  %v3129 = vld [vmem:[%s2 + $0x98] sm:$0xf]
  %v3130 = vld [vmem:[%s2 + $0x9c] sm:$0xff]
  %v3131 = vld [vmem:[%s2 + $0xa4] sm:$0xf]
  %v3132 = vld [vmem:[%s2 + $0xa8] sm:$0xff]
  %v3133 = vld [vmem:[%s2 + $0xb0] sm:$0xf]
  %v3134 = vld [vmem:[%s2 + $0xb4] sm:$0xff]
  %v3135 = vld [vmem:[%s2 + $0xbc] sm:$0xf]
  %v3168 = vunpack.c.l.b16 %v3104
  %v3169 = vunpack.c.h.b16 %v3104
  %v3170 = vunpack.c.l.b16 %v3105
  %v3171 = vunpack.c.l.b16 %v3106
  %v3172 = vunpack.c.h.b16 %v3106
  %v3173 = vunpack.c.l.b16 %v3107
  %v3174 = vunpack.c.l.b16 %v3108
  %v3175 = vunpack.c.h.b16 %v3108
  %v3176 = vunpack.c.l.b16 %v3109
  %v3177 = vunpack.c.l.b16 %v3110
  %v3178 = vunpack.c.h.b16 %v3110
  %v3179 = vunpack.c.l.b16 %v3111
  %v3180 = vunpack.c.l.b16 %v3112
  %v3181 = vunpack.c.h.b16 %v3112
  %v3182 = vunpack.c.l.b16 %v3113
  %v3183 = vunpack.c.l.b16 %v3114
  %v3184 = vunpack.c.h.b16 %v3114
  %v3185 = vunpack.c.l.b16 %v3115
  %v3186 = vunpack.c.l.b16 %v3116
  %v3187 = vunpack.c.h.b16 %v3116
  %v3188 = vunpack.c.l.b16 %v3117
  %v3189 = vunpack.c.l.b16 %v3118
  %v3190 = vunpack.c.h.b16 %v3118
  %v3191 = vunpack.c.l.b16 %v3119
  %v3192 = vunpack.c.l.b16 %v3120
  %v3193 = vunpack.c.h.b16 %v3120
  %v3194 = vunpack.c.l.b16 %v3121
  %v3195 = vunpack.c.l.b16 %v3122
  %v3196 = vunpack.c.h.b16 %v3122
  %v3197 = vunpack.c.l.b16 %v3123
  %v3198 = vunpack.c.l.b16 %v3124
  %v3199 = vunpack.c.h.b16 %v3124
  %v3200 = vunpack.c.l.b16 %v3125
  %v3201 = vunpack.c.l.b16 %v3126
  %v3202 = vunpack.c.h.b16 %v3126
  %v3203 = vunpack.c.l.b16 %v3127
  %v3204 = vunpack.c.l.b16 %v3128
  %v3205 = vunpack.c.h.b16 %v3128
  %v3206 = vunpack.c.l.b16 %v3129
  %v3207 = vunpack.c.l.b16 %v3130
  %v3208 = vunpack.c.h.b16 %v3130
  %v3209 = vunpack.c.l.b16 %v3131
  %v3210 = vunpack.c.l.b16 %v3132
  %v3211 = vunpack.c.h.b16 %v3132
  %v3212 = vunpack.c.l.b16 %v3133
  %v3213 = vunpack.c.l.b16 %v3134
  %v3214 = vunpack.c.h.b16 %v3134
  %v3215 = vunpack.c.l.b16 %v3135
  %v3216 = vpack.c.b16 %v3171, %v3168
  %v3217 = vpack.c.b16 %v3172, %v3169
  %v3218 = vpack.c.b16 %v3173, %v3170
  %v3219 = vpack.c.b16 %v3177, %v3174
  %v3220 = vpack.c.b16 %v3178, %v3175
  %v3221 = vpack.c.b16 %v3179, %v3176
  %v3222 = vpack.c.b16 %v3183, %v3180
  %v3223 = vpack.c.b16 %v3184, %v3181
  %v3224 = vpack.c.b16 %v3185, %v3182
  %v3225 = vpack.c.b16 %v3189, %v3186
  %v3226 = vpack.c.b16 %v3190, %v3187
  %v3227 = vpack.c.b16 %v3191, %v3188
  %v3228 = vpack.c.b16 %v3195, %v3192
  %v3229 = vpack.c.b16 %v3196, %v3193
  %v3230 = vpack.c.b16 %v3197, %v3194
  %v3231 = vpack.c.b16 %v3201, %v3198
  %v3232 = vpack.c.b16 %v3202, %v3199
  %v3233 = vpack.c.b16 %v3203, %v3200
  %v3234 = vpack.c.b16 %v3207, %v3204
  %v3235 = vpack.c.b16 %v3208, %v3205
  %v3236 = vpack.c.b16 %v3209, %v3206
  %v3237 = vpack.c.b16 %v3213, %v3210
  %v3238 = vpack.c.b16 %v3214, %v3211
  %v3239 = vpack.c.b16 %v3215, %v3212
  %3264 = vmatprep.subr.bf16.mxu0 %v3238
  %3265 = vmatpush1.bf16.msra.mxu0 %v3237
  %3266 = vmatprep.subr.bf16.mxu0 %v3235
  %3267 = vmatpush1.bf16.msra.mxu0 %v3234
  %3268 = vmatprep.subr.bf16.mxu0 %v3232
  %3269 = vmatpush1.bf16.msra.mxu0 %v3231
  %3270 = vmatprep.subr.bf16.mxu0 %v3229
  %3271 = vmatpush1.bf16.msra.mxu0 %v3228
  %3272 = vmatprep.subr.bf16.mxu0 %v3226
  %3273 = vmatpush1.bf16.msra.mxu0 %v3225
  %3274 = vmatprep.subr.bf16.mxu0 %v3223
  %3275 = vmatpush1.bf16.msra.mxu0 %v3222
  %3276 = vmatprep.subr.bf16.mxu0 %v3220
  %3277 = vmatpush1.bf16.msra.mxu0 %v3219
  %3278 = vmatprep.subr.bf16.mxu0 %v3217
  %3279 = vmatpush1.bf16.msra.mxu0 %v3216
  %3280 = vmatprep.subr.bf16.mxu0 0
  %3281 = vmatpush2.bf16.msra.mxu0 0
  %3282 = vmatprep.subr.bf16.mxu0 0
  %3283 = vmatpush2.bf16.msra.mxu0 0
  %3284 = vmatprep.subr.bf16.mxu0 0
  %3285 = vmatpush2.bf16.msra.mxu0 0
  %3286 = vmatprep.subr.bf16.mxu0 0
  %3287 = vmatpush2.bf16.msra.mxu0 0
  %3288 = vmatprep.subr.bf16.mxu0 0
  %3289 = vmatpush2.bf16.msra.mxu0 0
  %3290 = vmatprep.subr.bf16.mxu0 0
  %3291 = vmatpush2.bf16.msra.mxu0 0
  %3292 = vmatprep.subr.bf16.mxu0 0
  %3293 = vmatpush2.bf16.msra.mxu0 0
  %3294 = vmatprep.subr.bf16.mxu0 0
  %3295 = vmatpush2.bf16.msra.mxu0 0
  %3296 = vmatprep.mubr.bf16.mxu0 0
  %3297 = vmatmul.mubr.bf16.gmra.mxu0 %v2609
  %v3298 = vpop.f32.mrf.mxu0
  %v3299 = vadd.f32 0.0, %v3298
  %v3300 = vpop.f32.mrf.mxu0
  %v3301 = vadd.f32 0.0, %v3300
  %v3302 = vpop.f32.mrf.mxu0
  %v3303 = vpop.f32.mrf.mxu0
  %3304 = vdwg.mxu0
  %3305 = vmatprep.subr.bf16.mxu0 0
  %3306 = vmatpush1.bf16.msra.mxu0 %v3239
  %3307 = vmatprep.subr.bf16.mxu0 0
  %3308 = vmatpush1.bf16.msra.mxu0 %v3236
  %3309 = vmatprep.subr.bf16.mxu0 0
  %3310 = vmatpush1.bf16.msra.mxu0 %v3233
  %3311 = vmatprep.subr.bf16.mxu0 0
  %3312 = vmatpush1.bf16.msra.mxu0 %v3230
  %3313 = vmatprep.subr.bf16.mxu0 0
  %3314 = vmatpush1.bf16.msra.mxu0 %v3227
  %3315 = vmatprep.subr.bf16.mxu0 0
  %3316 = vmatpush1.bf16.msra.mxu0 %v3224
  %3317 = vmatprep.subr.bf16.mxu0 0
  %3318 = vmatpush1.bf16.msra.mxu0 %v3221
  %3319 = vmatprep.subr.bf16.mxu0 0
  %3320 = vmatpush1.bf16.msra.mxu0 %v3218
  %3321 = vmatprep.subr.bf16.mxu0 0
  %3322 = vmatpush2.bf16.msra.mxu0 0
  %3323 = vmatprep.subr.bf16.mxu0 0
  %3324 = vmatpush2.bf16.msra.mxu0 0
  %3325 = vmatprep.subr.bf16.mxu0 0
  %3326 = vmatpush2.bf16.msra.mxu0 0
  %3327 = vmatprep.subr.bf16.mxu0 0
  %3328 = vmatpush2.bf16.msra.mxu0 0
  %3329 = vmatprep.subr.bf16.mxu0 0
  %3330 = vmatpush2.bf16.msra.mxu0 0
  %3331 = vmatprep.subr.bf16.mxu0 0
  %3332 = vmatpush2.bf16.msra.mxu0 0
  %3333 = vmatprep.subr.bf16.mxu0 0
  %3334 = vmatpush2.bf16.msra.mxu0 0
  %3335 = vmatprep.subr.bf16.mxu0 0
  %3336 = vmatpush2.bf16.msra.mxu0 0
  %3337 = vmatprep.mubr.bf16.mxu0 0
  %3338 = vmatmul.mubr.bf16.gmra.mxu0 %v2609
  %v3339 = vpop.f32.mrf.mxu0
  %v3340 = vadd.f32 0.0, %v3339
  %v3341 = vpop.f32.mrf.mxu0
  %v3342 = vpop.f32.mrf.mxu0
  %v3343 = vpop.f32.mrf.mxu0
  %3344 = vdwg.mxu0
  %v3345 = vadd.f32 %v3101, %v3299
  %v3346 = vxor.u32 %v3345, 2147483648
  %v3347 = vmul.f32 %v3346, 1.442695
  %v3348 = vpow.pop %v3347
  %v3349 = vadd.f32 %v3348, 1.0
  %v3350 = vrcp.pop %v3349
  %v3351 = vmul.f32 1.0, %v3350
  %v3352 = vadd.f32 %v3102, %v3301
  %v3353 = vxor.u32 %v3352, 2147483648
  %v3354 = vmul.f32 %v3353, 1.442695
  %v3355 = vpow.pop %v3354
  %v3356 = vadd.f32 %v3355, 1.0
  %v3357 = vrcp.pop %v3356
  %v3358 = vmul.f32 1.0, %v3357
  %v3359 = vadd.f32 %v3340, %v39
  %v3360 = vmul.f32 %v3351, %v3359
  %v3361 = vadd.f32 %v3103, %v3360
  %v3362 = vtanh.pop %v3361
  %v3363 = vsub.f32 1.0, %v3358
  %v3364 = vmul.f32 %v3363, %v3362
  %v3365 = vmul.f32 %v3358, %v2608
  %v3366 = vadd.f32 %v3364, %v3365
  %v3367 = vpack.c.bf16 %v3366, %v3366
  %v3368 = vld [vmem:[%s4] sm:$0xff]
  %v3369 = vld [vmem:[%s4 + $0x8] sm:$0xff]
  %v3370 = vld [vmem:[%s4 + $0x10] sm:$0xff]
  %v3371 = vld [vmem:[%s4 + $0x18] sm:$0xff]
  %v3372 = vld [vmem:[%s4 + $0x20] sm:$0xff]
  %v3373 = vld [vmem:[%s4 + $0x28] sm:$0xff]
  %v3374 = vld [vmem:[%s4 + $0x30] sm:$0xff]
  %v3375 = vld [vmem:[%s4 + $0x38] sm:$0xff]
  %v3376 = vld [vmem:[%s4 + $0x40] sm:$0xff]
  %v3377 = vld [vmem:[%s4 + $0x48] sm:$0xff]
  %v3378 = vld [vmem:[%s4 + $0x50] sm:$0xff]
  %v3379 = vld [vmem:[%s4 + $0x58] sm:$0xff]
  %v3380 = vld [vmem:[%s4 + $0x60] sm:$0xff]
  %v3381 = vld [vmem:[%s4 + $0x68] sm:$0xff]
  %v3382 = vld [vmem:[%s4 + $0x70] sm:$0xff]
  %v3383 = vld [vmem:[%s4 + $0x78] sm:$0xff]
  %v3384 = vld [vmem:[%s4 + $0x80] sm:$0xff]
  %v3385 = vld [vmem:[%s4 + $0x88] sm:$0xff]
  %v3386 = vld [vmem:[%s4 + $0x90] sm:$0xff]
  %v3387 = vld [vmem:[%s4 + $0x98] sm:$0xff]
  %v3388 = vld [vmem:[%s4 + $0xa0] sm:$0xff]
  %v3389 = vld [vmem:[%s4 + $0xa8] sm:$0xff]
  %v3390 = vld [vmem:[%s4 + $0xb0] sm:$0xff]
  %v3391 = vld [vmem:[%s4 + $0xb8] sm:$0xff]
  %v3392 = vld [vmem:[%s4 + $0xc0] sm:$0xff]
  %v3393 = vld [vmem:[%s4 + $0xc8] sm:$0xff]
  %v3394 = vld [vmem:[%s4 + $0xd0] sm:$0xff]
  %v3395 = vld [vmem:[%s4 + $0xd8] sm:$0xff]
  %v3396 = vld [vmem:[%s4 + $0xe0] sm:$0xff]
  %v3397 = vld [vmem:[%s4 + $0xe8] sm:$0xff]
  %v3398 = vld [vmem:[%s4 + $0xf0] sm:$0xff]
  %v3399 = vld [vmem:[%s4 + $0xf8] sm:$0xff]
  %v3400 = vld [vmem:[%s4 + $0x100] sm:$0xff]
  %v3401 = vld [vmem:[%s4 + $0x108] sm:$0xff]
  %v3402 = vld [vmem:[%s4 + $0x110] sm:$0xff]
  %v3403 = vld [vmem:[%s4 + $0x118] sm:$0xff]
  %v3404 = vld [vmem:[%s4 + $0x120] sm:$0xff]
  %v3405 = vld [vmem:[%s4 + $0x128] sm:$0xff]
  %v3406 = vld [vmem:[%s4 + $0x130] sm:$0xff]
  %v3407 = vld [vmem:[%s4 + $0x138] sm:$0xff]
  %v3408 = vld [vmem:[%s4 + $0x140] sm:$0xff]
  %v3409 = vld [vmem:[%s4 + $0x148] sm:$0xff]
  %v3410 = vld [vmem:[%s4 + $0x150] sm:$0xff]
  %v3411 = vld [vmem:[%s4 + $0x158] sm:$0xff]
  %v3412 = vld [vmem:[%s4 + $0x160] sm:$0xff]
  %v3413 = vld [vmem:[%s4 + $0x168] sm:$0xff]
  %v3414 = vld [vmem:[%s4 + $0x170] sm:$0xff]
  %v3415 = vld [vmem:[%s4 + $0x178] sm:$0xff]
  %v3416 = vld [vmem:[%s4 + $0x180] sm:$0xff]
  %v3417 = vld [vmem:[%s4 + $0x188] sm:$0xff]
  %v3418 = vld [vmem:[%s4 + $0x190] sm:$0xff]
  %v3419 = vld [vmem:[%s4 + $0x198] sm:$0xff]
  %v3420 = vld [vmem:[%s4 + $0x1a0] sm:$0xff]
  %v3421 = vld [vmem:[%s4 + $0x1a8] sm:$0xff]
  %v3422 = vld [vmem:[%s4 + $0x1b0] sm:$0xff]
  %v3423 = vld [vmem:[%s4 + $0x1b8] sm:$0xff]
  %v3424 = vld [vmem:[%s4 + $0x1c0] sm:$0xff]
  %v3425 = vld [vmem:[%s4 + $0x1c8] sm:$0xff]
  %v3426 = vld [vmem:[%s4 + $0x1d0] sm:$0xff]
  %v3427 = vld [vmem:[%s4 + $0x1d8] sm:$0xff]
  %v3428 = vld [vmem:[%s4 + $0x1e0] sm:$0xff]
  %v3429 = vld [vmem:[%s4 + $0x1e8] sm:$0xff]
  %v3430 = vld [vmem:[%s4 + $0x1f0] sm:$0xff]
  %v3431 = vld [vmem:[%s4 + $0x1f8] sm:$0xff]
  %v3496 = vunpack.c.l.b16 %v3368
  %v3497 = vunpack.c.h.b16 %v3368
  %v3498 = vunpack.c.l.b16 %v3369
  %v3499 = vunpack.c.h.b16 %v3369
  %v3500 = vunpack.c.l.b16 %v3370
  %v3501 = vunpack.c.h.b16 %v3370
  %v3502 = vunpack.c.l.b16 %v3371
  %v3503 = vunpack.c.h.b16 %v3371
  %v3504 = vunpack.c.l.b16 %v3372
  %v3505 = vunpack.c.h.b16 %v3372
  %v3506 = vunpack.c.l.b16 %v3373
  %v3507 = vunpack.c.h.b16 %v3373
  %v3508 = vunpack.c.l.b16 %v3374
  %v3509 = vunpack.c.h.b16 %v3374
  %v3510 = vunpack.c.l.b16 %v3375
  %v3511 = vunpack.c.h.b16 %v3375
  %v3512 = vunpack.c.l.b16 %v3376
  %v3513 = vunpack.c.h.b16 %v3376
  %v3514 = vunpack.c.l.b16 %v3377
  %v3515 = vunpack.c.h.b16 %v3377
  %v3516 = vunpack.c.l.b16 %v3378
  %v3517 = vunpack.c.h.b16 %v3378
  %v3518 = vunpack.c.l.b16 %v3379
  %v3519 = vunpack.c.h.b16 %v3379
  %v3520 = vunpack.c.l.b16 %v3380
  %v3521 = vunpack.c.h.b16 %v3380
  %v3522 = vunpack.c.l.b16 %v3381
  %v3523 = vunpack.c.h.b16 %v3381
  %v3524 = vunpack.c.l.b16 %v3382
  %v3525 = vunpack.c.h.b16 %v3382
  %v3526 = vunpack.c.l.b16 %v3383
  %v3527 = vunpack.c.h.b16 %v3383
  %v3528 = vunpack.c.l.b16 %v3384
  %v3529 = vunpack.c.h.b16 %v3384
  %v3530 = vunpack.c.l.b16 %v3385
  %v3531 = vunpack.c.h.b16 %v3385
  %v3532 = vunpack.c.l.b16 %v3386
  %v3533 = vunpack.c.h.b16 %v3386
  %v3534 = vunpack.c.l.b16 %v3387
  %v3535 = vunpack.c.h.b16 %v3387
  %v3536 = vunpack.c.l.b16 %v3388
  %v3537 = vunpack.c.h.b16 %v3388
  %v3538 = vunpack.c.l.b16 %v3389
  %v3539 = vunpack.c.h.b16 %v3389
  %v3540 = vunpack.c.l.b16 %v3390
  %v3541 = vunpack.c.h.b16 %v3390
  %v3542 = vunpack.c.l.b16 %v3391
  %v3543 = vunpack.c.h.b16 %v3391
  %v3544 = vunpack.c.l.b16 %v3392
  %v3545 = vunpack.c.h.b16 %v3392
  %v3546 = vunpack.c.l.b16 %v3393
  %v3547 = vunpack.c.h.b16 %v3393
  %v3548 = vunpack.c.l.b16 %v3394
  %v3549 = vunpack.c.h.b16 %v3394
  %v3550 = vunpack.c.l.b16 %v3395
  %v3551 = vunpack.c.h.b16 %v3395
  %v3552 = vunpack.c.l.b16 %v3396
  %v3553 = vunpack.c.h.b16 %v3396
  %v3554 = vunpack.c.l.b16 %v3397
  %v3555 = vunpack.c.h.b16 %v3397
  %v3556 = vunpack.c.l.b16 %v3398
  %v3557 = vunpack.c.h.b16 %v3398
  %v3558 = vunpack.c.l.b16 %v3399
  %v3559 = vunpack.c.h.b16 %v3399
  %v3560 = vunpack.c.l.b16 %v3400
  %v3561 = vunpack.c.h.b16 %v3400
  %v3562 = vunpack.c.l.b16 %v3401
  %v3563 = vunpack.c.h.b16 %v3401
  %v3564 = vunpack.c.l.b16 %v3402
  %v3565 = vunpack.c.h.b16 %v3402
  %v3566 = vunpack.c.l.b16 %v3403
  %v3567 = vunpack.c.h.b16 %v3403
  %v3568 = vunpack.c.l.b16 %v3404
  %v3569 = vunpack.c.h.b16 %v3404
  %v3570 = vunpack.c.l.b16 %v3405
  %v3571 = vunpack.c.h.b16 %v3405
  %v3572 = vunpack.c.l.b16 %v3406
  %v3573 = vunpack.c.h.b16 %v3406
  %v3574 = vunpack.c.l.b16 %v3407
  %v3575 = vunpack.c.h.b16 %v3407
  %v3576 = vunpack.c.l.b16 %v3408
  %v3577 = vunpack.c.h.b16 %v3408
  %v3578 = vunpack.c.l.b16 %v3409
  %v3579 = vunpack.c.h.b16 %v3409
  %v3580 = vunpack.c.l.b16 %v3410
  %v3581 = vunpack.c.h.b16 %v3410
  %v3582 = vunpack.c.l.b16 %v3411
  %v3583 = vunpack.c.h.b16 %v3411
  %v3584 = vunpack.c.l.b16 %v3412
  %v3585 = vunpack.c.h.b16 %v3412
  %v3586 = vunpack.c.l.b16 %v3413
  %v3587 = vunpack.c.h.b16 %v3413
  %v3588 = vunpack.c.l.b16 %v3414
  %v3589 = vunpack.c.h.b16 %v3414
  %v3590 = vunpack.c.l.b16 %v3415
  %v3591 = vunpack.c.h.b16 %v3415
  %v3592 = vunpack.c.l.b16 %v3416
  %v3593 = vunpack.c.h.b16 %v3416
  %v3594 = vunpack.c.l.b16 %v3417
  %v3595 = vunpack.c.h.b16 %v3417
  %v3596 = vunpack.c.l.b16 %v3418
  %v3597 = vunpack.c.h.b16 %v3418
  %v3598 = vunpack.c.l.b16 %v3419
  %v3599 = vunpack.c.h.b16 %v3419
  %v3600 = vunpack.c.l.b16 %v3420
  %v3601 = vunpack.c.h.b16 %v3420
  %v3602 = vunpack.c.l.b16 %v3421
  %v3603 = vunpack.c.h.b16 %v3421
  %v3604 = vunpack.c.l.b16 %v3422
  %v3605 = vunpack.c.h.b16 %v3422
  %v3606 = vunpack.c.l.b16 %v3423
  %v3607 = vunpack.c.h.b16 %v3423
  %v3608 = vunpack.c.l.b16 %v3424
  %v3609 = vunpack.c.h.b16 %v3424
  %v3610 = vunpack.c.l.b16 %v3425
  %v3611 = vunpack.c.h.b16 %v3425
  %v3612 = vunpack.c.l.b16 %v3426
  %v3613 = vunpack.c.h.b16 %v3426
  %v3614 = vunpack.c.l.b16 %v3427
  %v3615 = vunpack.c.h.b16 %v3427
  %v3616 = vunpack.c.l.b16 %v3428
  %v3617 = vunpack.c.h.b16 %v3428
  %v3618 = vunpack.c.l.b16 %v3429
  %v3619 = vunpack.c.h.b16 %v3429
  %v3620 = vunpack.c.l.b16 %v3430
  %v3621 = vunpack.c.h.b16 %v3430
  %v3622 = vunpack.c.l.b16 %v3431
  %v3623 = vunpack.c.h.b16 %v3431
  %v3624 = vpack.c.b16 %v3500, %v3496
  %v3625 = vpack.c.b16 %v3501, %v3497
  %v3626 = vpack.c.b16 %v3502, %v3498
  %v3627 = vpack.c.b16 %v3503, %v3499
  %v3628 = vpack.c.b16 %v3508, %v3504
  %v3629 = vpack.c.b16 %v3509, %v3505
  %v3630 = vpack.c.b16 %v3510, %v3506
  %v3631 = vpack.c.b16 %v3511, %v3507
  %v3632 = vpack.c.b16 %v3516, %v3512
  %v3633 = vpack.c.b16 %v3517, %v3513
  %v3634 = vpack.c.b16 %v3518, %v3514
  %v3635 = vpack.c.b16 %v3519, %v3515
  %v3636 = vpack.c.b16 %v3524, %v3520
  %v3637 = vpack.c.b16 %v3525, %v3521
  %v3638 = vpack.c.b16 %v3526, %v3522
  %v3639 = vpack.c.b16 %v3527, %v3523
  %v3640 = vpack.c.b16 %v3532, %v3528
  %v3641 = vpack.c.b16 %v3533, %v3529
  %v3642 = vpack.c.b16 %v3534, %v3530
  %v3643 = vpack.c.b16 %v3535, %v3531
  %v3644 = vpack.c.b16 %v3540, %v3536
  %v3645 = vpack.c.b16 %v3541, %v3537
  %v3646 = vpack.c.b16 %v3542, %v3538
  %v3647 = vpack.c.b16 %v3543, %v3539
  %v3648 = vpack.c.b16 %v3548, %v3544
  %v3649 = vpack.c.b16 %v3549, %v3545
  %v3650 = vpack.c.b16 %v3550, %v3546
  %v3651 = vpack.c.b16 %v3551, %v3547
  %v3652 = vpack.c.b16 %v3556, %v3552
  %v3653 = vpack.c.b16 %v3557, %v3553
  %v3654 = vpack.c.b16 %v3558, %v3554
  %v3655 = vpack.c.b16 %v3559, %v3555
  %v3656 = vpack.c.b16 %v3564, %v3560
  %v3657 = vpack.c.b16 %v3565, %v3561
  %v3658 = vpack.c.b16 %v3566, %v3562
  %v3659 = vpack.c.b16 %v3567, %v3563
  %v3660 = vpack.c.b16 %v3572, %v3568
  %v3661 = vpack.c.b16 %v3573, %v3569
  %v3662 = vpack.c.b16 %v3574, %v3570
  %v3663 = vpack.c.b16 %v3575, %v3571
  %v3664 = vpack.c.b16 %v3580, %v3576
  %v3665 = vpack.c.b16 %v3581, %v3577
  %v3666 = vpack.c.b16 %v3582, %v3578
  %v3667 = vpack.c.b16 %v3583, %v3579
  %v3668 = vpack.c.b16 %v3588, %v3584
  %v3669 = vpack.c.b16 %v3589, %v3585
  %v3670 = vpack.c.b16 %v3590, %v3586
  %v3671 = vpack.c.b16 %v3591, %v3587
  %v3672 = vpack.c.b16 %v3596, %v3592
  %v3673 = vpack.c.b16 %v3597, %v3593
  %v3674 = vpack.c.b16 %v3598, %v3594
  %v3675 = vpack.c.b16 %v3599, %v3595
  %v3676 = vpack.c.b16 %v3604, %v3600
  %v3677 = vpack.c.b16 %v3605, %v3601
  %v3678 = vpack.c.b16 %v3606, %v3602
  %v3679 = vpack.c.b16 %v3607, %v3603
  %v3680 = vpack.c.b16 %v3612, %v3608
  %v3681 = vpack.c.b16 %v3613, %v3609
  %v3682 = vpack.c.b16 %v3614, %v3610
  %v3683 = vpack.c.b16 %v3615, %v3611
  %v3684 = vpack.c.b16 %v3620, %v3616
  %v3685 = vpack.c.b16 %v3621, %v3617
  %v3686 = vpack.c.b16 %v3622, %v3618
  %v3687 = vpack.c.b16 %v3623, %v3619
  %3752 = vmatprep.subr.bf16.mxu0 %v3653
  %3753 = vmatpush1.bf16.msra.mxu0 %v3652
  %3754 = vmatprep.subr.bf16.mxu0 %v3649
  %3755 = vmatpush1.bf16.msra.mxu0 %v3648
  %3756 = vmatprep.subr.bf16.mxu0 %v3645
  %3757 = vmatpush1.bf16.msra.mxu0 %v3644
  %3758 = vmatprep.subr.bf16.mxu0 %v3641
  %3759 = vmatpush1.bf16.msra.mxu0 %v3640
  %3760 = vmatprep.subr.bf16.mxu0 %v3637
  %3761 = vmatpush1.bf16.msra.mxu0 %v3636
  %3762 = vmatprep.subr.bf16.mxu0 %v3633
  %3763 = vmatpush1.bf16.msra.mxu0 %v3632
  %3764 = vmatprep.subr.bf16.mxu0 %v3629
  %3765 = vmatpush1.bf16.msra.mxu0 %v3628
  %3766 = vmatprep.subr.bf16.mxu0 %v3625
  %3767 = vmatpush1.bf16.msra.mxu0 %v3624
  %3768 = vmatprep.subr.bf16.mxu0 %v3685
  %3769 = vmatpush2.bf16.msra.mxu0 %v3684
  %3770 = vmatprep.subr.bf16.mxu0 %v3681
  %3771 = vmatpush2.bf16.msra.mxu0 %v3680
  %3772 = vmatprep.subr.bf16.mxu0 %v3677
  %3773 = vmatpush2.bf16.msra.mxu0 %v3676
  %3774 = vmatprep.subr.bf16.mxu0 %v3673
  %3775 = vmatpush2.bf16.msra.mxu0 %v3672
  %3776 = vmatprep.subr.bf16.mxu0 %v3669
  %3777 = vmatpush2.bf16.msra.mxu0 %v3668
  %3778 = vmatprep.subr.bf16.mxu0 %v3665
  %3779 = vmatpush2.bf16.msra.mxu0 %v3664
  %3780 = vmatprep.subr.bf16.mxu0 %v3661
  %3781 = vmatpush2.bf16.msra.mxu0 %v3660
  %3782 = vmatprep.subr.bf16.mxu0 %v3657
  %3783 = vmatpush2.bf16.msra.mxu0 %v3656
  %3784 = vmatprep.mubr.bf16.mxu0 %v3095
  %3785 = vmatmul.mubr.bf16.gmra.mxu0 %v3367
  %v3786 = vpop.f32.mrf.mxu0
  %v3787 = vadd.f32 %v46, %v3786
  %v3788 = vpop.f32.mrf.mxu0
  %v3789 = vadd.f32 %v50, %v3788
  %v3790 = vpop.f32.mrf.mxu0
  %v3791 = vpop.f32.mrf.mxu0
  %3792 = vdwg.mxu0
  %3793 = vmatprep.subr.bf16.mxu0 %v3655
  %3794 = vmatpush1.bf16.msra.mxu0 %v3654
  %3795 = vmatprep.subr.bf16.mxu0 %v3651
  %3796 = vmatpush1.bf16.msra.mxu0 %v3650
  %3797 = vmatprep.subr.bf16.mxu0 %v3647
  %3798 = vmatpush1.bf16.msra.mxu0 %v3646
  %3799 = vmatprep.subr.bf16.mxu0 %v3643
  %3800 = vmatpush1.bf16.msra.mxu0 %v3642
  %3801 = vmatprep.subr.bf16.mxu0 %v3639
  %3802 = vmatpush1.bf16.msra.mxu0 %v3638
  %3803 = vmatprep.subr.bf16.mxu0 %v3635
  %3804 = vmatpush1.bf16.msra.mxu0 %v3634
  %3805 = vmatprep.subr.bf16.mxu0 %v3631
  %3806 = vmatpush1.bf16.msra.mxu0 %v3630
  %3807 = vmatprep.subr.bf16.mxu0 %v3627
  %3808 = vmatpush1.bf16.msra.mxu0 %v3626
  %3809 = vmatprep.subr.bf16.mxu0 %v3687
  %3810 = vmatpush2.bf16.msra.mxu0 %v3686
  %3811 = vmatprep.subr.bf16.mxu0 %v3683
  %3812 = vmatpush2.bf16.msra.mxu0 %v3682
  %3813 = vmatprep.subr.bf16.mxu0 %v3679
  %3814 = vmatpush2.bf16.msra.mxu0 %v3678
  %3815 = vmatprep.subr.bf16.mxu0 %v3675
  %3816 = vmatpush2.bf16.msra.mxu0 %v3674
  %3817 = vmatprep.subr.bf16.mxu0 %v3671
  %3818 = vmatpush2.bf16.msra.mxu0 %v3670
  %3819 = vmatprep.subr.bf16.mxu0 %v3667
  %3820 = vmatpush2.bf16.msra.mxu0 %v3666
  %3821 = vmatprep.subr.bf16.mxu0 %v3663
  %3822 = vmatpush2.bf16.msra.mxu0 %v3662
  %3823 = vmatprep.subr.bf16.mxu0 %v3659
  %3824 = vmatpush2.bf16.msra.mxu0 %v3658
  %3825 = vmatprep.mubr.bf16.mxu0 %v3095
  %3826 = vmatmul.mubr.bf16.gmra.mxu0 %v3367
  %v3827 = vpop.f32.mrf.mxu0
  %v3828 = vadd.f32 %v54, %v3827
  %v3829 = vpop.f32.mrf.mxu0
  %v3830 = vadd.f32 %v58, %v3829
  %v3831 = vpop.f32.mrf.mxu0
  %v3832 = vpop.f32.mrf.mxu0
  %3833 = vdwg.mxu0
  %v3834 = vxor.u32 %v3787, 2147483648
  %v3835 = vmul.f32 %v3834, 1.442695
  %v3836 = vpow.pop %v3835
  %v3837 = vadd.f32 %v3836, 1.0
  %v3838 = vrcp.pop %v3837
  %v3839 = vmul.f32 1.0, %v3838
  %v3840 = vxor.u32 %v3789, 2147483648
  %v3841 = vmul.f32 %v3840, 1.442695
  %v3842 = vpow.pop %v3841
  %v3843 = vadd.f32 %v3842, 1.0
  %v3844 = vrcp.pop %v3843
  %v3845 = vmul.f32 1.0, %v3844
  %v3846 = vmul.f32 %v3839, %v3830
  %v3847 = vadd.f32 %v3828, %v3846
  %v3848 = vtanh.pop %v3847
  %v3849 = vsub.f32 1.0, %v3845
  %v3850 = vmul.f32 %v3849, %v3848
  %v3851 = vmul.f32 %v3845, %v3094
  %v3852 = vadd.f32 %v3850, %v3851
  %v3853 = vpack.c.bf16 %v3852, %v3852
  %s3854 = scalar_lea.vmem %s6, 16
  %3855 = vst [vmem:[%s3854] sm:$0xf] %v3853
  %s3856 = scalar_lea.vmem %s0, 60
  %v3857 = vld [vmem:[%s3856] sm:$0xff]
  %v3858 = vld [vmem:[%s3856 + $0x8] sm:$0xf]
  %v3859 = vunpack.c.l.bf16 %v3857
  %v3860 = vunpack.c.h.bf16 %v3857
  %v3861 = vunpack.c.l.bf16 %v3858
  %v3862 = vld [vmem:[%s2] sm:$0xff]
  %v3863 = vld [vmem:[%s2 + $0x8] sm:$0xf]
  %v3864 = vld [vmem:[%s2 + $0xc] sm:$0xff]
  %v3865 = vld [vmem:[%s2 + $0x14] sm:$0xf]
  %v3866 = vld [vmem:[%s2 + $0x18] sm:$0xff]
  %v3867 = vld [vmem:[%s2 + $0x20] sm:$0xf]
  %v3868 = vld [vmem:[%s2 + $0x24] sm:$0xff]
  %v3869 = vld [vmem:[%s2 + $0x2c] sm:$0xf]
  %v3870 = vld [vmem:[%s2 + $0x30] sm:$0xff]
  %v3871 = vld [vmem:[%s2 + $0x38] sm:$0xf]
  %v3872 = vld [vmem:[%s2 + $0x3c] sm:$0xff]
  %v3873 = vld [vmem:[%s2 + $0x44] sm:$0xf]
  %v3874 = vld [vmem:[%s2 + $0x48] sm:$0xff]
  %v3875 = vld [vmem:[%s2 + $0x50] sm:$0xf]
  %v3876 = vld [vmem:[%s2 + $0x54] sm:$0xff]
  %v3877 = vld [vmem:[%s2 + $0x5c] sm:$0xf]
  %v3878 = vld [vmem:[%s2 + $0x60] sm:$0xff]
  %v3879 = vld [vmem:[%s2 + $0x68] sm:$0xf]
  %v3880 = vld [vmem:[%s2 + $0x6c] sm:$0xff]
  %v3881 = vld [vmem:[%s2 + $0x74] sm:$0xf]
  %v3882 = vld [vmem:[%s2 + $0x78] sm:$0xff]
  %v3883 = vld [vmem:[%s2 + $0x80] sm:$0xf]
  %v3884 = vld [vmem:[%s2 + $0x84] sm:$0xff]
  %v3885 = vld [vmem:[%s2 + $0x8c] sm:$0xf]
  %v3886 = vld [vmem:[%s2 + $0x90] sm:$0xff]
  %v3887 = vld [vmem:[%s2 + $0x98] sm:$0xf]
  %v3888 = vld [vmem:[%s2 + $0x9c] sm:$0xff]
  %v3889 = vld [vmem:[%s2 + $0xa4] sm:$0xf]
  %v3890 = vld [vmem:[%s2 + $0xa8] sm:$0xff]
  %v3891 = vld [vmem:[%s2 + $0xb0] sm:$0xf]
  %v3892 = vld [vmem:[%s2 + $0xb4] sm:$0xff]
  %v3893 = vld [vmem:[%s2 + $0xbc] sm:$0xf]
  %v3926 = vunpack.c.l.b16 %v3862
  %v3927 = vunpack.c.h.b16 %v3862
  %v3928 = vunpack.c.l.b16 %v3863
  %v3929 = vunpack.c.l.b16 %v3864
  %v3930 = vunpack.c.h.b16 %v3864
  %v3931 = vunpack.c.l.b16 %v3865
  %v3932 = vunpack.c.l.b16 %v3866
  %v3933 = vunpack.c.h.b16 %v3866
  %v3934 = vunpack.c.l.b16 %v3867
  %v3935 = vunpack.c.l.b16 %v3868
  %v3936 = vunpack.c.h.b16 %v3868
  %v3937 = vunpack.c.l.b16 %v3869
  %v3938 = vunpack.c.l.b16 %v3870
  %v3939 = vunpack.c.h.b16 %v3870
  %v3940 = vunpack.c.l.b16 %v3871
  %v3941 = vunpack.c.l.b16 %v3872
  %v3942 = vunpack.c.h.b16 %v3872
  %v3943 = vunpack.c.l.b16 %v3873
  %v3944 = vunpack.c.l.b16 %v3874
  %v3945 = vunpack.c.h.b16 %v3874
  %v3946 = vunpack.c.l.b16 %v3875
  %v3947 = vunpack.c.l.b16 %v3876
  %v3948 = vunpack.c.h.b16 %v3876
  %v3949 = vunpack.c.l.b16 %v3877
  %v3950 = vunpack.c.l.b16 %v3878
  %v3951 = vunpack.c.h.b16 %v3878
  %v3952 = vunpack.c.l.b16 %v3879
  %v3953 = vunpack.c.l.b16 %v3880
  %v3954 = vunpack.c.h.b16 %v3880
  %v3955 = vunpack.c.l.b16 %v3881
  %v3956 = vunpack.c.l.b16 %v3882
  %v3957 = vunpack.c.h.b16 %v3882
  %v3958 = vunpack.c.l.b16 %v3883
  %v3959 = vunpack.c.l.b16 %v3884
  %v3960 = vunpack.c.h.b16 %v3884
  %v3961 = vunpack.c.l.b16 %v3885
  %v3962 = vunpack.c.l.b16 %v3886
  %v3963 = vunpack.c.h.b16 %v3886
  %v3964 = vunpack.c.l.b16 %v3887
  %v3965 = vunpack.c.l.b16 %v3888
  %v3966 = vunpack.c.h.b16 %v3888
  %v3967 = vunpack.c.l.b16 %v3889
  %v3968 = vunpack.c.l.b16 %v3890
  %v3969 = vunpack.c.h.b16 %v3890
  %v3970 = vunpack.c.l.b16 %v3891
  %v3971 = vunpack.c.l.b16 %v3892
  %v3972 = vunpack.c.h.b16 %v3892
  %v3973 = vunpack.c.l.b16 %v3893
  %v3974 = vpack.c.b16 %v3929, %v3926
  %v3975 = vpack.c.b16 %v3930, %v3927
  %v3976 = vpack.c.b16 %v3931, %v3928
  %v3977 = vpack.c.b16 %v3935, %v3932
  %v3978 = vpack.c.b16 %v3936, %v3933
  %v3979 = vpack.c.b16 %v3937, %v3934
  %v3980 = vpack.c.b16 %v3941, %v3938
  %v3981 = vpack.c.b16 %v3942, %v3939
  %v3982 = vpack.c.b16 %v3943, %v3940
  %v3983 = vpack.c.b16 %v3947, %v3944
  %v3984 = vpack.c.b16 %v3948, %v3945
  %v3985 = vpack.c.b16 %v3949, %v3946
  %v3986 = vpack.c.b16 %v3953, %v3950
  %v3987 = vpack.c.b16 %v3954, %v3951
  %v3988 = vpack.c.b16 %v3955, %v3952
  %v3989 = vpack.c.b16 %v3959, %v3956
  %v3990 = vpack.c.b16 %v3960, %v3957
  %v3991 = vpack.c.b16 %v3961, %v3958
  %v3992 = vpack.c.b16 %v3965, %v3962
  %v3993 = vpack.c.b16 %v3966, %v3963
  %v3994 = vpack.c.b16 %v3967, %v3964
  %v3995 = vpack.c.b16 %v3971, %v3968
  %v3996 = vpack.c.b16 %v3972, %v3969
  %v3997 = vpack.c.b16 %v3973, %v3970
  %4022 = vmatprep.subr.bf16.mxu0 %v3996
  %4023 = vmatpush1.bf16.msra.mxu0 %v3995
  %4024 = vmatprep.subr.bf16.mxu0 %v3993
  %4025 = vmatpush1.bf16.msra.mxu0 %v3992
  %4026 = vmatprep.subr.bf16.mxu0 %v3990
  %4027 = vmatpush1.bf16.msra.mxu0 %v3989
  %4028 = vmatprep.subr.bf16.mxu0 %v3987
  %4029 = vmatpush1.bf16.msra.mxu0 %v3986
  %4030 = vmatprep.subr.bf16.mxu0 %v3984
  %4031 = vmatpush1.bf16.msra.mxu0 %v3983
  %4032 = vmatprep.subr.bf16.mxu0 %v3981
  %4033 = vmatpush1.bf16.msra.mxu0 %v3980
  %4034 = vmatprep.subr.bf16.mxu0 %v3978
  %4035 = vmatpush1.bf16.msra.mxu0 %v3977
  %4036 = vmatprep.subr.bf16.mxu0 %v3975
  %4037 = vmatpush1.bf16.msra.mxu0 %v3974
  %4038 = vmatprep.subr.bf16.mxu0 0
  %4039 = vmatpush2.bf16.msra.mxu0 0
  %4040 = vmatprep.subr.bf16.mxu0 0
  %4041 = vmatpush2.bf16.msra.mxu0 0
  %4042 = vmatprep.subr.bf16.mxu0 0
  %4043 = vmatpush2.bf16.msra.mxu0 0
  %4044 = vmatprep.subr.bf16.mxu0 0
  %4045 = vmatpush2.bf16.msra.mxu0 0
  %4046 = vmatprep.subr.bf16.mxu0 0
  %4047 = vmatpush2.bf16.msra.mxu0 0
  %4048 = vmatprep.subr.bf16.mxu0 0
  %4049 = vmatpush2.bf16.msra.mxu0 0
  %4050 = vmatprep.subr.bf16.mxu0 0
  %4051 = vmatpush2.bf16.msra.mxu0 0
  %4052 = vmatprep.subr.bf16.mxu0 0
  %4053 = vmatpush2.bf16.msra.mxu0 0
  %4054 = vmatprep.mubr.bf16.mxu0 0
  %4055 = vmatmul.mubr.bf16.gmra.mxu0 %v3367
  %v4056 = vpop.f32.mrf.mxu0
  %v4057 = vadd.f32 0.0, %v4056
  %v4058 = vpop.f32.mrf.mxu0
  %v4059 = vadd.f32 0.0, %v4058
  %v4060 = vpop.f32.mrf.mxu0
  %v4061 = vpop.f32.mrf.mxu0
  %4062 = vdwg.mxu0
  %4063 = vmatprep.subr.bf16.mxu0 0
  %4064 = vmatpush1.bf16.msra.mxu0 %v3997
  %4065 = vmatprep.subr.bf16.mxu0 0
  %4066 = vmatpush1.bf16.msra.mxu0 %v3994
  %4067 = vmatprep.subr.bf16.mxu0 0
  %4068 = vmatpush1.bf16.msra.mxu0 %v3991
  %4069 = vmatprep.subr.bf16.mxu0 0
  %4070 = vmatpush1.bf16.msra.mxu0 %v3988
  %4071 = vmatprep.subr.bf16.mxu0 0
  %4072 = vmatpush1.bf16.msra.mxu0 %v3985
  %4073 = vmatprep.subr.bf16.mxu0 0
  %4074 = vmatpush1.bf16.msra.mxu0 %v3982
  %4075 = vmatprep.subr.bf16.mxu0 0
  %4076 = vmatpush1.bf16.msra.mxu0 %v3979
  %4077 = vmatprep.subr.bf16.mxu0 0
  %4078 = vmatpush1.bf16.msra.mxu0 %v3976
  %4079 = vmatprep.subr.bf16.mxu0 0
  %4080 = vmatpush2.bf16.msra.mxu0 0
  %4081 = vmatprep.subr.bf16.mxu0 0
  %4082 = vmatpush2.bf16.msra.mxu0 0
  %4083 = vmatprep.subr.bf16.mxu0 0
  %4084 = vmatpush2.bf16.msra.mxu0 0
  %4085 = vmatprep.subr.bf16.mxu0 0
  %4086 = vmatpush2.bf16.msra.mxu0 0
  %4087 = vmatprep.subr.bf16.mxu0 0
  %4088 = vmatpush2.bf16.msra.mxu0 0
  %4089 = vmatprep.subr.bf16.mxu0 0
  %4090 = vmatpush2.bf16.msra.mxu0 0
  %4091 = vmatprep.subr.bf16.mxu0 0
  %4092 = vmatpush2.bf16.msra.mxu0 0
  %4093 = vmatprep.subr.bf16.mxu0 0
  %4094 = vmatpush2.bf16.msra.mxu0 0
  %4095 = vmatprep.mubr.bf16.mxu0 0
  %4096 = vmatmul.mubr.bf16.gmra.mxu0 %v3367
  %v4097 = vpop.f32.mrf.mxu0
  %v4098 = vadd.f32 0.0, %v4097
  %v4099 = vpop.f32.mrf.mxu0
  %v4100 = vpop.f32.mrf.mxu0
  %v4101 = vpop.f32.mrf.mxu0
  %4102 = vdwg.mxu0
  %v4103 = vadd.f32 %v3859, %v4057
  %v4104 = vxor.u32 %v4103, 2147483648
  %v4105 = vmul.f32 %v4104, 1.442695
  %v4106 = vpow.pop %v4105
  %v4107 = vadd.f32 %v4106, 1.0
  %v4108 = vrcp.pop %v4107
  %v4109 = vmul.f32 1.0, %v4108
  %v4110 = vadd.f32 %v3860, %v4059
  %v4111 = vxor.u32 %v4110, 2147483648
  %v4112 = vmul.f32 %v4111, 1.442695
  %v4113 = vpow.pop %v4112
  %v4114 = vadd.f32 %v4113, 1.0
  %v4115 = vrcp.pop %v4114
  %v4116 = vmul.f32 1.0, %v4115
  %v4117 = vadd.f32 %v4098, %v39
  %v4118 = vmul.f32 %v4109, %v4117
  %v4119 = vadd.f32 %v3861, %v4118
  %v4120 = vtanh.pop %v4119
  %v4121 = vsub.f32 1.0, %v4116
  %v4122 = vmul.f32 %v4121, %v4120
  %v4123 = vmul.f32 %v4116, %v3366
  %v4124 = vadd.f32 %v4122, %v4123
  %v4125 = vpack.c.bf16 %v4124, %v4124
  %v4126 = vld [vmem:[%s4] sm:$0xff]
  %v4127 = vld [vmem:[%s4 + $0x8] sm:$0xff]
  %v4128 = vld [vmem:[%s4 + $0x10] sm:$0xff]
  %v4129 = vld [vmem:[%s4 + $0x18] sm:$0xff]
  %v4130 = vld [vmem:[%s4 + $0x20] sm:$0xff]
  %v4131 = vld [vmem:[%s4 + $0x28] sm:$0xff]
  %v4132 = vld [vmem:[%s4 + $0x30] sm:$0xff]
  %v4133 = vld [vmem:[%s4 + $0x38] sm:$0xff]
  %v4134 = vld [vmem:[%s4 + $0x40] sm:$0xff]
  %v4135 = vld [vmem:[%s4 + $0x48] sm:$0xff]
  %v4136 = vld [vmem:[%s4 + $0x50] sm:$0xff]
  %v4137 = vld [vmem:[%s4 + $0x58] sm:$0xff]
  %v4138 = vld [vmem:[%s4 + $0x60] sm:$0xff]
  %v4139 = vld [vmem:[%s4 + $0x68] sm:$0xff]
  %v4140 = vld [vmem:[%s4 + $0x70] sm:$0xff]
  %v4141 = vld [vmem:[%s4 + $0x78] sm:$0xff]
  %v4142 = vld [vmem:[%s4 + $0x80] sm:$0xff]
  %v4143 = vld [vmem:[%s4 + $0x88] sm:$0xff]
  %v4144 = vld [vmem:[%s4 + $0x90] sm:$0xff]
  %v4145 = vld [vmem:[%s4 + $0x98] sm:$0xff]
  %v4146 = vld [vmem:[%s4 + $0xa0] sm:$0xff]
  %v4147 = vld [vmem:[%s4 + $0xa8] sm:$0xff]
  %v4148 = vld [vmem:[%s4 + $0xb0] sm:$0xff]
  %v4149 = vld [vmem:[%s4 + $0xb8] sm:$0xff]
  %v4150 = vld [vmem:[%s4 + $0xc0] sm:$0xff]
  %v4151 = vld [vmem:[%s4 + $0xc8] sm:$0xff]
  %v4152 = vld [vmem:[%s4 + $0xd0] sm:$0xff]
  %v4153 = vld [vmem:[%s4 + $0xd8] sm:$0xff]
  %v4154 = vld [vmem:[%s4 + $0xe0] sm:$0xff]
  %v4155 = vld [vmem:[%s4 + $0xe8] sm:$0xff]
  %v4156 = vld [vmem:[%s4 + $0xf0] sm:$0xff]
  %v4157 = vld [vmem:[%s4 + $0xf8] sm:$0xff]
  %v4158 = vld [vmem:[%s4 + $0x100] sm:$0xff]
  %v4159 = vld [vmem:[%s4 + $0x108] sm:$0xff]
  %v4160 = vld [vmem:[%s4 + $0x110] sm:$0xff]
  %v4161 = vld [vmem:[%s4 + $0x118] sm:$0xff]
  %v4162 = vld [vmem:[%s4 + $0x120] sm:$0xff]
  %v4163 = vld [vmem:[%s4 + $0x128] sm:$0xff]
  %v4164 = vld [vmem:[%s4 + $0x130] sm:$0xff]
  %v4165 = vld [vmem:[%s4 + $0x138] sm:$0xff]
  %v4166 = vld [vmem:[%s4 + $0x140] sm:$0xff]
  %v4167 = vld [vmem:[%s4 + $0x148] sm:$0xff]
  %v4168 = vld [vmem:[%s4 + $0x150] sm:$0xff]
  %v4169 = vld [vmem:[%s4 + $0x158] sm:$0xff]
  %v4170 = vld [vmem:[%s4 + $0x160] sm:$0xff]
  %v4171 = vld [vmem:[%s4 + $0x168] sm:$0xff]
  %v4172 = vld [vmem:[%s4 + $0x170] sm:$0xff]
  %v4173 = vld [vmem:[%s4 + $0x178] sm:$0xff]
  %v4174 = vld [vmem:[%s4 + $0x180] sm:$0xff]
  %v4175 = vld [vmem:[%s4 + $0x188] sm:$0xff]
  %v4176 = vld [vmem:[%s4 + $0x190] sm:$0xff]
  %v4177 = vld [vmem:[%s4 + $0x198] sm:$0xff]
  %v4178 = vld [vmem:[%s4 + $0x1a0] sm:$0xff]
  %v4179 = vld [vmem:[%s4 + $0x1a8] sm:$0xff]
  %v4180 = vld [vmem:[%s4 + $0x1b0] sm:$0xff]
  %v4181 = vld [vmem:[%s4 + $0x1b8] sm:$0xff]
  %v4182 = vld [vmem:[%s4 + $0x1c0] sm:$0xff]
  %v4183 = vld [vmem:[%s4 + $0x1c8] sm:$0xff]
  %v4184 = vld [vmem:[%s4 + $0x1d0] sm:$0xff]
  %v4185 = vld [vmem:[%s4 + $0x1d8] sm:$0xff]
  %v4186 = vld [vmem:[%s4 + $0x1e0] sm:$0xff]
  %v4187 = vld [vmem:[%s4 + $0x1e8] sm:$0xff]
  %v4188 = vld [vmem:[%s4 + $0x1f0] sm:$0xff]
  %v4189 = vld [vmem:[%s4 + $0x1f8] sm:$0xff]
  %v4254 = vunpack.c.l.b16 %v4126
  %v4255 = vunpack.c.h.b16 %v4126
  %v4256 = vunpack.c.l.b16 %v4127
  %v4257 = vunpack.c.h.b16 %v4127
  %v4258 = vunpack.c.l.b16 %v4128
  %v4259 = vunpack.c.h.b16 %v4128
  %v4260 = vunpack.c.l.b16 %v4129
  %v4261 = vunpack.c.h.b16 %v4129
  %v4262 = vunpack.c.l.b16 %v4130
  %v4263 = vunpack.c.h.b16 %v4130
  %v4264 = vunpack.c.l.b16 %v4131
  %v4265 = vunpack.c.h.b16 %v4131
  %v4266 = vunpack.c.l.b16 %v4132
  %v4267 = vunpack.c.h.b16 %v4132
  %v4268 = vunpack.c.l.b16 %v4133
  %v4269 = vunpack.c.h.b16 %v4133
  %v4270 = vunpack.c.l.b16 %v4134
  %v4271 = vunpack.c.h.b16 %v4134
  %v4272 = vunpack.c.l.b16 %v4135
  %v4273 = vunpack.c.h.b16 %v4135
  %v4274 = vunpack.c.l.b16 %v4136
  %v4275 = vunpack.c.h.b16 %v4136
  %v4276 = vunpack.c.l.b16 %v4137
  %v4277 = vunpack.c.h.b16 %v4137
  %v4278 = vunpack.c.l.b16 %v4138
  %v4279 = vunpack.c.h.b16 %v4138
  %v4280 = vunpack.c.l.b16 %v4139
  %v4281 = vunpack.c.h.b16 %v4139
  %v4282 = vunpack.c.l.b16 %v4140
  %v4283 = vunpack.c.h.b16 %v4140
  %v4284 = vunpack.c.l.b16 %v4141
  %v4285 = vunpack.c.h.b16 %v4141
  %v4286 = vunpack.c.l.b16 %v4142
  %v4287 = vunpack.c.h.b16 %v4142
  %v4288 = vunpack.c.l.b16 %v4143
  %v4289 = vunpack.c.h.b16 %v4143
  %v4290 = vunpack.c.l.b16 %v4144
  %v4291 = vunpack.c.h.b16 %v4144
  %v4292 = vunpack.c.l.b16 %v4145
  %v4293 = vunpack.c.h.b16 %v4145
  %v4294 = vunpack.c.l.b16 %v4146
  %v4295 = vunpack.c.h.b16 %v4146
  %v4296 = vunpack.c.l.b16 %v4147
  %v4297 = vunpack.c.h.b16 %v4147
  %v4298 = vunpack.c.l.b16 %v4148
  %v4299 = vunpack.c.h.b16 %v4148
  %v4300 = vunpack.c.l.b16 %v4149
  %v4301 = vunpack.c.h.b16 %v4149
  %v4302 = vunpack.c.l.b16 %v4150
  %v4303 = vunpack.c.h.b16 %v4150
  %v4304 = vunpack.c.l.b16 %v4151
  %v4305 = vunpack.c.h.b16 %v4151
  %v4306 = vunpack.c.l.b16 %v4152
  %v4307 = vunpack.c.h.b16 %v4152
  %v4308 = vunpack.c.l.b16 %v4153
  %v4309 = vunpack.c.h.b16 %v4153
  %v4310 = vunpack.c.l.b16 %v4154
  %v4311 = vunpack.c.h.b16 %v4154
  %v4312 = vunpack.c.l.b16 %v4155
  %v4313 = vunpack.c.h.b16 %v4155
  %v4314 = vunpack.c.l.b16 %v4156
  %v4315 = vunpack.c.h.b16 %v4156
  %v4316 = vunpack.c.l.b16 %v4157
  %v4317 = vunpack.c.h.b16 %v4157
  %v4318 = vunpack.c.l.b16 %v4158
  %v4319 = vunpack.c.h.b16 %v4158
  %v4320 = vunpack.c.l.b16 %v4159
  %v4321 = vunpack.c.h.b16 %v4159
  %v4322 = vunpack.c.l.b16 %v4160
  %v4323 = vunpack.c.h.b16 %v4160
  %v4324 = vunpack.c.l.b16 %v4161
  %v4325 = vunpack.c.h.b16 %v4161
  %v4326 = vunpack.c.l.b16 %v4162
  %v4327 = vunpack.c.h.b16 %v4162
  %v4328 = vunpack.c.l.b16 %v4163
  %v4329 = vunpack.c.h.b16 %v4163
  %v4330 = vunpack.c.l.b16 %v4164
  %v4331 = vunpack.c.h.b16 %v4164
  %v4332 = vunpack.c.l.b16 %v4165
  %v4333 = vunpack.c.h.b16 %v4165
  %v4334 = vunpack.c.l.b16 %v4166
  %v4335 = vunpack.c.h.b16 %v4166
  %v4336 = vunpack.c.l.b16 %v4167
  %v4337 = vunpack.c.h.b16 %v4167
  %v4338 = vunpack.c.l.b16 %v4168
  %v4339 = vunpack.c.h.b16 %v4168
  %v4340 = vunpack.c.l.b16 %v4169
  %v4341 = vunpack.c.h.b16 %v4169
  %v4342 = vunpack.c.l.b16 %v4170
  %v4343 = vunpack.c.h.b16 %v4170
  %v4344 = vunpack.c.l.b16 %v4171
  %v4345 = vunpack.c.h.b16 %v4171
  %v4346 = vunpack.c.l.b16 %v4172
  %v4347 = vunpack.c.h.b16 %v4172
  %v4348 = vunpack.c.l.b16 %v4173
  %v4349 = vunpack.c.h.b16 %v4173
  %v4350 = vunpack.c.l.b16 %v4174
  %v4351 = vunpack.c.h.b16 %v4174
  %v4352 = vunpack.c.l.b16 %v4175
  %v4353 = vunpack.c.h.b16 %v4175
  %v4354 = vunpack.c.l.b16 %v4176
  %v4355 = vunpack.c.h.b16 %v4176
  %v4356 = vunpack.c.l.b16 %v4177
  %v4357 = vunpack.c.h.b16 %v4177
  %v4358 = vunpack.c.l.b16 %v4178
  %v4359 = vunpack.c.h.b16 %v4178
  %v4360 = vunpack.c.l.b16 %v4179
  %v4361 = vunpack.c.h.b16 %v4179
  %v4362 = vunpack.c.l.b16 %v4180
  %v4363 = vunpack.c.h.b16 %v4180
  %v4364 = vunpack.c.l.b16 %v4181
  %v4365 = vunpack.c.h.b16 %v4181
  %v4366 = vunpack.c.l.b16 %v4182
  %v4367 = vunpack.c.h.b16 %v4182
  %v4368 = vunpack.c.l.b16 %v4183
  %v4369 = vunpack.c.h.b16 %v4183
  %v4370 = vunpack.c.l.b16 %v4184
  %v4371 = vunpack.c.h.b16 %v4184
  %v4372 = vunpack.c.l.b16 %v4185
  %v4373 = vunpack.c.h.b16 %v4185
  %v4374 = vunpack.c.l.b16 %v4186
  %v4375 = vunpack.c.h.b16 %v4186
  %v4376 = vunpack.c.l.b16 %v4187
  %v4377 = vunpack.c.h.b16 %v4187
  %v4378 = vunpack.c.l.b16 %v4188
  %v4379 = vunpack.c.h.b16 %v4188
  %v4380 = vunpack.c.l.b16 %v4189
  %v4381 = vunpack.c.h.b16 %v4189
  %v4382 = vpack.c.b16 %v4258, %v4254
  %v4383 = vpack.c.b16 %v4259, %v4255
  %v4384 = vpack.c.b16 %v4260, %v4256
  %v4385 = vpack.c.b16 %v4261, %v4257
  %v4386 = vpack.c.b16 %v4266, %v4262
  %v4387 = vpack.c.b16 %v4267, %v4263
  %v4388 = vpack.c.b16 %v4268, %v4264
  %v4389 = vpack.c.b16 %v4269, %v4265
  %v4390 = vpack.c.b16 %v4274, %v4270
  %v4391 = vpack.c.b16 %v4275, %v4271
  %v4392 = vpack.c.b16 %v4276, %v4272
  %v4393 = vpack.c.b16 %v4277, %v4273
  %v4394 = vpack.c.b16 %v4282, %v4278
  %v4395 = vpack.c.b16 %v4283, %v4279
  %v4396 = vpack.c.b16 %v4284, %v4280
  %v4397 = vpack.c.b16 %v4285, %v4281
  %v4398 = vpack.c.b16 %v4290, %v4286
  %v4399 = vpack.c.b16 %v4291, %v4287
  %v4400 = vpack.c.b16 %v4292, %v4288
  %v4401 = vpack.c.b16 %v4293, %v4289
  %v4402 = vpack.c.b16 %v4298, %v4294
  %v4403 = vpack.c.b16 %v4299, %v4295
  %v4404 = vpack.c.b16 %v4300, %v4296
  %v4405 = vpack.c.b16 %v4301, %v4297
  %v4406 = vpack.c.b16 %v4306, %v4302
  %v4407 = vpack.c.b16 %v4307, %v4303
  %v4408 = vpack.c.b16 %v4308, %v4304
  %v4409 = vpack.c.b16 %v4309, %v4305
  %v4410 = vpack.c.b16 %v4314, %v4310
  %v4411 = vpack.c.b16 %v4315, %v4311
  %v4412 = vpack.c.b16 %v4316, %v4312
  %v4413 = vpack.c.b16 %v4317, %v4313
  %v4414 = vpack.c.b16 %v4322, %v4318
  %v4415 = vpack.c.b16 %v4323, %v4319
  %v4416 = vpack.c.b16 %v4324, %v4320
  %v4417 = vpack.c.b16 %v4325, %v4321
  %v4418 = vpack.c.b16 %v4330, %v4326
  %v4419 = vpack.c.b16 %v4331, %v4327
  %v4420 = vpack.c.b16 %v4332, %v4328
  %v4421 = vpack.c.b16 %v4333, %v4329
  %v4422 = vpack.c.b16 %v4338, %v4334
  %v4423 = vpack.c.b16 %v4339, %v4335
  %v4424 = vpack.c.b16 %v4340, %v4336
  %v4425 = vpack.c.b16 %v4341, %v4337
  %v4426 = vpack.c.b16 %v4346, %v4342
  %v4427 = vpack.c.b16 %v4347, %v4343
  %v4428 = vpack.c.b16 %v4348, %v4344
  %v4429 = vpack.c.b16 %v4349, %v4345
  %v4430 = vpack.c.b16 %v4354, %v4350
  %v4431 = vpack.c.b16 %v4355, %v4351
  %v4432 = vpack.c.b16 %v4356, %v4352
  %v4433 = vpack.c.b16 %v4357, %v4353
  %v4434 = vpack.c.b16 %v4362, %v4358
  %v4435 = vpack.c.b16 %v4363, %v4359
  %v4436 = vpack.c.b16 %v4364, %v4360
  %v4437 = vpack.c.b16 %v4365, %v4361
  %v4438 = vpack.c.b16 %v4370, %v4366
  %v4439 = vpack.c.b16 %v4371, %v4367
  %v4440 = vpack.c.b16 %v4372, %v4368
  %v4441 = vpack.c.b16 %v4373, %v4369
  %v4442 = vpack.c.b16 %v4378, %v4374
  %v4443 = vpack.c.b16 %v4379, %v4375
  %v4444 = vpack.c.b16 %v4380, %v4376
  %v4445 = vpack.c.b16 %v4381, %v4377
  %4510 = vmatprep.subr.bf16.mxu0 %v4411
  %4511 = vmatpush1.bf16.msra.mxu0 %v4410
  %4512 = vmatprep.subr.bf16.mxu0 %v4407
  %4513 = vmatpush1.bf16.msra.mxu0 %v4406
  %4514 = vmatprep.subr.bf16.mxu0 %v4403
  %4515 = vmatpush1.bf16.msra.mxu0 %v4402
  %4516 = vmatprep.subr.bf16.mxu0 %v4399
  %4517 = vmatpush1.bf16.msra.mxu0 %v4398
  %4518 = vmatprep.subr.bf16.mxu0 %v4395
  %4519 = vmatpush1.bf16.msra.mxu0 %v4394
  %4520 = vmatprep.subr.bf16.mxu0 %v4391
  %4521 = vmatpush1.bf16.msra.mxu0 %v4390
  %4522 = vmatprep.subr.bf16.mxu0 %v4387
  %4523 = vmatpush1.bf16.msra.mxu0 %v4386
  %4524 = vmatprep.subr.bf16.mxu0 %v4383
  %4525 = vmatpush1.bf16.msra.mxu0 %v4382
  %4526 = vmatprep.subr.bf16.mxu0 %v4443
  %4527 = vmatpush2.bf16.msra.mxu0 %v4442
  %4528 = vmatprep.subr.bf16.mxu0 %v4439
  %4529 = vmatpush2.bf16.msra.mxu0 %v4438
  %4530 = vmatprep.subr.bf16.mxu0 %v4435
  %4531 = vmatpush2.bf16.msra.mxu0 %v4434
  %4532 = vmatprep.subr.bf16.mxu0 %v4431
  %4533 = vmatpush2.bf16.msra.mxu0 %v4430
  %4534 = vmatprep.subr.bf16.mxu0 %v4427
  %4535 = vmatpush2.bf16.msra.mxu0 %v4426
  %4536 = vmatprep.subr.bf16.mxu0 %v4423
  %4537 = vmatpush2.bf16.msra.mxu0 %v4422
  %4538 = vmatprep.subr.bf16.mxu0 %v4419
  %4539 = vmatpush2.bf16.msra.mxu0 %v4418
  %4540 = vmatprep.subr.bf16.mxu0 %v4415
  %4541 = vmatpush2.bf16.msra.mxu0 %v4414
  %4542 = vmatprep.mubr.bf16.mxu0 %v3853
  %4543 = vmatmul.mubr.bf16.gmra.mxu0 %v4125
  %v4544 = vpop.f32.mrf.mxu0
  %v4545 = vadd.f32 %v46, %v4544
  %v4546 = vpop.f32.mrf.mxu0
  %v4547 = vadd.f32 %v50, %v4546
  %v4548 = vpop.f32.mrf.mxu0
  %v4549 = vpop.f32.mrf.mxu0
  %4550 = vdwg.mxu0
  %4551 = vmatprep.subr.bf16.mxu0 %v4413
  %4552 = vmatpush1.bf16.msra.mxu0 %v4412
  %4553 = vmatprep.subr.bf16.mxu0 %v4409
  %4554 = vmatpush1.bf16.msra.mxu0 %v4408
  %4555 = vmatprep.subr.bf16.mxu0 %v4405
  %4556 = vmatpush1.bf16.msra.mxu0 %v4404
  %4557 = vmatprep.subr.bf16.mxu0 %v4401
  %4558 = vmatpush1.bf16.msra.mxu0 %v4400
  %4559 = vmatprep.subr.bf16.mxu0 %v4397
  %4560 = vmatpush1.bf16.msra.mxu0 %v4396
  %4561 = vmatprep.subr.bf16.mxu0 %v4393
  %4562 = vmatpush1.bf16.msra.mxu0 %v4392
  %4563 = vmatprep.subr.bf16.mxu0 %v4389
  %4564 = vmatpush1.bf16.msra.mxu0 %v4388
  %4565 = vmatprep.subr.bf16.mxu0 %v4385
  %4566 = vmatpush1.bf16.msra.mxu0 %v4384
  %4567 = vmatprep.subr.bf16.mxu0 %v4445
  %4568 = vmatpush2.bf16.msra.mxu0 %v4444
  %4569 = vmatprep.subr.bf16.mxu0 %v4441
  %4570 = vmatpush2.bf16.msra.mxu0 %v4440
  %4571 = vmatprep.subr.bf16.mxu0 %v4437
  %4572 = vmatpush2.bf16.msra.mxu0 %v4436
  %4573 = vmatprep.subr.bf16.mxu0 %v4433
  %4574 = vmatpush2.bf16.msra.mxu0 %v4432
  %4575 = vmatprep.subr.bf16.mxu0 %v4429
  %4576 = vmatpush2.bf16.msra.mxu0 %v4428
  %4577 = vmatprep.subr.bf16.mxu0 %v4425
  %4578 = vmatpush2.bf16.msra.mxu0 %v4424
  %4579 = vmatprep.subr.bf16.mxu0 %v4421
  %4580 = vmatpush2.bf16.msra.mxu0 %v4420
  %4581 = vmatprep.subr.bf16.mxu0 %v4417
  %4582 = vmatpush2.bf16.msra.mxu0 %v4416
  %4583 = vmatprep.mubr.bf16.mxu0 %v3853
  %4584 = vmatmul.mubr.bf16.gmra.mxu0 %v4125
  %v4585 = vpop.f32.mrf.mxu0
  %v4586 = vadd.f32 %v54, %v4585
  %v4587 = vpop.f32.mrf.mxu0
  %v4588 = vadd.f32 %v58, %v4587
  %v4589 = vpop.f32.mrf.mxu0
  %v4590 = vpop.f32.mrf.mxu0
  %4591 = vdwg.mxu0
  %v4592 = vxor.u32 %v4545, 2147483648
  %v4593 = vmul.f32 %v4592, 1.442695
  %v4594 = vpow.pop %v4593
  %v4595 = vadd.f32 %v4594, 1.0
  %v4596 = vrcp.pop %v4595
  %v4597 = vmul.f32 1.0, %v4596
  %v4598 = vxor.u32 %v4547, 2147483648
  %v4599 = vmul.f32 %v4598, 1.442695
  %v4600 = vpow.pop %v4599
  %v4601 = vadd.f32 %v4600, 1.0
  %v4602 = vrcp.pop %v4601
  %v4603 = vmul.f32 1.0, %v4602
  %v4604 = vmul.f32 %v4597, %v4588
  %v4605 = vadd.f32 %v4586, %v4604
  %v4606 = vtanh.pop %v4605
  %v4607 = vsub.f32 1.0, %v4603
  %v4608 = vmul.f32 %v4607, %v4606
  %v4609 = vmul.f32 %v4603, %v3852
  %v4610 = vadd.f32 %v4608, %v4609
  %v4611 = vpack.c.bf16 %v4610, %v4610
  %s4612 = scalar_lea.vmem %s6, 20
  %4613 = vst [vmem:[%s4612] sm:$0xf] %v4611
  %s4614 = scalar_lea.vmem %s0, 72
  %v4615 = vld [vmem:[%s4614] sm:$0xff]
  %v4616 = vld [vmem:[%s4614 + $0x8] sm:$0xf]
  %v4617 = vunpack.c.l.bf16 %v4615
  %v4618 = vunpack.c.h.bf16 %v4615
  %v4619 = vunpack.c.l.bf16 %v4616
  %v4620 = vld [vmem:[%s2] sm:$0xff]
  %v4621 = vld [vmem:[%s2 + $0x8] sm:$0xf]
  %v4622 = vld [vmem:[%s2 + $0xc] sm:$0xff]
  %v4623 = vld [vmem:[%s2 + $0x14] sm:$0xf]
  %v4624 = vld [vmem:[%s2 + $0x18] sm:$0xff]
  %v4625 = vld [vmem:[%s2 + $0x20] sm:$0xf]
  %v4626 = vld [vmem:[%s2 + $0x24] sm:$0xff]
  %v4627 = vld [vmem:[%s2 + $0x2c] sm:$0xf]
  %v4628 = vld [vmem:[%s2 + $0x30] sm:$0xff]
  %v4629 = vld [vmem:[%s2 + $0x38] sm:$0xf]
  %v4630 = vld [vmem:[%s2 + $0x3c] sm:$0xff]
  %v4631 = vld [vmem:[%s2 + $0x44] sm:$0xf]
  %v4632 = vld [vmem:[%s2 + $0x48] sm:$0xff]
  %v4633 = vld [vmem:[%s2 + $0x50] sm:$0xf]
  %v4634 = vld [vmem:[%s2 + $0x54] sm:$0xff]
  %v4635 = vld [vmem:[%s2 + $0x5c] sm:$0xf]
  %v4636 = vld [vmem:[%s2 + $0x60] sm:$0xff]
  %v4637 = vld [vmem:[%s2 + $0x68] sm:$0xf]
  %v4638 = vld [vmem:[%s2 + $0x6c] sm:$0xff]
  %v4639 = vld [vmem:[%s2 + $0x74] sm:$0xf]
  %v4640 = vld [vmem:[%s2 + $0x78] sm:$0xff]
  %v4641 = vld [vmem:[%s2 + $0x80] sm:$0xf]
  %v4642 = vld [vmem:[%s2 + $0x84] sm:$0xff]
  %v4643 = vld [vmem:[%s2 + $0x8c] sm:$0xf]
  %v4644 = vld [vmem:[%s2 + $0x90] sm:$0xff]
  %v4645 = vld [vmem:[%s2 + $0x98] sm:$0xf]
  %v4646 = vld [vmem:[%s2 + $0x9c] sm:$0xff]
  %v4647 = vld [vmem:[%s2 + $0xa4] sm:$0xf]
  %v4648 = vld [vmem:[%s2 + $0xa8] sm:$0xff]
  %v4649 = vld [vmem:[%s2 + $0xb0] sm:$0xf]
  %v4650 = vld [vmem:[%s2 + $0xb4] sm:$0xff]
  %v4651 = vld [vmem:[%s2 + $0xbc] sm:$0xf]
  %v4684 = vunpack.c.l.b16 %v4620
  %v4685 = vunpack.c.h.b16 %v4620
  %v4686 = vunpack.c.l.b16 %v4621
  %v4687 = vunpack.c.l.b16 %v4622
  %v4688 = vunpack.c.h.b16 %v4622
  %v4689 = vunpack.c.l.b16 %v4623
  %v4690 = vunpack.c.l.b16 %v4624
  %v4691 = vunpack.c.h.b16 %v4624
  %v4692 = vunpack.c.l.b16 %v4625
  %v4693 = vunpack.c.l.b16 %v4626
  %v4694 = vunpack.c.h.b16 %v4626
  %v4695 = vunpack.c.l.b16 %v4627
  %v4696 = vunpack.c.l.b16 %v4628
  %v4697 = vunpack.c.h.b16 %v4628
  %v4698 = vunpack.c.l.b16 %v4629
  %v4699 = vunpack.c.l.b16 %v4630
  %v4700 = vunpack.c.h.b16 %v4630
  %v4701 = vunpack.c.l.b16 %v4631
  %v4702 = vunpack.c.l.b16 %v4632
  %v4703 = vunpack.c.h.b16 %v4632
  %v4704 = vunpack.c.l.b16 %v4633
  %v4705 = vunpack.c.l.b16 %v4634
  %v4706 = vunpack.c.h.b16 %v4634
  %v4707 = vunpack.c.l.b16 %v4635
  %v4708 = vunpack.c.l.b16 %v4636
  %v4709 = vunpack.c.h.b16 %v4636
  %v4710 = vunpack.c.l.b16 %v4637
  %v4711 = vunpack.c.l.b16 %v4638
  %v4712 = vunpack.c.h.b16 %v4638
  %v4713 = vunpack.c.l.b16 %v4639
  %v4714 = vunpack.c.l.b16 %v4640
  %v4715 = vunpack.c.h.b16 %v4640
  %v4716 = vunpack.c.l.b16 %v4641
  %v4717 = vunpack.c.l.b16 %v4642
  %v4718 = vunpack.c.h.b16 %v4642
  %v4719 = vunpack.c.l.b16 %v4643
  %v4720 = vunpack.c.l.b16 %v4644
  %v4721 = vunpack.c.h.b16 %v4644
  %v4722 = vunpack.c.l.b16 %v4645
  %v4723 = vunpack.c.l.b16 %v4646
  %v4724 = vunpack.c.h.b16 %v4646
  %v4725 = vunpack.c.l.b16 %v4647
  %v4726 = vunpack.c.l.b16 %v4648
  %v4727 = vunpack.c.h.b16 %v4648
  %v4728 = vunpack.c.l.b16 %v4649
  %v4729 = vunpack.c.l.b16 %v4650
  %v4730 = vunpack.c.h.b16 %v4650
  %v4731 = vunpack.c.l.b16 %v4651
  %v4732 = vpack.c.b16 %v4687, %v4684
  %v4733 = vpack.c.b16 %v4688, %v4685
  %v4734 = vpack.c.b16 %v4689, %v4686
  %v4735 = vpack.c.b16 %v4693, %v4690
  %v4736 = vpack.c.b16 %v4694, %v4691
  %v4737 = vpack.c.b16 %v4695, %v4692
  %v4738 = vpack.c.b16 %v4699, %v4696
  %v4739 = vpack.c.b16 %v4700, %v4697
  %v4740 = vpack.c.b16 %v4701, %v4698
  %v4741 = vpack.c.b16 %v4705, %v4702
  %v4742 = vpack.c.b16 %v4706, %v4703
  %v4743 = vpack.c.b16 %v4707, %v4704
  %v4744 = vpack.c.b16 %v4711, %v4708
  %v4745 = vpack.c.b16 %v4712, %v4709
  %v4746 = vpack.c.b16 %v4713, %v4710
  %v4747 = vpack.c.b16 %v4717, %v4714
  %v4748 = vpack.c.b16 %v4718, %v4715
  %v4749 = vpack.c.b16 %v4719, %v4716
  %v4750 = vpack.c.b16 %v4723, %v4720
  %v4751 = vpack.c.b16 %v4724, %v4721
  %v4752 = vpack.c.b16 %v4725, %v4722
  %v4753 = vpack.c.b16 %v4729, %v4726
  %v4754 = vpack.c.b16 %v4730, %v4727
  %v4755 = vpack.c.b16 %v4731, %v4728
  %4780 = vmatprep.subr.bf16.mxu0 %v4754
  %4781 = vmatpush1.bf16.msra.mxu0 %v4753
  %4782 = vmatprep.subr.bf16.mxu0 %v4751
  %4783 = vmatpush1.bf16.msra.mxu0 %v4750
  %4784 = vmatprep.subr.bf16.mxu0 %v4748
  %4785 = vmatpush1.bf16.msra.mxu0 %v4747
  %4786 = vmatprep.subr.bf16.mxu0 %v4745
  %4787 = vmatpush1.bf16.msra.mxu0 %v4744
  %4788 = vmatprep.subr.bf16.mxu0 %v4742
  %4789 = vmatpush1.bf16.msra.mxu0 %v4741
  %4790 = vmatprep.subr.bf16.mxu0 %v4739
  %4791 = vmatpush1.bf16.msra.mxu0 %v4738
  %4792 = vmatprep.subr.bf16.mxu0 %v4736
  %4793 = vmatpush1.bf16.msra.mxu0 %v4735
  %4794 = vmatprep.subr.bf16.mxu0 %v4733
  %4795 = vmatpush1.bf16.msra.mxu0 %v4732
  %4796 = vmatprep.subr.bf16.mxu0 0
  %4797 = vmatpush2.bf16.msra.mxu0 0
  %4798 = vmatprep.subr.bf16.mxu0 0
  %4799 = vmatpush2.bf16.msra.mxu0 0
  %4800 = vmatprep.subr.bf16.mxu0 0
  %4801 = vmatpush2.bf16.msra.mxu0 0
  %4802 = vmatprep.subr.bf16.mxu0 0
  %4803 = vmatpush2.bf16.msra.mxu0 0
  %4804 = vmatprep.subr.bf16.mxu0 0
  %4805 = vmatpush2.bf16.msra.mxu0 0
  %4806 = vmatprep.subr.bf16.mxu0 0
  %4807 = vmatpush2.bf16.msra.mxu0 0
  %4808 = vmatprep.subr.bf16.mxu0 0
  %4809 = vmatpush2.bf16.msra.mxu0 0
  %4810 = vmatprep.subr.bf16.mxu0 0
  %4811 = vmatpush2.bf16.msra.mxu0 0
  %4812 = vmatprep.mubr.bf16.mxu0 0
  %4813 = vmatmul.mubr.bf16.gmra.mxu0 %v4125
  %v4814 = vpop.f32.mrf.mxu0
  %v4815 = vadd.f32 0.0, %v4814
  %v4816 = vpop.f32.mrf.mxu0
  %v4817 = vadd.f32 0.0, %v4816
  %v4818 = vpop.f32.mrf.mxu0
  %v4819 = vpop.f32.mrf.mxu0
  %4820 = vdwg.mxu0
  %4821 = vmatprep.subr.bf16.mxu0 0
  %4822 = vmatpush1.bf16.msra.mxu0 %v4755
  %4823 = vmatprep.subr.bf16.mxu0 0
  %4824 = vmatpush1.bf16.msra.mxu0 %v4752
  %4825 = vmatprep.subr.bf16.mxu0 0
  %4826 = vmatpush1.bf16.msra.mxu0 %v4749
  %4827 = vmatprep.subr.bf16.mxu0 0
  %4828 = vmatpush1.bf16.msra.mxu0 %v4746
  %4829 = vmatprep.subr.bf16.mxu0 0
  %4830 = vmatpush1.bf16.msra.mxu0 %v4743
  %4831 = vmatprep.subr.bf16.mxu0 0
  %4832 = vmatpush1.bf16.msra.mxu0 %v4740
  %4833 = vmatprep.subr.bf16.mxu0 0
  %4834 = vmatpush1.bf16.msra.mxu0 %v4737
  %4835 = vmatprep.subr.bf16.mxu0 0
  %4836 = vmatpush1.bf16.msra.mxu0 %v4734
  %4837 = vmatprep.subr.bf16.mxu0 0
  %4838 = vmatpush2.bf16.msra.mxu0 0
  %4839 = vmatprep.subr.bf16.mxu0 0
  %4840 = vmatpush2.bf16.msra.mxu0 0
  %4841 = vmatprep.subr.bf16.mxu0 0
  %4842 = vmatpush2.bf16.msra.mxu0 0
  %4843 = vmatprep.subr.bf16.mxu0 0
  %4844 = vmatpush2.bf16.msra.mxu0 0
  %4845 = vmatprep.subr.bf16.mxu0 0
  %4846 = vmatpush2.bf16.msra.mxu0 0
  %4847 = vmatprep.subr.bf16.mxu0 0
  %4848 = vmatpush2.bf16.msra.mxu0 0
  %4849 = vmatprep.subr.bf16.mxu0 0
  %4850 = vmatpush2.bf16.msra.mxu0 0
  %4851 = vmatprep.subr.bf16.mxu0 0
  %4852 = vmatpush2.bf16.msra.mxu0 0
  %4853 = vmatprep.mubr.bf16.mxu0 0
  %4854 = vmatmul.mubr.bf16.gmra.mxu0 %v4125
  %v4855 = vpop.f32.mrf.mxu0
  %v4856 = vadd.f32 0.0, %v4855
  %v4857 = vpop.f32.mrf.mxu0
  %v4858 = vpop.f32.mrf.mxu0
  %v4859 = vpop.f32.mrf.mxu0
  %4860 = vdwg.mxu0
  %v4861 = vadd.f32 %v4617, %v4815
  %v4862 = vxor.u32 %v4861, 2147483648
  %v4863 = vmul.f32 %v4862, 1.442695
  %v4864 = vpow.pop %v4863
  %v4865 = vadd.f32 %v4864, 1.0
  %v4866 = vrcp.pop %v4865
  %v4867 = vmul.f32 1.0, %v4866
  %v4868 = vadd.f32 %v4618, %v4817
  %v4869 = vxor.u32 %v4868, 2147483648
  %v4870 = vmul.f32 %v4869, 1.442695
  %v4871 = vpow.pop %v4870
  %v4872 = vadd.f32 %v4871, 1.0
  %v4873 = vrcp.pop %v4872
  %v4874 = vmul.f32 1.0, %v4873
  %v4875 = vadd.f32 %v4856, %v39
  %v4876 = vmul.f32 %v4867, %v4875
  %v4877 = vadd.f32 %v4619, %v4876
  %v4878 = vtanh.pop %v4877
  %v4879 = vsub.f32 1.0, %v4874
  %v4880 = vmul.f32 %v4879, %v4878
  %v4881 = vmul.f32 %v4874, %v4124
  %v4882 = vadd.f32 %v4880, %v4881
  %v4883 = vpack.c.bf16 %v4882, %v4882
  %v4884 = vld [vmem:[%s4] sm:$0xff]
  %v4885 = vld [vmem:[%s4 + $0x8] sm:$0xff]
  %v4886 = vld [vmem:[%s4 + $0x10] sm:$0xff]
  %v4887 = vld [vmem:[%s4 + $0x18] sm:$0xff]
  %v4888 = vld [vmem:[%s4 + $0x20] sm:$0xff]
  %v4889 = vld [vmem:[%s4 + $0x28] sm:$0xff]
  %v4890 = vld [vmem:[%s4 + $0x30] sm:$0xff]
  %v4891 = vld [vmem:[%s4 + $0x38] sm:$0xff]
  %v4892 = vld [vmem:[%s4 + $0x40] sm:$0xff]
  %v4893 = vld [vmem:[%s4 + $0x48] sm:$0xff]
  %v4894 = vld [vmem:[%s4 + $0x50] sm:$0xff]
  %v4895 = vld [vmem:[%s4 + $0x58] sm:$0xff]
  %v4896 = vld [vmem:[%s4 + $0x60] sm:$0xff]
  %v4897 = vld [vmem:[%s4 + $0x68] sm:$0xff]
  %v4898 = vld [vmem:[%s4 + $0x70] sm:$0xff]
  %v4899 = vld [vmem:[%s4 + $0x78] sm:$0xff]
  %v4900 = vld [vmem:[%s4 + $0x80] sm:$0xff]
  %v4901 = vld [vmem:[%s4 + $0x88] sm:$0xff]
  %v4902 = vld [vmem:[%s4 + $0x90] sm:$0xff]
  %v4903 = vld [vmem:[%s4 + $0x98] sm:$0xff]
  %v4904 = vld [vmem:[%s4 + $0xa0] sm:$0xff]
  %v4905 = vld [vmem:[%s4 + $0xa8] sm:$0xff]
  %v4906 = vld [vmem:[%s4 + $0xb0] sm:$0xff]
  %v4907 = vld [vmem:[%s4 + $0xb8] sm:$0xff]
  %v4908 = vld [vmem:[%s4 + $0xc0] sm:$0xff]
  %v4909 = vld [vmem:[%s4 + $0xc8] sm:$0xff]
  %v4910 = vld [vmem:[%s4 + $0xd0] sm:$0xff]
  %v4911 = vld [vmem:[%s4 + $0xd8] sm:$0xff]
  %v4912 = vld [vmem:[%s4 + $0xe0] sm:$0xff]
  %v4913 = vld [vmem:[%s4 + $0xe8] sm:$0xff]
  %v4914 = vld [vmem:[%s4 + $0xf0] sm:$0xff]
  %v4915 = vld [vmem:[%s4 + $0xf8] sm:$0xff]
  %v4916 = vld [vmem:[%s4 + $0x100] sm:$0xff]
  %v4917 = vld [vmem:[%s4 + $0x108] sm:$0xff]
  %v4918 = vld [vmem:[%s4 + $0x110] sm:$0xff]
  %v4919 = vld [vmem:[%s4 + $0x118] sm:$0xff]
  %v4920 = vld [vmem:[%s4 + $0x120] sm:$0xff]
  %v4921 = vld [vmem:[%s4 + $0x128] sm:$0xff]
  %v4922 = vld [vmem:[%s4 + $0x130] sm:$0xff]
  %v4923 = vld [vmem:[%s4 + $0x138] sm:$0xff]
  %v4924 = vld [vmem:[%s4 + $0x140] sm:$0xff]
  %v4925 = vld [vmem:[%s4 + $0x148] sm:$0xff]
  %v4926 = vld [vmem:[%s4 + $0x150] sm:$0xff]
  %v4927 = vld [vmem:[%s4 + $0x158] sm:$0xff]
  %v4928 = vld [vmem:[%s4 + $0x160] sm:$0xff]
  %v4929 = vld [vmem:[%s4 + $0x168] sm:$0xff]
  %v4930 = vld [vmem:[%s4 + $0x170] sm:$0xff]
  %v4931 = vld [vmem:[%s4 + $0x178] sm:$0xff]
  %v4932 = vld [vmem:[%s4 + $0x180] sm:$0xff]
  %v4933 = vld [vmem:[%s4 + $0x188] sm:$0xff]
  %v4934 = vld [vmem:[%s4 + $0x190] sm:$0xff]
  %v4935 = vld [vmem:[%s4 + $0x198] sm:$0xff]
  %v4936 = vld [vmem:[%s4 + $0x1a0] sm:$0xff]
  %v4937 = vld [vmem:[%s4 + $0x1a8] sm:$0xff]
  %v4938 = vld [vmem:[%s4 + $0x1b0] sm:$0xff]
  %v4939 = vld [vmem:[%s4 + $0x1b8] sm:$0xff]
  %v4940 = vld [vmem:[%s4 + $0x1c0] sm:$0xff]
  %v4941 = vld [vmem:[%s4 + $0x1c8] sm:$0xff]
  %v4942 = vld [vmem:[%s4 + $0x1d0] sm:$0xff]
  %v4943 = vld [vmem:[%s4 + $0x1d8] sm:$0xff]
  %v4944 = vld [vmem:[%s4 + $0x1e0] sm:$0xff]
  %v4945 = vld [vmem:[%s4 + $0x1e8] sm:$0xff]
  %v4946 = vld [vmem:[%s4 + $0x1f0] sm:$0xff]
  %v4947 = vld [vmem:[%s4 + $0x1f8] sm:$0xff]
  %v5012 = vunpack.c.l.b16 %v4884
  %v5013 = vunpack.c.h.b16 %v4884
  %v5014 = vunpack.c.l.b16 %v4885
  %v5015 = vunpack.c.h.b16 %v4885
  %v5016 = vunpack.c.l.b16 %v4886
  %v5017 = vunpack.c.h.b16 %v4886
  %v5018 = vunpack.c.l.b16 %v4887
  %v5019 = vunpack.c.h.b16 %v4887
  %v5020 = vunpack.c.l.b16 %v4888
  %v5021 = vunpack.c.h.b16 %v4888
  %v5022 = vunpack.c.l.b16 %v4889
  %v5023 = vunpack.c.h.b16 %v4889
  %v5024 = vunpack.c.l.b16 %v4890
  %v5025 = vunpack.c.h.b16 %v4890
  %v5026 = vunpack.c.l.b16 %v4891
  %v5027 = vunpack.c.h.b16 %v4891
  %v5028 = vunpack.c.l.b16 %v4892
  %v5029 = vunpack.c.h.b16 %v4892
  %v5030 = vunpack.c.l.b16 %v4893
  %v5031 = vunpack.c.h.b16 %v4893
  %v5032 = vunpack.c.l.b16 %v4894
  %v5033 = vunpack.c.h.b16 %v4894
  %v5034 = vunpack.c.l.b16 %v4895
  %v5035 = vunpack.c.h.b16 %v4895
  %v5036 = vunpack.c.l.b16 %v4896
  %v5037 = vunpack.c.h.b16 %v4896
  %v5038 = vunpack.c.l.b16 %v4897
  %v5039 = vunpack.c.h.b16 %v4897
  %v5040 = vunpack.c.l.b16 %v4898
  %v5041 = vunpack.c.h.b16 %v4898
  %v5042 = vunpack.c.l.b16 %v4899
  %v5043 = vunpack.c.h.b16 %v4899
  %v5044 = vunpack.c.l.b16 %v4900
  %v5045 = vunpack.c.h.b16 %v4900
  %v5046 = vunpack.c.l.b16 %v4901
  %v5047 = vunpack.c.h.b16 %v4901
  %v5048 = vunpack.c.l.b16 %v4902
  %v5049 = vunpack.c.h.b16 %v4902
  %v5050 = vunpack.c.l.b16 %v4903
  %v5051 = vunpack.c.h.b16 %v4903
  %v5052 = vunpack.c.l.b16 %v4904
  %v5053 = vunpack.c.h.b16 %v4904
  %v5054 = vunpack.c.l.b16 %v4905
  %v5055 = vunpack.c.h.b16 %v4905
  %v5056 = vunpack.c.l.b16 %v4906
  %v5057 = vunpack.c.h.b16 %v4906
  %v5058 = vunpack.c.l.b16 %v4907
  %v5059 = vunpack.c.h.b16 %v4907
  %v5060 = vunpack.c.l.b16 %v4908
  %v5061 = vunpack.c.h.b16 %v4908
  %v5062 = vunpack.c.l.b16 %v4909
  %v5063 = vunpack.c.h.b16 %v4909
  %v5064 = vunpack.c.l.b16 %v4910
  %v5065 = vunpack.c.h.b16 %v4910
  %v5066 = vunpack.c.l.b16 %v4911
  %v5067 = vunpack.c.h.b16 %v4911
  %v5068 = vunpack.c.l.b16 %v4912
  %v5069 = vunpack.c.h.b16 %v4912
  %v5070 = vunpack.c.l.b16 %v4913
  %v5071 = vunpack.c.h.b16 %v4913
  %v5072 = vunpack.c.l.b16 %v4914
  %v5073 = vunpack.c.h.b16 %v4914
  %v5074 = vunpack.c.l.b16 %v4915
  %v5075 = vunpack.c.h.b16 %v4915
  %v5076 = vunpack.c.l.b16 %v4916
  %v5077 = vunpack.c.h.b16 %v4916
  %v5078 = vunpack.c.l.b16 %v4917
  %v5079 = vunpack.c.h.b16 %v4917
  %v5080 = vunpack.c.l.b16 %v4918
  %v5081 = vunpack.c.h.b16 %v4918
  %v5082 = vunpack.c.l.b16 %v4919
  %v5083 = vunpack.c.h.b16 %v4919
  %v5084 = vunpack.c.l.b16 %v4920
  %v5085 = vunpack.c.h.b16 %v4920
  %v5086 = vunpack.c.l.b16 %v4921
  %v5087 = vunpack.c.h.b16 %v4921
  %v5088 = vunpack.c.l.b16 %v4922
  %v5089 = vunpack.c.h.b16 %v4922
  %v5090 = vunpack.c.l.b16 %v4923
  %v5091 = vunpack.c.h.b16 %v4923
  %v5092 = vunpack.c.l.b16 %v4924
  %v5093 = vunpack.c.h.b16 %v4924
  %v5094 = vunpack.c.l.b16 %v4925
  %v5095 = vunpack.c.h.b16 %v4925
  %v5096 = vunpack.c.l.b16 %v4926
  %v5097 = vunpack.c.h.b16 %v4926
  %v5098 = vunpack.c.l.b16 %v4927
  %v5099 = vunpack.c.h.b16 %v4927
  %v5100 = vunpack.c.l.b16 %v4928
  %v5101 = vunpack.c.h.b16 %v4928
  %v5102 = vunpack.c.l.b16 %v4929
  %v5103 = vunpack.c.h.b16 %v4929
  %v5104 = vunpack.c.l.b16 %v4930
  %v5105 = vunpack.c.h.b16 %v4930
  %v5106 = vunpack.c.l.b16 %v4931
  %v5107 = vunpack.c.h.b16 %v4931
  %v5108 = vunpack.c.l.b16 %v4932
  %v5109 = vunpack.c.h.b16 %v4932
  %v5110 = vunpack.c.l.b16 %v4933
  %v5111 = vunpack.c.h.b16 %v4933
  %v5112 = vunpack.c.l.b16 %v4934
  %v5113 = vunpack.c.h.b16 %v4934
  %v5114 = vunpack.c.l.b16 %v4935
  %v5115 = vunpack.c.h.b16 %v4935
  %v5116 = vunpack.c.l.b16 %v4936
  %v5117 = vunpack.c.h.b16 %v4936
  %v5118 = vunpack.c.l.b16 %v4937
  %v5119 = vunpack.c.h.b16 %v4937
  %v5120 = vunpack.c.l.b16 %v4938
  %v5121 = vunpack.c.h.b16 %v4938
  %v5122 = vunpack.c.l.b16 %v4939
  %v5123 = vunpack.c.h.b16 %v4939
  %v5124 = vunpack.c.l.b16 %v4940
  %v5125 = vunpack.c.h.b16 %v4940
  %v5126 = vunpack.c.l.b16 %v4941
  %v5127 = vunpack.c.h.b16 %v4941
  %v5128 = vunpack.c.l.b16 %v4942
  %v5129 = vunpack.c.h.b16 %v4942
  %v5130 = vunpack.c.l.b16 %v4943
  %v5131 = vunpack.c.h.b16 %v4943
  %v5132 = vunpack.c.l.b16 %v4944
  %v5133 = vunpack.c.h.b16 %v4944
  %v5134 = vunpack.c.l.b16 %v4945
  %v5135 = vunpack.c.h.b16 %v4945
  %v5136 = vunpack.c.l.b16 %v4946
  %v5137 = vunpack.c.h.b16 %v4946
  %v5138 = vunpack.c.l.b16 %v4947
  %v5139 = vunpack.c.h.b16 %v4947
  %v5140 = vpack.c.b16 %v5016, %v5012
  %v5141 = vpack.c.b16 %v5017, %v5013
  %v5142 = vpack.c.b16 %v5018, %v5014
  %v5143 = vpack.c.b16 %v5019, %v5015
  %v5144 = vpack.c.b16 %v5024, %v5020
  %v5145 = vpack.c.b16 %v5025, %v5021
  %v5146 = vpack.c.b16 %v5026, %v5022
  %v5147 = vpack.c.b16 %v5027, %v5023
  %v5148 = vpack.c.b16 %v5032, %v5028
  %v5149 = vpack.c.b16 %v5033, %v5029
  %v5150 = vpack.c.b16 %v5034, %v5030
  %v5151 = vpack.c.b16 %v5035, %v5031
  %v5152 = vpack.c.b16 %v5040, %v5036
  %v5153 = vpack.c.b16 %v5041, %v5037
  %v5154 = vpack.c.b16 %v5042, %v5038
  %v5155 = vpack.c.b16 %v5043, %v5039
  %v5156 = vpack.c.b16 %v5048, %v5044
  %v5157 = vpack.c.b16 %v5049, %v5045
  %v5158 = vpack.c.b16 %v5050, %v5046
  %v5159 = vpack.c.b16 %v5051, %v5047
  %v5160 = vpack.c.b16 %v5056, %v5052
  %v5161 = vpack.c.b16 %v5057, %v5053
  %v5162 = vpack.c.b16 %v5058, %v5054
  %v5163 = vpack.c.b16 %v5059, %v5055
  %v5164 = vpack.c.b16 %v5064, %v5060
  %v5165 = vpack.c.b16 %v5065, %v5061
  %v5166 = vpack.c.b16 %v5066, %v5062
  %v5167 = vpack.c.b16 %v5067, %v5063
  %v5168 = vpack.c.b16 %v5072, %v5068
  %v5169 = vpack.c.b16 %v5073, %v5069
  %v5170 = vpack.c.b16 %v5074, %v5070
  %v5171 = vpack.c.b16 %v5075, %v5071
  %v5172 = vpack.c.b16 %v5080, %v5076
  %v5173 = vpack.c.b16 %v5081, %v5077
  %v5174 = vpack.c.b16 %v5082, %v5078
  %v5175 = vpack.c.b16 %v5083, %v5079
  %v5176 = vpack.c.b16 %v5088, %v5084
  %v5177 = vpack.c.b16 %v5089, %v5085
  %v5178 = vpack.c.b16 %v5090, %v5086
  %v5179 = vpack.c.b16 %v5091, %v5087
  %v5180 = vpack.c.b16 %v5096, %v5092
  %v5181 = vpack.c.b16 %v5097, %v5093
  %v5182 = vpack.c.b16 %v5098, %v5094
  %v5183 = vpack.c.b16 %v5099, %v5095
  %v5184 = vpack.c.b16 %v5104, %v5100
  %v5185 = vpack.c.b16 %v5105, %v5101
  %v5186 = vpack.c.b16 %v5106, %v5102
  %v5187 = vpack.c.b16 %v5107, %v5103
  %v5188 = vpack.c.b16 %v5112, %v5108
  %v5189 = vpack.c.b16 %v5113, %v5109
  %v5190 = vpack.c.b16 %v5114, %v5110
  %v5191 = vpack.c.b16 %v5115, %v5111
  %v5192 = vpack.c.b16 %v5120, %v5116
  %v5193 = vpack.c.b16 %v5121, %v5117
  %v5194 = vpack.c.b16 %v5122, %v5118
  %v5195 = vpack.c.b16 %v5123, %v5119
  %v5196 = vpack.c.b16 %v5128, %v5124
  %v5197 = vpack.c.b16 %v5129, %v5125
  %v5198 = vpack.c.b16 %v5130, %v5126
  %v5199 = vpack.c.b16 %v5131, %v5127
  %v5200 = vpack.c.b16 %v5136, %v5132
  %v5201 = vpack.c.b16 %v5137, %v5133
  %v5202 = vpack.c.b16 %v5138, %v5134
  %v5203 = vpack.c.b16 %v5139, %v5135
  %5268 = vmatprep.subr.bf16.mxu0 %v5169
  %5269 = vmatpush1.bf16.msra.mxu0 %v5168
  %5270 = vmatprep.subr.bf16.mxu0 %v5165
  %5271 = vmatpush1.bf16.msra.mxu0 %v5164
  %5272 = vmatprep.subr.bf16.mxu0 %v5161
  %5273 = vmatpush1.bf16.msra.mxu0 %v5160
  %5274 = vmatprep.subr.bf16.mxu0 %v5157
  %5275 = vmatpush1.bf16.msra.mxu0 %v5156
  %5276 = vmatprep.subr.bf16.mxu0 %v5153
  %5277 = vmatpush1.bf16.msra.mxu0 %v5152
  %5278 = vmatprep.subr.bf16.mxu0 %v5149
  %5279 = vmatpush1.bf16.msra.mxu0 %v5148
  %5280 = vmatprep.subr.bf16.mxu0 %v5145
  %5281 = vmatpush1.bf16.msra.mxu0 %v5144
  %5282 = vmatprep.subr.bf16.mxu0 %v5141
  %5283 = vmatpush1.bf16.msra.mxu0 %v5140
  %5284 = vmatprep.subr.bf16.mxu0 %v5201
  %5285 = vmatpush2.bf16.msra.mxu0 %v5200
  %5286 = vmatprep.subr.bf16.mxu0 %v5197
  %5287 = vmatpush2.bf16.msra.mxu0 %v5196
  %5288 = vmatprep.subr.bf16.mxu0 %v5193
  %5289 = vmatpush2.bf16.msra.mxu0 %v5192
  %5290 = vmatprep.subr.bf16.mxu0 %v5189
  %5291 = vmatpush2.bf16.msra.mxu0 %v5188
  %5292 = vmatprep.subr.bf16.mxu0 %v5185
  %5293 = vmatpush2.bf16.msra.mxu0 %v5184
  %5294 = vmatprep.subr.bf16.mxu0 %v5181
  %5295 = vmatpush2.bf16.msra.mxu0 %v5180
  %5296 = vmatprep.subr.bf16.mxu0 %v5177
  %5297 = vmatpush2.bf16.msra.mxu0 %v5176
  %5298 = vmatprep.subr.bf16.mxu0 %v5173
  %5299 = vmatpush2.bf16.msra.mxu0 %v5172
  %5300 = vmatprep.mubr.bf16.mxu0 %v4611
  %5301 = vmatmul.mubr.bf16.gmra.mxu0 %v4883
  %v5302 = vpop.f32.mrf.mxu0
  %v5303 = vadd.f32 %v46, %v5302
  %v5304 = vpop.f32.mrf.mxu0
  %v5305 = vadd.f32 %v50, %v5304
  %v5306 = vpop.f32.mrf.mxu0
  %v5307 = vpop.f32.mrf.mxu0
  %5308 = vdwg.mxu0
  %5309 = vmatprep.subr.bf16.mxu0 %v5171
  %5310 = vmatpush1.bf16.msra.mxu0 %v5170
  %5311 = vmatprep.subr.bf16.mxu0 %v5167
  %5312 = vmatpush1.bf16.msra.mxu0 %v5166
  %5313 = vmatprep.subr.bf16.mxu0 %v5163
  %5314 = vmatpush1.bf16.msra.mxu0 %v5162
  %5315 = vmatprep.subr.bf16.mxu0 %v5159
  %5316 = vmatpush1.bf16.msra.mxu0 %v5158
  %5317 = vmatprep.subr.bf16.mxu0 %v5155
  %5318 = vmatpush1.bf16.msra.mxu0 %v5154
  %5319 = vmatprep.subr.bf16.mxu0 %v5151
  %5320 = vmatpush1.bf16.msra.mxu0 %v5150
  %5321 = vmatprep.subr.bf16.mxu0 %v5147
  %5322 = vmatpush1.bf16.msra.mxu0 %v5146
  %5323 = vmatprep.subr.bf16.mxu0 %v5143
  %5324 = vmatpush1.bf16.msra.mxu0 %v5142
  %5325 = vmatprep.subr.bf16.mxu0 %v5203
  %5326 = vmatpush2.bf16.msra.mxu0 %v5202
  %5327 = vmatprep.subr.bf16.mxu0 %v5199
  %5328 = vmatpush2.bf16.msra.mxu0 %v5198
  %5329 = vmatprep.subr.bf16.mxu0 %v5195
  %5330 = vmatpush2.bf16.msra.mxu0 %v5194
  %5331 = vmatprep.subr.bf16.mxu0 %v5191
  %5332 = vmatpush2.bf16.msra.mxu0 %v5190
  %5333 = vmatprep.subr.bf16.mxu0 %v5187
  %5334 = vmatpush2.bf16.msra.mxu0 %v5186
  %5335 = vmatprep.subr.bf16.mxu0 %v5183
  %5336 = vmatpush2.bf16.msra.mxu0 %v5182
  %5337 = vmatprep.subr.bf16.mxu0 %v5179
  %5338 = vmatpush2.bf16.msra.mxu0 %v5178
  %5339 = vmatprep.subr.bf16.mxu0 %v5175
  %5340 = vmatpush2.bf16.msra.mxu0 %v5174
  %5341 = vmatprep.mubr.bf16.mxu0 %v4611
  %5342 = vmatmul.mubr.bf16.gmra.mxu0 %v4883
  %v5343 = vpop.f32.mrf.mxu0
  %v5344 = vadd.f32 %v54, %v5343
  %v5345 = vpop.f32.mrf.mxu0
  %v5346 = vadd.f32 %v58, %v5345
  %v5347 = vpop.f32.mrf.mxu0
  %v5348 = vpop.f32.mrf.mxu0
  %5349 = vdwg.mxu0
  %v5350 = vxor.u32 %v5303, 2147483648
  %v5351 = vmul.f32 %v5350, 1.442695
  %v5352 = vpow.pop %v5351
  %v5353 = vadd.f32 %v5352, 1.0
  %v5354 = vrcp.pop %v5353
  %v5355 = vmul.f32 1.0, %v5354
  %v5356 = vxor.u32 %v5305, 2147483648
  %v5357 = vmul.f32 %v5356, 1.442695
  %v5358 = vpow.pop %v5357
  %v5359 = vadd.f32 %v5358, 1.0
  %v5360 = vrcp.pop %v5359
  %v5361 = vmul.f32 1.0, %v5360
  %v5362 = vmul.f32 %v5355, %v5346
  %v5363 = vadd.f32 %v5344, %v5362
  %v5364 = vtanh.pop %v5363
  %v5365 = vsub.f32 1.0, %v5361
  %v5366 = vmul.f32 %v5365, %v5364
  %v5367 = vmul.f32 %v5361, %v4610
  %v5368 = vadd.f32 %v5366, %v5367
  %v5369 = vpack.c.bf16 %v5368, %v5368
  %s5370 = scalar_lea.vmem %s6, 24
  %5371 = vst [vmem:[%s5370] sm:$0xf] %v5369
  %s5372 = scalar_lea.vmem %s0, 84
  %v5373 = vld [vmem:[%s5372] sm:$0xff]
  %v5374 = vld [vmem:[%s5372 + $0x8] sm:$0xf]
  %v5375 = vunpack.c.l.bf16 %v5373
  %v5376 = vunpack.c.h.bf16 %v5373
  %v5377 = vunpack.c.l.bf16 %v5374
  %v5378 = vld [vmem:[%s2] sm:$0xff]
  %v5379 = vld [vmem:[%s2 + $0x8] sm:$0xf]
  %v5380 = vld [vmem:[%s2 + $0xc] sm:$0xff]
  %v5381 = vld [vmem:[%s2 + $0x14] sm:$0xf]
  %v5382 = vld [vmem:[%s2 + $0x18] sm:$0xff]
  %v5383 = vld [vmem:[%s2 + $0x20] sm:$0xf]
  %v5384 = vld [vmem:[%s2 + $0x24] sm:$0xff]
  %v5385 = vld [vmem:[%s2 + $0x2c] sm:$0xf]
  %v5386 = vld [vmem:[%s2 + $0x30] sm:$0xff]
  %v5387 = vld [vmem:[%s2 + $0x38] sm:$0xf]
  %v5388 = vld [vmem:[%s2 + $0x3c] sm:$0xff]
  %v5389 = vld [vmem:[%s2 + $0x44] sm:$0xf]
  %v5390 = vld [vmem:[%s2 + $0x48] sm:$0xff]
  %v5391 = vld [vmem:[%s2 + $0x50] sm:$0xf]
  %v5392 = vld [vmem:[%s2 + $0x54] sm:$0xff]
  %v5393 = vld [vmem:[%s2 + $0x5c] sm:$0xf]
  %v5394 = vld [vmem:[%s2 + $0x60] sm:$0xff]
  %v5395 = vld [vmem:[%s2 + $0x68] sm:$0xf]
  %v5396 = vld [vmem:[%s2 + $0x6c] sm:$0xff]
  %v5397 = vld [vmem:[%s2 + $0x74] sm:$0xf]
  %v5398 = vld [vmem:[%s2 + $0x78] sm:$0xff]
  %v5399 = vld [vmem:[%s2 + $0x80] sm:$0xf]
  %v5400 = vld [vmem:[%s2 + $0x84] sm:$0xff]
  %v5401 = vld [vmem:[%s2 + $0x8c] sm:$0xf]
  %v5402 = vld [vmem:[%s2 + $0x90] sm:$0xff]
  %v5403 = vld [vmem:[%s2 + $0x98] sm:$0xf]
  %v5404 = vld [vmem:[%s2 + $0x9c] sm:$0xff]
  %v5405 = vld [vmem:[%s2 + $0xa4] sm:$0xf]
  %v5406 = vld [vmem:[%s2 + $0xa8] sm:$0xff]
  %v5407 = vld [vmem:[%s2 + $0xb0] sm:$0xf]
  %v5408 = vld [vmem:[%s2 + $0xb4] sm:$0xff]
  %v5409 = vld [vmem:[%s2 + $0xbc] sm:$0xf]
  %v5442 = vunpack.c.l.b16 %v5378
  %v5443 = vunpack.c.h.b16 %v5378
  %v5444 = vunpack.c.l.b16 %v5379
  %v5445 = vunpack.c.l.b16 %v5380
  %v5446 = vunpack.c.h.b16 %v5380
  %v5447 = vunpack.c.l.b16 %v5381
  %v5448 = vunpack.c.l.b16 %v5382
  %v5449 = vunpack.c.h.b16 %v5382
  %v5450 = vunpack.c.l.b16 %v5383
  %v5451 = vunpack.c.l.b16 %v5384
  %v5452 = vunpack.c.h.b16 %v5384
  %v5453 = vunpack.c.l.b16 %v5385
  %v5454 = vunpack.c.l.b16 %v5386
  %v5455 = vunpack.c.h.b16 %v5386
  %v5456 = vunpack.c.l.b16 %v5387
  %v5457 = vunpack.c.l.b16 %v5388
  %v5458 = vunpack.c.h.b16 %v5388
  %v5459 = vunpack.c.l.b16 %v5389
  %v5460 = vunpack.c.l.b16 %v5390
  %v5461 = vunpack.c.h.b16 %v5390
  %v5462 = vunpack.c.l.b16 %v5391
  %v5463 = vunpack.c.l.b16 %v5392
  %v5464 = vunpack.c.h.b16 %v5392
  %v5465 = vunpack.c.l.b16 %v5393
  %v5466 = vunpack.c.l.b16 %v5394
  %v5467 = vunpack.c.h.b16 %v5394
  %v5468 = vunpack.c.l.b16 %v5395
  %v5469 = vunpack.c.l.b16 %v5396
  %v5470 = vunpack.c.h.b16 %v5396
  %v5471 = vunpack.c.l.b16 %v5397
  %v5472 = vunpack.c.l.b16 %v5398
  %v5473 = vunpack.c.h.b16 %v5398
  %v5474 = vunpack.c.l.b16 %v5399
  %v5475 = vunpack.c.l.b16 %v5400
  %v5476 = vunpack.c.h.b16 %v5400
  %v5477 = vunpack.c.l.b16 %v5401
  %v5478 = vunpack.c.l.b16 %v5402
  %v5479 = vunpack.c.h.b16 %v5402
  %v5480 = vunpack.c.l.b16 %v5403
  %v5481 = vunpack.c.l.b16 %v5404
  %v5482 = vunpack.c.h.b16 %v5404
  %v5483 = vunpack.c.l.b16 %v5405
  %v5484 = vunpack.c.l.b16 %v5406
  %v5485 = vunpack.c.h.b16 %v5406
  %v5486 = vunpack.c.l.b16 %v5407
  %v5487 = vunpack.c.l.b16 %v5408
  %v5488 = vunpack.c.h.b16 %v5408
  %v5489 = vunpack.c.l.b16 %v5409
  %v5490 = vpack.c.b16 %v5445, %v5442
  %v5491 = vpack.c.b16 %v5446, %v5443
  %v5492 = vpack.c.b16 %v5447, %v5444
  %v5493 = vpack.c.b16 %v5451, %v5448
  %v5494 = vpack.c.b16 %v5452, %v5449
  %v5495 = vpack.c.b16 %v5453, %v5450
  %v5496 = vpack.c.b16 %v5457, %v5454
  %v5497 = vpack.c.b16 %v5458, %v5455
  %v5498 = vpack.c.b16 %v5459, %v5456
  %v5499 = vpack.c.b16 %v5463, %v5460
  %v5500 = vpack.c.b16 %v5464, %v5461
  %v5501 = vpack.c.b16 %v5465, %v5462
  %v5502 = vpack.c.b16 %v5469, %v5466
  %v5503 = vpack.c.b16 %v5470, %v5467
  %v5504 = vpack.c.b16 %v5471, %v5468
  %v5505 = vpack.c.b16 %v5475, %v5472
  %v5506 = vpack.c.b16 %v5476, %v5473
  %v5507 = vpack.c.b16 %v5477, %v5474
  %v5508 = vpack.c.b16 %v5481, %v5478
  %v5509 = vpack.c.b16 %v5482, %v5479
  %v5510 = vpack.c.b16 %v5483, %v5480
  %v5511 = vpack.c.b16 %v5487, %v5484
  %v5512 = vpack.c.b16 %v5488, %v5485
  %v5513 = vpack.c.b16 %v5489, %v5486
  %5538 = vmatprep.subr.bf16.mxu0 %v5512
  %5539 = vmatpush1.bf16.msra.mxu0 %v5511
  %5540 = vmatprep.subr.bf16.mxu0 %v5509
  %5541 = vmatpush1.bf16.msra.mxu0 %v5508
  %5542 = vmatprep.subr.bf16.mxu0 %v5506
  %5543 = vmatpush1.bf16.msra.mxu0 %v5505
  %5544 = vmatprep.subr.bf16.mxu0 %v5503
  %5545 = vmatpush1.bf16.msra.mxu0 %v5502
  %5546 = vmatprep.subr.bf16.mxu0 %v5500
  %5547 = vmatpush1.bf16.msra.mxu0 %v5499
  %5548 = vmatprep.subr.bf16.mxu0 %v5497
  %5549 = vmatpush1.bf16.msra.mxu0 %v5496
  %5550 = vmatprep.subr.bf16.mxu0 %v5494
  %5551 = vmatpush1.bf16.msra.mxu0 %v5493
  %5552 = vmatprep.subr.bf16.mxu0 %v5491
  %5553 = vmatpush1.bf16.msra.mxu0 %v5490
  %5554 = vmatprep.subr.bf16.mxu0 0
  %5555 = vmatpush2.bf16.msra.mxu0 0
  %5556 = vmatprep.subr.bf16.mxu0 0
  %5557 = vmatpush2.bf16.msra.mxu0 0
  %5558 = vmatprep.subr.bf16.mxu0 0
  %5559 = vmatpush2.bf16.msra.mxu0 0
  %5560 = vmatprep.subr.bf16.mxu0 0
  %5561 = vmatpush2.bf16.msra.mxu0 0
  %5562 = vmatprep.subr.bf16.mxu0 0
  %5563 = vmatpush2.bf16.msra.mxu0 0
  %5564 = vmatprep.subr.bf16.mxu0 0
  %5565 = vmatpush2.bf16.msra.mxu0 0
  %5566 = vmatprep.subr.bf16.mxu0 0
  %5567 = vmatpush2.bf16.msra.mxu0 0
  %5568 = vmatprep.subr.bf16.mxu0 0
  %5569 = vmatpush2.bf16.msra.mxu0 0
  %5570 = vmatprep.mubr.bf16.mxu0 0
  %5571 = vmatmul.mubr.bf16.gmra.mxu0 %v4883
  %v5572 = vpop.f32.mrf.mxu0
  %v5573 = vadd.f32 0.0, %v5572
  %v5574 = vpop.f32.mrf.mxu0
  %v5575 = vadd.f32 0.0, %v5574
  %v5576 = vpop.f32.mrf.mxu0
  %v5577 = vpop.f32.mrf.mxu0
  %5578 = vdwg.mxu0
  %5579 = vmatprep.subr.bf16.mxu0 0
  %5580 = vmatpush1.bf16.msra.mxu0 %v5513
  %5581 = vmatprep.subr.bf16.mxu0 0
  %5582 = vmatpush1.bf16.msra.mxu0 %v5510
  %5583 = vmatprep.subr.bf16.mxu0 0
  %5584 = vmatpush1.bf16.msra.mxu0 %v5507
  %5585 = vmatprep.subr.bf16.mxu0 0
  %5586 = vmatpush1.bf16.msra.mxu0 %v5504
  %5587 = vmatprep.subr.bf16.mxu0 0
  %5588 = vmatpush1.bf16.msra.mxu0 %v5501
  %5589 = vmatprep.subr.bf16.mxu0 0
  %5590 = vmatpush1.bf16.msra.mxu0 %v5498
  %5591 = vmatprep.subr.bf16.mxu0 0
  %5592 = vmatpush1.bf16.msra.mxu0 %v5495
  %5593 = vmatprep.subr.bf16.mxu0 0
  %5594 = vmatpush1.bf16.msra.mxu0 %v5492
  %5595 = vmatprep.subr.bf16.mxu0 0
  %5596 = vmatpush2.bf16.msra.mxu0 0
  %5597 = vmatprep.subr.bf16.mxu0 0
  %5598 = vmatpush2.bf16.msra.mxu0 0
  %5599 = vmatprep.subr.bf16.mxu0 0
  %5600 = vmatpush2.bf16.msra.mxu0 0
  %5601 = vmatprep.subr.bf16.mxu0 0
  %5602 = vmatpush2.bf16.msra.mxu0 0
  %5603 = vmatprep.subr.bf16.mxu0 0
  %5604 = vmatpush2.bf16.msra.mxu0 0
  %5605 = vmatprep.subr.bf16.mxu0 0
  %5606 = vmatpush2.bf16.msra.mxu0 0
  %5607 = vmatprep.subr.bf16.mxu0 0
  %5608 = vmatpush2.bf16.msra.mxu0 0
  %5609 = vmatprep.subr.bf16.mxu0 0
  %5610 = vmatpush2.bf16.msra.mxu0 0
  %5611 = vmatprep.mubr.bf16.mxu0 0
  %5612 = vmatmul.mubr.bf16.gmra.mxu0 %v4883
  %v5613 = vpop.f32.mrf.mxu0
  %v5614 = vadd.f32 0.0, %v5613
  %v5615 = vpop.f32.mrf.mxu0
  %v5616 = vpop.f32.mrf.mxu0
  %v5617 = vpop.f32.mrf.mxu0
  %5618 = vdwg.mxu0
  %v5619 = vadd.f32 %v5375, %v5573
  %v5620 = vxor.u32 %v5619, 2147483648
  %v5621 = vmul.f32 %v5620, 1.442695
  %v5622 = vpow.pop %v5621
  %v5623 = vadd.f32 %v5622, 1.0
  %v5624 = vrcp.pop %v5623
  %v5625 = vmul.f32 1.0, %v5624
  %v5626 = vadd.f32 %v5376, %v5575
  %v5627 = vxor.u32 %v5626, 2147483648
  %v5628 = vmul.f32 %v5627, 1.442695
  %v5629 = vpow.pop %v5628
  %v5630 = vadd.f32 %v5629, 1.0
  %v5631 = vrcp.pop %v5630
  %v5632 = vmul.f32 1.0, %v5631
  %v5633 = vadd.f32 %v5614, %v39
  %v5634 = vmul.f32 %v5625, %v5633
  %v5635 = vadd.f32 %v5377, %v5634
  %v5636 = vtanh.pop %v5635
  %v5637 = vsub.f32 1.0, %v5632
  %v5638 = vmul.f32 %v5637, %v5636
  %v5639 = vmul.f32 %v5632, %v4882
  %v5640 = vadd.f32 %v5638, %v5639
  %v5641 = vpack.c.bf16 %v5640, %v5640
  %v5642 = vld [vmem:[%s4] sm:$0xff]
  %v5643 = vld [vmem:[%s4 + $0x8] sm:$0xff]
  %v5644 = vld [vmem:[%s4 + $0x10] sm:$0xff]
  %v5645 = vld [vmem:[%s4 + $0x18] sm:$0xff]
  %v5646 = vld [vmem:[%s4 + $0x20] sm:$0xff]
  %v5647 = vld [vmem:[%s4 + $0x28] sm:$0xff]
  %v5648 = vld [vmem:[%s4 + $0x30] sm:$0xff]
  %v5649 = vld [vmem:[%s4 + $0x38] sm:$0xff]
  %v5650 = vld [vmem:[%s4 + $0x40] sm:$0xff]
  %v5651 = vld [vmem:[%s4 + $0x48] sm:$0xff]
  %v5652 = vld [vmem:[%s4 + $0x50] sm:$0xff]
  %v5653 = vld [vmem:[%s4 + $0x58] sm:$0xff]
  %v5654 = vld [vmem:[%s4 + $0x60] sm:$0xff]
  %v5655 = vld [vmem:[%s4 + $0x68] sm:$0xff]
  %v5656 = vld [vmem:[%s4 + $0x70] sm:$0xff]
  %v5657 = vld [vmem:[%s4 + $0x78] sm:$0xff]
  %v5658 = vld [vmem:[%s4 + $0x80] sm:$0xff]
  %v5659 = vld [vmem:[%s4 + $0x88] sm:$0xff]
  %v5660 = vld [vmem:[%s4 + $0x90] sm:$0xff]
  %v5661 = vld [vmem:[%s4 + $0x98] sm:$0xff]
  %v5662 = vld [vmem:[%s4 + $0xa0] sm:$0xff]
  %v5663 = vld [vmem:[%s4 + $0xa8] sm:$0xff]
  %v5664 = vld [vmem:[%s4 + $0xb0] sm:$0xff]
  %v5665 = vld [vmem:[%s4 + $0xb8] sm:$0xff]
  %v5666 = vld [vmem:[%s4 + $0xc0] sm:$0xff]
  %v5667 = vld [vmem:[%s4 + $0xc8] sm:$0xff]
  %v5668 = vld [vmem:[%s4 + $0xd0] sm:$0xff]
  %v5669 = vld [vmem:[%s4 + $0xd8] sm:$0xff]
  %v5670 = vld [vmem:[%s4 + $0xe0] sm:$0xff]
  %v5671 = vld [vmem:[%s4 + $0xe8] sm:$0xff]
  %v5672 = vld [vmem:[%s4 + $0xf0] sm:$0xff]
  %v5673 = vld [vmem:[%s4 + $0xf8] sm:$0xff]
  %v5674 = vld [vmem:[%s4 + $0x100] sm:$0xff]
  %v5675 = vld [vmem:[%s4 + $0x108] sm:$0xff]
  %v5676 = vld [vmem:[%s4 + $0x110] sm:$0xff]
  %v5677 = vld [vmem:[%s4 + $0x118] sm:$0xff]
  %v5678 = vld [vmem:[%s4 + $0x120] sm:$0xff]
  %v5679 = vld [vmem:[%s4 + $0x128] sm:$0xff]
  %v5680 = vld [vmem:[%s4 + $0x130] sm:$0xff]
  %v5681 = vld [vmem:[%s4 + $0x138] sm:$0xff]
  %v5682 = vld [vmem:[%s4 + $0x140] sm:$0xff]
  %v5683 = vld [vmem:[%s4 + $0x148] sm:$0xff]
  %v5684 = vld [vmem:[%s4 + $0x150] sm:$0xff]
  %v5685 = vld [vmem:[%s4 + $0x158] sm:$0xff]
  %v5686 = vld [vmem:[%s4 + $0x160] sm:$0xff]
  %v5687 = vld [vmem:[%s4 + $0x168] sm:$0xff]
  %v5688 = vld [vmem:[%s4 + $0x170] sm:$0xff]
  %v5689 = vld [vmem:[%s4 + $0x178] sm:$0xff]
  %v5690 = vld [vmem:[%s4 + $0x180] sm:$0xff]
  %v5691 = vld [vmem:[%s4 + $0x188] sm:$0xff]
  %v5692 = vld [vmem:[%s4 + $0x190] sm:$0xff]
  %v5693 = vld [vmem:[%s4 + $0x198] sm:$0xff]
  %v5694 = vld [vmem:[%s4 + $0x1a0] sm:$0xff]
  %v5695 = vld [vmem:[%s4 + $0x1a8] sm:$0xff]
  %v5696 = vld [vmem:[%s4 + $0x1b0] sm:$0xff]
  %v5697 = vld [vmem:[%s4 + $0x1b8] sm:$0xff]
  %v5698 = vld [vmem:[%s4 + $0x1c0] sm:$0xff]
  %v5699 = vld [vmem:[%s4 + $0x1c8] sm:$0xff]
  %v5700 = vld [vmem:[%s4 + $0x1d0] sm:$0xff]
  %v5701 = vld [vmem:[%s4 + $0x1d8] sm:$0xff]
  %v5702 = vld [vmem:[%s4 + $0x1e0] sm:$0xff]
  %v5703 = vld [vmem:[%s4 + $0x1e8] sm:$0xff]
  %v5704 = vld [vmem:[%s4 + $0x1f0] sm:$0xff]
  %v5705 = vld [vmem:[%s4 + $0x1f8] sm:$0xff]
  %v5770 = vunpack.c.l.b16 %v5642
  %v5771 = vunpack.c.h.b16 %v5642
  %v5772 = vunpack.c.l.b16 %v5643
  %v5773 = vunpack.c.h.b16 %v5643
  %v5774 = vunpack.c.l.b16 %v5644
  %v5775 = vunpack.c.h.b16 %v5644
  %v5776 = vunpack.c.l.b16 %v5645
  %v5777 = vunpack.c.h.b16 %v5645
  %v5778 = vunpack.c.l.b16 %v5646
  %v5779 = vunpack.c.h.b16 %v5646
  %v5780 = vunpack.c.l.b16 %v5647
  %v5781 = vunpack.c.h.b16 %v5647
  %v5782 = vunpack.c.l.b16 %v5648
  %v5783 = vunpack.c.h.b16 %v5648
  %v5784 = vunpack.c.l.b16 %v5649
  %v5785 = vunpack.c.h.b16 %v5649
  %v5786 = vunpack.c.l.b16 %v5650
  %v5787 = vunpack.c.h.b16 %v5650
  %v5788 = vunpack.c.l.b16 %v5651
  %v5789 = vunpack.c.h.b16 %v5651
  %v5790 = vunpack.c.l.b16 %v5652
  %v5791 = vunpack.c.h.b16 %v5652
  %v5792 = vunpack.c.l.b16 %v5653
  %v5793 = vunpack.c.h.b16 %v5653
  %v5794 = vunpack.c.l.b16 %v5654
  %v5795 = vunpack.c.h.b16 %v5654
  %v5796 = vunpack.c.l.b16 %v5655
  %v5797 = vunpack.c.h.b16 %v5655
  %v5798 = vunpack.c.l.b16 %v5656
  %v5799 = vunpack.c.h.b16 %v5656
  %v5800 = vunpack.c.l.b16 %v5657
  %v5801 = vunpack.c.h.b16 %v5657
  %v5802 = vunpack.c.l.b16 %v5658
  %v5803 = vunpack.c.h.b16 %v5658
  %v5804 = vunpack.c.l.b16 %v5659
  %v5805 = vunpack.c.h.b16 %v5659
  %v5806 = vunpack.c.l.b16 %v5660
  %v5807 = vunpack.c.h.b16 %v5660
  %v5808 = vunpack.c.l.b16 %v5661
  %v5809 = vunpack.c.h.b16 %v5661
  %v5810 = vunpack.c.l.b16 %v5662
  %v5811 = vunpack.c.h.b16 %v5662
  %v5812 = vunpack.c.l.b16 %v5663
  %v5813 = vunpack.c.h.b16 %v5663
  %v5814 = vunpack.c.l.b16 %v5664
  %v5815 = vunpack.c.h.b16 %v5664
  %v5816 = vunpack.c.l.b16 %v5665
  %v5817 = vunpack.c.h.b16 %v5665
  %v5818 = vunpack.c.l.b16 %v5666
  %v5819 = vunpack.c.h.b16 %v5666
  %v5820 = vunpack.c.l.b16 %v5667
  %v5821 = vunpack.c.h.b16 %v5667
  %v5822 = vunpack.c.l.b16 %v5668
  %v5823 = vunpack.c.h.b16 %v5668
  %v5824 = vunpack.c.l.b16 %v5669
  %v5825 = vunpack.c.h.b16 %v5669
  %v5826 = vunpack.c.l.b16 %v5670
  %v5827 = vunpack.c.h.b16 %v5670
  %v5828 = vunpack.c.l.b16 %v5671
  %v5829 = vunpack.c.h.b16 %v5671
  %v5830 = vunpack.c.l.b16 %v5672
  %v5831 = vunpack.c.h.b16 %v5672
  %v5832 = vunpack.c.l.b16 %v5673
  %v5833 = vunpack.c.h.b16 %v5673
  %v5834 = vunpack.c.l.b16 %v5674
  %v5835 = vunpack.c.h.b16 %v5674
  %v5836 = vunpack.c.l.b16 %v5675
  %v5837 = vunpack.c.h.b16 %v5675
  %v5838 = vunpack.c.l.b16 %v5676
  %v5839 = vunpack.c.h.b16 %v5676
  %v5840 = vunpack.c.l.b16 %v5677
  %v5841 = vunpack.c.h.b16 %v5677
  %v5842 = vunpack.c.l.b16 %v5678
  %v5843 = vunpack.c.h.b16 %v5678
  %v5844 = vunpack.c.l.b16 %v5679
  %v5845 = vunpack.c.h.b16 %v5679
  %v5846 = vunpack.c.l.b16 %v5680
  %v5847 = vunpack.c.h.b16 %v5680
  %v5848 = vunpack.c.l.b16 %v5681
  %v5849 = vunpack.c.h.b16 %v5681
  %v5850 = vunpack.c.l.b16 %v5682
  %v5851 = vunpack.c.h.b16 %v5682
  %v5852 = vunpack.c.l.b16 %v5683
  %v5853 = vunpack.c.h.b16 %v5683
  %v5854 = vunpack.c.l.b16 %v5684
  %v5855 = vunpack.c.h.b16 %v5684
  %v5856 = vunpack.c.l.b16 %v5685
  %v5857 = vunpack.c.h.b16 %v5685
  %v5858 = vunpack.c.l.b16 %v5686
  %v5859 = vunpack.c.h.b16 %v5686
  %v5860 = vunpack.c.l.b16 %v5687
  %v5861 = vunpack.c.h.b16 %v5687
  %v5862 = vunpack.c.l.b16 %v5688
  %v5863 = vunpack.c.h.b16 %v5688
  %v5864 = vunpack.c.l.b16 %v5689
  %v5865 = vunpack.c.h.b16 %v5689
  %v5866 = vunpack.c.l.b16 %v5690
  %v5867 = vunpack.c.h.b16 %v5690
  %v5868 = vunpack.c.l.b16 %v5691
  %v5869 = vunpack.c.h.b16 %v5691
  %v5870 = vunpack.c.l.b16 %v5692
  %v5871 = vunpack.c.h.b16 %v5692
  %v5872 = vunpack.c.l.b16 %v5693
  %v5873 = vunpack.c.h.b16 %v5693
  %v5874 = vunpack.c.l.b16 %v5694
  %v5875 = vunpack.c.h.b16 %v5694
  %v5876 = vunpack.c.l.b16 %v5695
  %v5877 = vunpack.c.h.b16 %v5695
  %v5878 = vunpack.c.l.b16 %v5696
  %v5879 = vunpack.c.h.b16 %v5696
  %v5880 = vunpack.c.l.b16 %v5697
  %v5881 = vunpack.c.h.b16 %v5697
  %v5882 = vunpack.c.l.b16 %v5698
  %v5883 = vunpack.c.h.b16 %v5698
  %v5884 = vunpack.c.l.b16 %v5699
  %v5885 = vunpack.c.h.b16 %v5699
  %v5886 = vunpack.c.l.b16 %v5700
  %v5887 = vunpack.c.h.b16 %v5700
  %v5888 = vunpack.c.l.b16 %v5701
  %v5889 = vunpack.c.h.b16 %v5701
  %v5890 = vunpack.c.l.b16 %v5702
  %v5891 = vunpack.c.h.b16 %v5702
  %v5892 = vunpack.c.l.b16 %v5703
  %v5893 = vunpack.c.h.b16 %v5703
  %v5894 = vunpack.c.l.b16 %v5704
  %v5895 = vunpack.c.h.b16 %v5704
  %v5896 = vunpack.c.l.b16 %v5705
  %v5897 = vunpack.c.h.b16 %v5705
  %v5898 = vpack.c.b16 %v5774, %v5770
  %v5899 = vpack.c.b16 %v5775, %v5771
  %v5900 = vpack.c.b16 %v5776, %v5772
  %v5901 = vpack.c.b16 %v5777, %v5773
  %v5902 = vpack.c.b16 %v5782, %v5778
  %v5903 = vpack.c.b16 %v5783, %v5779
  %v5904 = vpack.c.b16 %v5784, %v5780
  %v5905 = vpack.c.b16 %v5785, %v5781
  %v5906 = vpack.c.b16 %v5790, %v5786
  %v5907 = vpack.c.b16 %v5791, %v5787
  %v5908 = vpack.c.b16 %v5792, %v5788
  %v5909 = vpack.c.b16 %v5793, %v5789
  %v5910 = vpack.c.b16 %v5798, %v5794
  %v5911 = vpack.c.b16 %v5799, %v5795
  %v5912 = vpack.c.b16 %v5800, %v5796
  %v5913 = vpack.c.b16 %v5801, %v5797
  %v5914 = vpack.c.b16 %v5806, %v5802
  %v5915 = vpack.c.b16 %v5807, %v5803
  %v5916 = vpack.c.b16 %v5808, %v5804
  %v5917 = vpack.c.b16 %v5809, %v5805
  %v5918 = vpack.c.b16 %v5814, %v5810
  %v5919 = vpack.c.b16 %v5815, %v5811
  %v5920 = vpack.c.b16 %v5816, %v5812
  %v5921 = vpack.c.b16 %v5817, %v5813
  %v5922 = vpack.c.b16 %v5822, %v5818
  %v5923 = vpack.c.b16 %v5823, %v5819
  %v5924 = vpack.c.b16 %v5824, %v5820
  %v5925 = vpack.c.b16 %v5825, %v5821
  %v5926 = vpack.c.b16 %v5830, %v5826
  %v5927 = vpack.c.b16 %v5831, %v5827
  %v5928 = vpack.c.b16 %v5832, %v5828
  %v5929 = vpack.c.b16 %v5833, %v5829
  %v5930 = vpack.c.b16 %v5838, %v5834
  %v5931 = vpack.c.b16 %v5839, %v5835
  %v5932 = vpack.c.b16 %v5840, %v5836
  %v5933 = vpack.c.b16 %v5841, %v5837
  %v5934 = vpack.c.b16 %v5846, %v5842
  %v5935 = vpack.c.b16 %v5847, %v5843
  %v5936 = vpack.c.b16 %v5848, %v5844
  %v5937 = vpack.c.b16 %v5849, %v5845
  %v5938 = vpack.c.b16 %v5854, %v5850
  %v5939 = vpack.c.b16 %v5855, %v5851
  %v5940 = vpack.c.b16 %v5856, %v5852
  %v5941 = vpack.c.b16 %v5857, %v5853
  %v5942 = vpack.c.b16 %v5862, %v5858
  %v5943 = vpack.c.b16 %v5863, %v5859
  %v5944 = vpack.c.b16 %v5864, %v5860
  %v5945 = vpack.c.b16 %v5865, %v5861
  %v5946 = vpack.c.b16 %v5870, %v5866
  %v5947 = vpack.c.b16 %v5871, %v5867
  %v5948 = vpack.c.b16 %v5872, %v5868
  %v5949 = vpack.c.b16 %v5873, %v5869
  %v5950 = vpack.c.b16 %v5878, %v5874
  %v5951 = vpack.c.b16 %v5879, %v5875
  %v5952 = vpack.c.b16 %v5880, %v5876
  %v5953 = vpack.c.b16 %v5881, %v5877
  %v5954 = vpack.c.b16 %v5886, %v5882
  %v5955 = vpack.c.b16 %v5887, %v5883
  %v5956 = vpack.c.b16 %v5888, %v5884
  %v5957 = vpack.c.b16 %v5889, %v5885
  %v5958 = vpack.c.b16 %v5894, %v5890
  %v5959 = vpack.c.b16 %v5895, %v5891
  %v5960 = vpack.c.b16 %v5896, %v5892
  %v5961 = vpack.c.b16 %v5897, %v5893
  %6026 = vmatprep.subr.bf16.mxu0 %v5927
  %6027 = vmatpush1.bf16.msra.mxu0 %v5926
  %6028 = vmatprep.subr.bf16.mxu0 %v5923
  %6029 = vmatpush1.bf16.msra.mxu0 %v5922
  %6030 = vmatprep.subr.bf16.mxu0 %v5919
  %6031 = vmatpush1.bf16.msra.mxu0 %v5918
  %6032 = vmatprep.subr.bf16.mxu0 %v5915
  %6033 = vmatpush1.bf16.msra.mxu0 %v5914
  %6034 = vmatprep.subr.bf16.mxu0 %v5911
  %6035 = vmatpush1.bf16.msra.mxu0 %v5910
  %6036 = vmatprep.subr.bf16.mxu0 %v5907
  %6037 = vmatpush1.bf16.msra.mxu0 %v5906
  %6038 = vmatprep.subr.bf16.mxu0 %v5903
  %6039 = vmatpush1.bf16.msra.mxu0 %v5902
  %6040 = vmatprep.subr.bf16.mxu0 %v5899
  %6041 = vmatpush1.bf16.msra.mxu0 %v5898
  %6042 = vmatprep.subr.bf16.mxu0 %v5959
  %6043 = vmatpush2.bf16.msra.mxu0 %v5958
  %6044 = vmatprep.subr.bf16.mxu0 %v5955
  %6045 = vmatpush2.bf16.msra.mxu0 %v5954
  %6046 = vmatprep.subr.bf16.mxu0 %v5951
  %6047 = vmatpush2.bf16.msra.mxu0 %v5950
  %6048 = vmatprep.subr.bf16.mxu0 %v5947
  %6049 = vmatpush2.bf16.msra.mxu0 %v5946
  %6050 = vmatprep.subr.bf16.mxu0 %v5943
  %6051 = vmatpush2.bf16.msra.mxu0 %v5942
  %6052 = vmatprep.subr.bf16.mxu0 %v5939
  %6053 = vmatpush2.bf16.msra.mxu0 %v5938
  %6054 = vmatprep.subr.bf16.mxu0 %v5935
  %6055 = vmatpush2.bf16.msra.mxu0 %v5934
  %6056 = vmatprep.subr.bf16.mxu0 %v5931
  %6057 = vmatpush2.bf16.msra.mxu0 %v5930
  %6058 = vmatprep.mubr.bf16.mxu0 %v5369
  %6059 = vmatmul.mubr.bf16.gmra.mxu0 %v5641
  %v6060 = vpop.f32.mrf.mxu0
  %v6061 = vadd.f32 %v46, %v6060
  %v6062 = vpop.f32.mrf.mxu0
  %v6063 = vadd.f32 %v50, %v6062
  %v6064 = vpop.f32.mrf.mxu0
  %v6065 = vpop.f32.mrf.mxu0
  %6066 = vdwg.mxu0
  %6067 = vmatprep.subr.bf16.mxu0 %v5929
  %6068 = vmatpush1.bf16.msra.mxu0 %v5928
  %6069 = vmatprep.subr.bf16.mxu0 %v5925
  %6070 = vmatpush1.bf16.msra.mxu0 %v5924
  %6071 = vmatprep.subr.bf16.mxu0 %v5921
  %6072 = vmatpush1.bf16.msra.mxu0 %v5920
  %6073 = vmatprep.subr.bf16.mxu0 %v5917
  %6074 = vmatpush1.bf16.msra.mxu0 %v5916
  %6075 = vmatprep.subr.bf16.mxu0 %v5913
  %6076 = vmatpush1.bf16.msra.mxu0 %v5912
  %6077 = vmatprep.subr.bf16.mxu0 %v5909
  %6078 = vmatpush1.bf16.msra.mxu0 %v5908
  %6079 = vmatprep.subr.bf16.mxu0 %v5905
  %6080 = vmatpush1.bf16.msra.mxu0 %v5904
  %6081 = vmatprep.subr.bf16.mxu0 %v5901
  %6082 = vmatpush1.bf16.msra.mxu0 %v5900
  %6083 = vmatprep.subr.bf16.mxu0 %v5961
  %6084 = vmatpush2.bf16.msra.mxu0 %v5960
  %6085 = vmatprep.subr.bf16.mxu0 %v5957
  %6086 = vmatpush2.bf16.msra.mxu0 %v5956
  %6087 = vmatprep.subr.bf16.mxu0 %v5953
  %6088 = vmatpush2.bf16.msra.mxu0 %v5952
  %6089 = vmatprep.subr.bf16.mxu0 %v5949
  %6090 = vmatpush2.bf16.msra.mxu0 %v5948
  %6091 = vmatprep.subr.bf16.mxu0 %v5945
  %6092 = vmatpush2.bf16.msra.mxu0 %v5944
  %6093 = vmatprep.subr.bf16.mxu0 %v5941
  %6094 = vmatpush2.bf16.msra.mxu0 %v5940
  %6095 = vmatprep.subr.bf16.mxu0 %v5937
  %6096 = vmatpush2.bf16.msra.mxu0 %v5936
  %6097 = vmatprep.subr.bf16.mxu0 %v5933
  %6098 = vmatpush2.bf16.msra.mxu0 %v5932
  %6099 = vmatprep.mubr.bf16.mxu0 %v5369
  %6100 = vmatmul.mubr.bf16.gmra.mxu0 %v5641
  %v6101 = vpop.f32.mrf.mxu0
  %v6102 = vadd.f32 %v54, %v6101
  %v6103 = vpop.f32.mrf.mxu0
  %v6104 = vadd.f32 %v58, %v6103
  %v6105 = vpop.f32.mrf.mxu0
  %v6106 = vpop.f32.mrf.mxu0
  %6107 = vdwg.mxu0
  %v6108 = vxor.u32 %v6061, 2147483648
  %v6109 = vmul.f32 %v6108, 1.442695
  %v6110 = vpow.pop %v6109
  %v6111 = vadd.f32 %v6110, 1.0
  %v6112 = vrcp.pop %v6111
  %v6113 = vmul.f32 1.0, %v6112
  %v6114 = vxor.u32 %v6063, 2147483648
  %v6115 = vmul.f32 %v6114, 1.442695
  %v6116 = vpow.pop %v6115
  %v6117 = vadd.f32 %v6116, 1.0
  %v6118 = vrcp.pop %v6117
  %v6119 = vmul.f32 1.0, %v6118
  %v6120 = vmul.f32 %v6113, %v6104
  %v6121 = vadd.f32 %v6102, %v6120
  %v6122 = vtanh.pop %v6121
  %v6123 = vsub.f32 1.0, %v6119
  %v6124 = vmul.f32 %v6123, %v6122
  %v6125 = vmul.f32 %v6119, %v5368
  %v6126 = vadd.f32 %v6124, %v6125
  %v6127 = vpack.c.bf16 %v6126, %v6126
  %s6128 = scalar_lea.vmem %s6, 28
  %6129 = vst [vmem:[%s6128] sm:$0xf] %v6127
  %6130 = vst [vmem:[%s7] sm:$0xff] %v5640
  %6131 = vst [vmem:[%s64] sm:$0xff] %v6126
  // Predicated region
  $region30: #{grunet_forward.1} parent=0 // pred_check
    _
  $region31: #{grunet_forward.1} parent=0 // pred_check_branch
    %6133 = sbr.rel (0) target = $region33
  $region32: #{grunet_forward.1} parent=0 // pred_region
    _
  $region33: #{grunet_forward.1} parent=0 // pred_fallthru
    _
  // Predicated region
  $region34: #{grunet_forward.1} parent=0 // pred_check
    _
  $region35: #{grunet_forward.1} parent=0 // pred_check_branch
    %6135 = sbr.rel (0) target = $region37
  $region36: #{grunet_forward.1} parent=0 // pred_region
    _
  $region37: #{grunet_forward.1} parent=0 // pred_fallthru
    _
  // Predicated region
  $region38: #{grunet_forward.1} parent=0 // pred_check
    _
  $region39: #{grunet_forward.1} parent=0 // pred_check_branch
    %6137 = sbr.rel (0) target = $region41
  $region40: #{grunet_forward.1} parent=0 // pred_region
    _
  $region41: #{grunet_forward.1} parent=0 // pred_fallthru
    _
  // Predicated region
  $region42: #{grunet_forward.1} parent=0 // pred_check
    _
  $region43: #{grunet_forward.1} parent=0 // pred_check_branch
    %6139 = sbr.rel (0) target = $region45
  $region44: #{grunet_forward.1} parent=0 // pred_region
    _
  $region45: #{grunet_forward.1} parent=0 // pred_fallthru
    _

</llo_original>
